<compile_context>
chip_gen: v7x
topology: tpu7x:2x2x1
jax: 0.10.0
libtpu: 0.0.40
codegen_flags: <defaults>
</compile_context>

<pallas_src>
import functools

import jax
import jax.numpy as jnp
from jax.experimental import pallas as pl
from jax.experimental.pallas import tpu as pltpu


# ----------------------------------------------------------------------------
# Pallas kernel: fused (multi-phase) GEMM + bias/InstanceNorm + activation
# Layout: weights (P, N, K), patches (1, P, K, M), output (1, N, P*M)
#         -> M (spatial) is the last / lane axis everywhere.
# ----------------------------------------------------------------------------
def _fused_gemm_kernel(*refs, norm, act, nphase, has_res):
    w_ref, p_ref, b_ref = refs[0], refs[1], refs[2]
    r_ref = refs[3] if has_res else None
    o_ref = refs[-1]

    parts = []
    for ph in range(nphase):                       # static unroll (<= 4 phases)
        parts.append(jnp.dot(w_ref[ph], p_ref[0, ph],
                             preferred_element_type=jnp.float32))   # (N, M) f32
    x = parts[0] if nphase == 1 else jnp.concatenate(parts, axis=-1)  # (N, P*M)

    if norm:
        # InstanceNorm2d(affine=False, eps=1e-5): per-channel stats over all
        # spatial positions (all phases together == full output plane).
        mu = jnp.mean(x, axis=-1, keepdims=True)
        xc = x - mu
        var = jnp.mean(xc * xc, axis=-1, keepdims=True)
        x = xc * jax.lax.rsqrt(var + 1e-5)
        # bias intentionally skipped: it is exactly cancelled by mean subtraction
    else:
        x = x + b_ref[...]                         # (N,1) broadcast over lanes

    if has_res:
        x = x + r_ref[0]                           # fused residual add

    if act == 'relu':
        x = jnp.maximum(x, 0.0)
    elif act == 'tanh_scale':                      # final layer: (tanh(x)+1)/2
        x = (jnp.tanh(x) + 1.0) * 0.5

    o_ref[0] = x.astype(o_ref.dtype)


def fused_gemm(wmat, patches, bias, *, norm, act, residual=None):
    # wmat:    (P, N, K)     conv weights per phase
    # patches: (B, P, K, M)  lane-dense im2col patches (M = out_H*out_W)
    # bias:    (N,)          used only when norm=False
    # residual:(B, N, P*M)   optional fused residual add
    P, N, K = wmat.shape
    B, _, _, M = patches.shape

    # pad K (contraction dim) up to a multiple of 8 (sublane alignment)
    K_pad = ((K + 7) // 8) * 8
    if K_pad != K:
        wmat = jnp.pad(wmat, ((0, 0), (0, 0), (0, K_pad - K)))
        patches = jnp.pad(patches, ((0, 0), (0, 0), (0, K_pad - K), (0, 0)))

    wmat = wmat.astype(jnp.bfloat16)               # bf16 MXU inputs
    patches = patches.astype(jnp.bfloat16)
    bias2 = bias.reshape(N, 1).astype(jnp.float32)

    kernel = functools.partial(_fused_gemm_kernel, norm=norm, act=act,
                               nphase=P, has_res=residual is not None)

    in_specs = [
        pl.BlockSpec((P, N, K_pad), lambda b: (0, 0, 0)),
        pl.BlockSpec((1, P, K_pad, M), lambda b: (b, 0, 0, 0)),
        pl.BlockSpec((N, 1), lambda b: (0, 0)),
    ]
    inputs = [wmat, patches, bias2]
    if residual is not None:
        in_specs.append(pl.BlockSpec((1, N, P * M), lambda b: (b, 0, 0)))
        inputs.append(residual.astype(jnp.float32))

    # TODO(synk): for large images, tile M with a two-pass (sum/sumsq scratch +
    # pl.when finalize) InstanceNorm and an in-kernel shift-and-accumulate conv
    # (no HBM im2col); at demo sizes full-M blocks per batch element are exact
    # and tiny.
    return pl.pallas_call(
        kernel,
        out_shape=jax.ShapeDtypeStruct((B, N, P * M), jnp.float32),
        grid=(B,),
        in_specs=in_specs,
        out_specs=pl.BlockSpec((1, N, P * M), lambda b: (b, 0, 0)),
        compiler_params=pltpu.CompilerParams(
            dimension_semantics=("parallel",),
            vmem_limit_bytes=64 * 1024 * 1024),
    )(*inputs)


# ----------------------------------------------------------------------------
# Glue (plain JAX): padding, lane-dense im2col, conv / sub-pixel deconv wrappers
# ----------------------------------------------------------------------------
def _im2col_nchw(xp, kh, kw, stride=1, dilation=1):
    # xp: (B, C, Hp, Wp) already padded -> patches (B, C*kh*kw, oh*ow)
    B, C, Hp, Wp = xp.shape
    oh = (Hp - dilation * (kh - 1) - 1) // stride + 1
    ow = (Wp - dilation * (kw - 1) - 1) // stride + 1
    taps = []
    for i in range(kh):
        for j in range(kw):
            sl = xp[:, :,
                    i * dilation: i * dilation + (oh - 1) * stride + 1: stride,
                    j * dilation: j * dilation + (ow - 1) * stride + 1: stride]
            taps.append(sl)                                   # (B, C, oh, ow)
    p = jnp.stack(taps, axis=2)                               # (B, C, kh*kw, oh, ow)
    return p.reshape(B, C * kh * kw, oh * ow), oh, ow


def conv2d(x, w, b, *, stride=1, dilation=1, pad=0, pad_mode='constant',
           norm=False, act='none', residual=None):
    # x: (B, Cin, H, W); w: PyTorch Conv2d layout (Cout, Cin, kh, kw)
    Cout, Cin, kh, kw = w.shape
    B = x.shape[0]
    if pad > 0:
        x = jnp.pad(x, ((0, 0), (0, 0), (pad, pad), (pad, pad)), mode=pad_mode)
    patches, oh, ow = _im2col_nchw(x, kh, kw, stride, dilation)   # (B, K, M)
    wmat = w.reshape(1, Cout, Cin * kh * kw)                      # (1, N, K)
    patches = patches[:, None]                                    # (B, 1, K, M)
    res_flat = None
    if residual is not None:
        res_flat = residual.reshape(B, Cout, oh * ow)
    out = fused_gemm(wmat, patches, b, norm=norm, act=act, residual=res_flat)
    return out.reshape(B, Cout, oh, ow)


def conv_transpose2d(x, w, b, *, norm=False, act='none'):
    # ConvTranspose2d(k=4, stride=2, padding=1), 4-phase sub-pixel decomposition.
    # x: (B, Cin, H, W); w: PyTorch ConvTranspose2d layout (Cin, Cout, 4, 4)
    Cin, Cout, kh, kw = w.shape
    B, _, H, W = x.shape
    # output parity r (rows) / c (cols); taps ordered by increasing input index
    row_taps = {0: (3, 1), 1: (2, 0)}      # parity -> (k for dy=0, k for dy=1)
    pads = {0: (1, 0), 1: (0, 1)}          # parity -> (pad_before, pad_after)

    patch_list, wmat_list = [], []
    for r in range(2):
        for c in range(2):
            xp = jnp.pad(x, ((0, 0), (0, 0), pads[r], pads[c]))
            patches, oh, ow = _im2col_nchw(xp, 2, 2, stride=1, dilation=1)
            patch_list.append(patches)                        # (B, Cin*4, H*W)
            ky0, ky1 = row_taps[r]
            kx0, kx1 = row_taps[c]
            row0 = jnp.stack([w[:, :, ky0, kx0], w[:, :, ky0, kx1]], axis=-1)
            row1 = jnp.stack([w[:, :, ky1, kx0], w[:, :, ky1, kx1]], axis=-1)
            sub = jnp.stack([row0, row1], axis=-2)            # (Cin, Cout, 2, 2)
            sub = jnp.transpose(sub, (1, 0, 2, 3))            # (Cout, Cin, 2, 2)
            wmat_list.append(sub.reshape(Cout, Cin * 4))

    patches = jnp.stack(patch_list, axis=1)                   # (B, 4, K2, M)
    wmat = jnp.stack(wmat_list, axis=0)                       # (4, Cout, K2)
    out = fused_gemm(wmat, patches, b, norm=norm, act=act)    # (B, Cout, 4*M)
    # de-interleave phases: out[..., p=2r+c, y, x] -> final[..., 2y+r, 2x+c]
    out = out.reshape(B, Cout, 2, 2, H, W)
    out = jnp.transpose(out, (0, 1, 4, 2, 5, 3)).reshape(B, Cout, 2 * H, 2 * W)
    return out


# ----------------------------------------------------------------------------
# InpaintGenerator parameters (deterministic init) and forward pass
# ----------------------------------------------------------------------------
def init_inpaint_generator_params(key, in_channels=4, base=8, n_res=2):
    keys = iter(jax.random.split(key, 32))

    def conv_p(cin, cout, k):
        return {'w': jax.random.normal(next(keys), (cout, cin, k, k), jnp.float32) * 0.05,
                'b': jnp.zeros((cout,), jnp.float32)}

    def deconv_p(cin, cout, k):
        return {'w': jax.random.normal(next(keys), (cin, cout, k, k), jnp.float32) * 0.05,
                'b': jnp.zeros((cout,), jnp.float32)}

    return {
        'enc1': conv_p(in_channels, base, 7),
        'enc2': conv_p(base, base * 2, 4),
        'enc3': conv_p(base * 2, base * 4, 4),
        'res': [{'c1': conv_p(base * 4, base * 4, 3),
                 'c2': conv_p(base * 4, base * 4, 3)} for _ in range(n_res)],
        'dec1': deconv_p(base * 4, base * 2, 4),
        'dec2': deconv_p(base * 2, base, 4),
        'final': conv_p(base, 3, 7),
    }


def inpaint_generator(params, x_nchw):
    p = params
    x = x_nchw.astype(jnp.float32)                 # stay NCHW end-to-end
    # encoder
    x = conv2d(x, p['enc1']['w'], p['enc1']['b'], pad=3, pad_mode='reflect',
               norm=True, act='relu')
    x = conv2d(x, p['enc2']['w'], p['enc2']['b'], stride=2, pad=1,
               norm=True, act='relu')
    x = conv2d(x, p['enc3']['w'], p['enc3']['b'], stride=2, pad=1,
               norm=True, act='relu')
    # dilated residual blocks (residual add fused into the second conv kernel)
    for rb in p['res']:
        y = conv2d(x, rb['c1']['w'], rb['c1']['b'], pad=2, pad_mode='reflect',
                   dilation=2, norm=True, act='relu')
        x = conv2d(y, rb['c2']['w'], rb['c2']['b'], pad=1, pad_mode='reflect',
                   norm=True, act='none', residual=x)
    # decoder (sub-pixel decomposed transposed convs)
    x = conv_transpose2d(x, p['dec1']['w'], p['dec1']['b'], norm=True, act='relu')
    x = conv_transpose2d(x, p['dec2']['w'], p['dec2']['b'], norm=True, act='relu')
    # final conv + (tanh + 1) / 2
    x = conv2d(x, p['final']['w'], p['final']['b'], pad=3, pad_mode='reflect',
               norm=False, act='tanh_scale')
    return x


def inpainting_model_forward(params, *inputs):
    # InpaintingModel.forward: output = generator(torch.cat(inputs, dim=1))
    x = jnp.concatenate(inputs, axis=1)
    return inpaint_generator(params, x)


# TODO(synk): discriminator, L1/adversarial/perceptual/style losses, Adam
# optimizers and ONNX/file-IO paths belong to training/serialization, not the
# forward pass, and are not translated to Pallas.


if __name__ == "__main__":
    key = jax.random.PRNGKey(0)
    k_par, k_img, k_edge = jax.random.split(key, 3)

    B, H, W = 2, 16, 16
    images_masked = jax.random.uniform(k_img, (B, 3, H, W), jnp.float32)   # masked RGB
    edges = jax.random.uniform(k_edge, (B, 1, H, W), jnp.float32)          # edge map
    # concat -> 4 input channels (matches the 4-channel generator input)

    params = init_inpaint_generator_params(k_par, in_channels=4, base=8, n_res=2)

    fwd = jax.jit(lambda p, a, b: inpainting_model_forward(p, a, b))
    out = fwd(params, images_masked, edges)
    out = jax.block_until_ready(out)

    assert out.shape == (B, 3, H, W), out.shape
    assert bool(jnp.all(jnp.isfinite(out)))
    assert bool(jnp.all(out >= 0.0)) and bool(jnp.all(out <= 1.0))  # (tanh+1)/2 range
    print("KERNEL_OK")
</pallas_src>

<mosaic_0001>
module attributes {stable_mosaic.version = 11 : i64} {
  func.func @_fused_gemm_kernel(%arg0: i32, %arg1: memref<1x8x200xbf16, #tpu.memory_space<vmem>>, %arg2: memref<1x1x200x256xbf16, #tpu.memory_space<vmem>>, %arg3: memref<8x1xf32, #tpu.memory_space<vmem>>, %arg4: memref<1x8x256xf32, #tpu.memory_space<vmem>>) attributes {dimension_semantics = [#tpu.dimension_semantics<parallel>], iteration_bounds = array<i64: 2>, scalar_prefetch = 0 : i64, scratch_operands = 0 : i64, tpu.core_type = #tpu.core_type<tc>, window_params = [{pipeline_mode = #tpu.pipeline_mode<synchronous>, transform_indices = @transform_0, window_bounds = array<i64: 1, 8, 200>}, {transform_indices = @transform_1, window_bounds = array<i64: 1, 1, 200, 256>}, {pipeline_mode = #tpu.pipeline_mode<synchronous>, transform_indices = @transform_2, window_bounds = array<i64: 8, 1>}, {transform_indices = @transform_3, window_bounds = array<i64: 1, 8, 256>}]} {
    %c0 = arith.constant 0 : index
    %c0_0 = arith.constant 0 : index
    %c0_1 = arith.constant 0 : index
    %0 = vector.load %arg1[%c0, %c0_0, %c0_1] : memref<1x8x200xbf16, #tpu.memory_space<vmem>>, vector<1x8x200xbf16>
    %1 = vector.shape_cast %0 : vector<1x8x200xbf16> to vector<8x200xbf16>
    %c0_2 = arith.constant 0 : index
    %c0_3 = arith.constant 0 : index
    %c0_4 = arith.constant 0 : index
    %c0_5 = arith.constant 0 : index
    %2 = vector.load %arg2[%c0_2, %c0_3, %c0_4, %c0_5] : memref<1x1x200x256xbf16, #tpu.memory_space<vmem>>, vector<1x1x200x256xbf16>
    %3 = vector.shape_cast %2 : vector<1x1x200x256xbf16> to vector<200x256xbf16>
    %cst = arith.constant dense<0.000000e+00> : vector<8x256xf32>
    %4 = tpu.matmul %1, %3, %cst {dimension_numbers = #tpu.dot_dimension_numbers<[1], [0], [0], [1], [0, 0, 1, 1], [], []>} : vector<8x200xbf16>, vector<200x256xbf16>, vector<8x256xf32> -> vector<8x256xf32>
    %cst_6 = arith.constant dense<0.000000e+00> : vector<8xf32>
    %5 = vector.multi_reduction <add>, %4, %cst_6 [1] : vector<8x256xf32> to vector<8xf32>
    %6 = vector.shape_cast %5 : vector<8xf32> to vector<8x1xf32>
    %cst_7 = arith.constant 2.560000e+02 : f32
    %7 = vector.broadcast %cst_7 : f32 to vector<8x1xf32>
    %8 = arith.divf %6, %7 : vector<8x1xf32>
    %9 = vector.broadcast %8 : vector<8x1xf32> to vector<8x256xf32>
    %10 = arith.subf %4, %9 : vector<8x256xf32>
    %11 = arith.mulf %10, %10 : vector<8x256xf32>
    %cst_8 = arith.constant dense<0.000000e+00> : vector<8xf32>
    %12 = vector.multi_reduction <add>, %11, %cst_8 [1] : vector<8x256xf32> to vector<8xf32>
    %13 = vector.shape_cast %12 : vector<8xf32> to vector<8x1xf32>
    %cst_9 = arith.constant 2.560000e+02 : f32
    %14 = vector.broadcast %cst_9 : f32 to vector<8x1xf32>
    %15 = arith.divf %13, %14 : vector<8x1xf32>
    %cst_10 = arith.constant 9.99999974E-6 : f32
    %16 = vector.broadcast %cst_10 : f32 to vector<8x1xf32>
    %17 = arith.addf %15, %16 : vector<8x1xf32>
    %18 = math.rsqrt %17 : vector<8x1xf32>
    %19 = vector.broadcast %18 : vector<8x1xf32> to vector<8x256xf32>
    %20 = arith.mulf %10, %19 : vector<8x256xf32>
    %cst_11 = arith.constant 0.000000e+00 : f32
    %21 = vector.broadcast %cst_11 : f32 to vector<8x256xf32>
    %22 = arith.maximumf %20, %21 : vector<8x256xf32>
    %c0_12 = arith.constant 0 : index
    %c0_13 = arith.constant 0 : index
    %c0_14 = arith.constant 0 : index
    %23 = vector.load %arg4[%c0_12, %c0_13, %c0_14] : memref<1x8x256xf32, #tpu.memory_space<vmem>>, vector<1x8x256xf32>
    %24 = vector.shape_cast %23 : vector<1x8x256xf32> to vector<8x256xf32>
    %25 = vector.shape_cast %22 : vector<8x256xf32> to vector<1x8x256xf32>
    tpu.vector_store %arg4[%c0_12, %c0_13, %c0_14], %25 {strides = array<i32>} : memref<1x8x256xf32, #tpu.memory_space<vmem>>, vector<1x8x256xf32>,
    return
  }
  func.func @transform_0(%arg0: i32) -> (i32, i32, i32) {
    %c0_i32 = arith.constant 0 : i32
    %c0_i32_0 = arith.constant 0 : i32
    %c0_i32_1 = arith.constant 0 : i32
    %c0_i32_2 = arith.constant 0 : i32
    return %c0_i32, %c0_i32_0, %c0_i32_1 : i32, i32, i32
  }
  func.func @transform_1(%arg0: i32) -> (i32, i32, i32, i32) {
    %c0_i32 = arith.constant 0 : i32
    %c0_i32_0 = arith.constant 0 : i32
    %c0_i32_1 = arith.constant 0 : i32
    %c0_i32_2 = arith.constant 0 : i32
    return %arg0, %c0_i32, %c0_i32_0, %c0_i32_1 : i32, i32, i32, i32
  }
  func.func @transform_2(%arg0: i32) -> (i32, i32) {
    %c0_i32 = arith.constant 0 : i32
    %c0_i32_0 = arith.constant 0 : i32
    %c0_i32_1 = arith.constant 0 : i32
    return %c0_i32, %c0_i32_0 : i32, i32
  }
  func.func @transform_3(%arg0: i32) -> (i32, i32, i32) {
    %c0_i32 = arith.constant 0 : i32
    %c0_i32_0 = arith.constant 0 : i32
    %c0_i32_1 = arith.constant 0 : i32
    return %arg0, %c0_i32, %c0_i32_0 : i32, i32, i32
  }
}

module attributes {stable_mosaic.version = 11 : i64} {
  func.func @_fused_gemm_kernel(%arg0: i32, %arg1: memref<1x16x128xbf16, #tpu.memory_space<vmem>>, %arg2: memref<1x1x128x64xbf16, #tpu.memory_space<vmem>>, %arg3: memref<16x1xf32, #tpu.memory_space<vmem>>, %arg4: memref<1x16x64xf32, #tpu.memory_space<vmem>>) attributes {dimension_semantics = [#tpu.dimension_semantics<parallel>], iteration_bounds = array<i64: 2>, scalar_prefetch = 0 : i64, scratch_operands = 0 : i64, tpu.core_type = #tpu.core_type<tc>, window_params = [{pipeline_mode = #tpu.pipeline_mode<synchronous>, transform_indices = @transform_0, window_bounds = array<i64: 1, 16, 128>}, {transform_indices = @transform_1, window_bounds = array<i64: 1, 1, 128, 64>}, {pipeline_mode = #tpu.pipeline_mode<synchronous>, transform_indices = @transform_2, window_bounds = array<i64: 16, 1>}, {transform_indices = @transform_3, window_bounds = array<i64: 1, 16, 64>}]} {
    %c0 = arith.constant 0 : index
    %c0_0 = arith.constant 0 : index
    %c0_1 = arith.constant 0 : index
    %0 = vector.load %arg1[%c0, %c0_0, %c0_1] : memref<1x16x128xbf16, #tpu.memory_space<vmem>>, vector<1x16x128xbf16>
    %1 = vector.shape_cast %0 : vector<1x16x128xbf16> to vector<16x128xbf16>
    %c0_2 = arith.constant 0 : index
    %c0_3 = arith.constant 0 : index
    %c0_4 = arith.constant 0 : index
    %c0_5 = arith.constant 0 : index
    %2 = vector.load %arg2[%c0_2, %c0_3, %c0_4, %c0_5] : memref<1x1x128x64xbf16, #tpu.memory_space<vmem>>, vector<1x1x128x64xbf16>
    %3 = vector.shape_cast %2 : vector<1x1x128x64xbf16> to vector<128x64xbf16>
    %cst = arith.constant dense<0.000000e+00> : vector<16x64xf32>
    %4 = tpu.matmul %1, %3, %cst {dimension_numbers = #tpu.dot_dimension_numbers<[1], [0], [0], [1], [0, 0, 1, 1], [], []>} : vector<16x128xbf16>, vector<128x64xbf16>, vector<16x64xf32> -> vector<16x64xf32>
    %cst_6 = arith.constant dense<0.000000e+00> : vector<16xf32>
    %5 = vector.multi_reduction <add>, %4, %cst_6 [1] : vector<16x64xf32> to vector<16xf32>
    %6 = vector.shape_cast %5 : vector<16xf32> to vector<16x1xf32>
    %cst_7 = arith.constant 6.400000e+01 : f32
    %7 = vector.broadcast %cst_7 : f32 to vector<16x1xf32>
    %8 = arith.divf %6, %7 : vector<16x1xf32>
    %9 = vector.broadcast %8 : vector<16x1xf32> to vector<16x64xf32>
    %10 = arith.subf %4, %9 : vector<16x64xf32>
    %11 = arith.mulf %10, %10 : vector<16x64xf32>
    %cst_8 = arith.constant dense<0.000000e+00> : vector<16xf32>
    %12 = vector.multi_reduction <add>, %11, %cst_8 [1] : vector<16x64xf32> to vector<16xf32>
    %13 = vector.shape_cast %12 : vector<16xf32> to vector<16x1xf32>
    %cst_9 = arith.constant 6.400000e+01 : f32
    %14 = vector.broadcast %cst_9 : f32 to vector<16x1xf32>
    %15 = arith.divf %13, %14 : vector<16x1xf32>
    %cst_10 = arith.constant 9.99999974E-6 : f32
    %16 = vector.broadcast %cst_10 : f32 to vector<16x1xf32>
    %17 = arith.addf %15, %16 : vector<16x1xf32>
    %18 = math.rsqrt %17 : vector<16x1xf32>
    %19 = vector.broadcast %18 : vector<16x1xf32> to vector<16x64xf32>
    %20 = arith.mulf %10, %19 : vector<16x64xf32>
    %cst_11 = arith.constant 0.000000e+00 : f32
    %21 = vector.broadcast %cst_11 : f32 to vector<16x64xf32>
    %22 = arith.maximumf %20, %21 : vector<16x64xf32>
    %c0_12 = arith.constant 0 : index
    %c0_13 = arith.constant 0 : index
    %c0_14 = arith.constant 0 : index
    %23 = vector.load %arg4[%c0_12, %c0_13, %c0_14] : memref<1x16x64xf32, #tpu.memory_space<vmem>>, vector<1x16x64xf32>
    %24 = vector.shape_cast %23 : vector<1x16x64xf32> to vector<16x64xf32>
    %25 = vector.shape_cast %22 : vector<16x64xf32> to vector<1x16x64xf32>
    tpu.vector_store %arg4[%c0_12, %c0_13, %c0_14], %25 {strides = array<i32>} : memref<1x16x64xf32, #tpu.memory_space<vmem>>, vector<1x16x64xf32>,
    return
  }
  func.func @transform_0(%arg0: i32) -> (i32, i32, i32) {
    %c0_i32 = arith.constant 0 : i32
    %c0_i32_0 = arith.constant 0 : i32
    %c0_i32_1 = arith.constant 0 : i32
    %c0_i32_2 = arith.constant 0 : i32
    return %c0_i32, %c0_i32_0, %c0_i32_1 : i32, i32, i32
  }
  func.func @transform_1(%arg0: i32) -> (i32, i32, i32, i32) {
    %c0_i32 = arith.constant 0 : i32
    %c0_i32_0 = arith.constant 0 : i32
    %c0_i32_1 = arith.constant 0 : i32
    %c0_i32_2 = arith.constant 0 : i32
    return %arg0, %c0_i32, %c0_i32_0, %c0_i32_1 : i32, i32, i32, i32
  }
  func.func @transform_2(%arg0: i32) -> (i32, i32) {
    %c0_i32 = arith.constant 0 : i32
    %c0_i32_0 = arith.constant 0 : i32
    %c0_i32_1 = arith.constant 0 : i32
    return %c0_i32, %c0_i32_0 : i32, i32
  }
  func.func @transform_3(%arg0: i32) -> (i32, i32, i32) {
    %c0_i32 = arith.constant 0 : i32
    %c0_i32_0 = arith.constant 0 : i32
    %c0_i32_1 = arith.constant 0 : i32
    return %arg0, %c0_i32, %c0_i32_0 : i32, i32, i32
  }
}

module attributes {stable_mosaic.version = 11 : i64} {
  func.func @_fused_gemm_kernel(%arg0: i32, %arg1: memref<1x32x256xbf16, #tpu.memory_space<vmem>>, %arg2: memref<1x1x256x16xbf16, #tpu.memory_space<vmem>>, %arg3: memref<32x1xf32, #tpu.memory_space<vmem>>, %arg4: memref<1x32x16xf32, #tpu.memory_space<vmem>>) attributes {dimension_semantics = [#tpu.dimension_semantics<parallel>], iteration_bounds = array<i64: 2>, scalar_prefetch = 0 : i64, scratch_operands = 0 : i64, tpu.core_type = #tpu.core_type<tc>, window_params = [{pipeline_mode = #tpu.pipeline_mode<synchronous>, transform_indices = @transform_0, window_bounds = array<i64: 1, 32, 256>}, {transform_indices = @transform_1, window_bounds = array<i64: 1, 1, 256, 16>}, {pipeline_mode = #tpu.pipeline_mode<synchronous>, transform_indices = @transform_2, window_bounds = array<i64: 32, 1>}, {transform_indices = @transform_3, window_bounds = array<i64: 1, 32, 16>}]} {
    %c0 = arith.constant 0 : index
    %c0_0 = arith.constant 0 : index
    %c0_1 = arith.constant 0 : index
    %0 = vector.load %arg1[%c0, %c0_0, %c0_1] : memref<1x32x256xbf16, #tpu.memory_space<vmem>>, vector<1x32x256xbf16>
    %1 = vector.shape_cast %0 : vector<1x32x256xbf16> to vector<32x256xbf16>
    %c0_2 = arith.constant 0 : index
    %c0_3 = arith.constant 0 : index
    %c0_4 = arith.constant 0 : index
    %c0_5 = arith.constant 0 : index
    %2 = vector.load %arg2[%c0_2, %c0_3, %c0_4, %c0_5] : memref<1x1x256x16xbf16, #tpu.memory_space<vmem>>, vector<1x1x256x16xbf16>
    %3 = vector.shape_cast %2 : vector<1x1x256x16xbf16> to vector<256x16xbf16>
    %cst = arith.constant dense<0.000000e+00> : vector<32x16xf32>
    %4 = tpu.matmul %1, %3, %cst {dimension_numbers = #tpu.dot_dimension_numbers<[1], [0], [0], [1], [0, 0, 1, 1], [], []>} : vector<32x256xbf16>, vector<256x16xbf16>, vector<32x16xf32> -> vector<32x16xf32>
    %cst_6 = arith.constant dense<0.000000e+00> : vector<32xf32>
    %5 = vector.multi_reduction <add>, %4, %cst_6 [1] : vector<32x16xf32> to vector<32xf32>
    %6 = vector.shape_cast %5 : vector<32xf32> to vector<32x1xf32>
    %cst_7 = arith.constant 1.600000e+01 : f32
    %7 = vector.broadcast %cst_7 : f32 to vector<32x1xf32>
    %8 = arith.divf %6, %7 : vector<32x1xf32>
    %9 = vector.broadcast %8 : vector<32x1xf32> to vector<32x16xf32>
    %10 = arith.subf %4, %9 : vector<32x16xf32>
    %11 = arith.mulf %10, %10 : vector<32x16xf32>
    %cst_8 = arith.constant dense<0.000000e+00> : vector<32xf32>
    %12 = vector.multi_reduction <add>, %11, %cst_8 [1] : vector<32x16xf32> to vector<32xf32>
    %13 = vector.shape_cast %12 : vector<32xf32> to vector<32x1xf32>
    %cst_9 = arith.constant 1.600000e+01 : f32
    %14 = vector.broadcast %cst_9 : f32 to vector<32x1xf32>
    %15 = arith.divf %13, %14 : vector<32x1xf32>
    %cst_10 = arith.constant 9.99999974E-6 : f32
    %16 = vector.broadcast %cst_10 : f32 to vector<32x1xf32>
    %17 = arith.addf %15, %16 : vector<32x1xf32>
    %18 = math.rsqrt %17 : vector<32x1xf32>
    %19 = vector.broadcast %18 : vector<32x1xf32> to vector<32x16xf32>
    %20 = arith.mulf %10, %19 : vector<32x16xf32>
    %cst_11 = arith.constant 0.000000e+00 : f32
    %21 = vector.broadcast %cst_11 : f32 to vector<32x16xf32>
    %22 = arith.maximumf %20, %21 : vector<32x16xf32>
    %c0_12 = arith.constant 0 : index
    %c0_13 = arith.constant 0 : index
    %c0_14 = arith.constant 0 : index
    %23 = vector.load %arg4[%c0_12, %c0_13, %c0_14] : memref<1x32x16xf32, #tpu.memory_space<vmem>>, vector<1x32x16xf32>
    %24 = vector.shape_cast %23 : vector<1x32x16xf32> to vector<32x16xf32>
    %25 = vector.shape_cast %22 : vector<32x16xf32> to vector<1x32x16xf32>
    tpu.vector_store %arg4[%c0_12, %c0_13, %c0_14], %25 {strides = array<i32>} : memref<1x32x16xf32, #tpu.memory_space<vmem>>, vector<1x32x16xf32>,
    return
  }
  func.func @transform_0(%arg0: i32) -> (i32, i32, i32) {
    %c0_i32 = arith.constant 0 : i32
    %c0_i32_0 = arith.constant 0 : i32
    %c0_i32_1 = arith.constant 0 : i32
    %c0_i32_2 = arith.constant 0 : i32
    return %c0_i32, %c0_i32_0, %c0_i32_1 : i32, i32, i32
  }
  func.func @transform_1(%arg0: i32) -> (i32, i32, i32, i32) {
    %c0_i32 = arith.constant 0 : i32
    %c0_i32_0 = arith.constant 0 : i32
    %c0_i32_1 = arith.constant 0 : i32
    %c0_i32_2 = arith.constant 0 : i32
    return %arg0, %c0_i32, %c0_i32_0, %c0_i32_1 : i32, i32, i32, i32
  }
  func.func @transform_2(%arg0: i32) -> (i32, i32) {
    %c0_i32 = arith.constant 0 : i32
    %c0_i32_0 = arith.constant 0 : i32
    %c0_i32_1 = arith.constant 0 : i32
    return %c0_i32, %c0_i32_0 : i32, i32
  }
  func.func @transform_3(%arg0: i32) -> (i32, i32, i32) {
    %c0_i32 = arith.constant 0 : i32
    %c0_i32_0 = arith.constant 0 : i32
    %c0_i32_1 = arith.constant 0 : i32
    return %arg0, %c0_i32, %c0_i32_0 : i32, i32, i32
  }
}

module attributes {stable_mosaic.version = 11 : i64} {
  func.func @_fused_gemm_kernel(%arg0: i32, %arg1: memref<1x32x288xbf16, #tpu.memory_space<vmem>>, %arg2: memref<1x1x288x16xbf16, #tpu.memory_space<vmem>>, %arg3: memref<32x1xf32, #tpu.memory_space<vmem>>, %arg4: memref<1x32x16xf32, #tpu.memory_space<vmem>>) attributes {dimension_semantics = [#tpu.dimension_semantics<parallel>], iteration_bounds = array<i64: 2>, scalar_prefetch = 0 : i64, scratch_operands = 0 : i64, tpu.core_type = #tpu.core_type<tc>, window_params = [{pipeline_mode = #tpu.pipeline_mode<synchronous>, transform_indices = @transform_0, window_bounds = array<i64: 1, 32, 288>}, {transform_indices = @transform_1, window_bounds = array<i64: 1, 1, 288, 16>}, {pipeline_mode = #tpu.pipeline_mode<synchronous>, transform_indices = @transform_2, window_bounds = array<i64: 32, 1>}, {transform_indices = @transform_3, window_bounds = array<i64: 1, 32, 16>}]} {
    %c0 = arith.constant 0 : index
    %c0_0 = arith.constant 0 : index
    %c0_1 = arith.constant 0 : index
    %0 = vector.load %arg1[%c0, %c0_0, %c0_1] : memref<1x32x288xbf16, #tpu.memory_space<vmem>>, vector<1x32x288xbf16>
    %1 = vector.shape_cast %0 : vector<1x32x288xbf16> to vector<32x288xbf16>
    %c0_2 = arith.constant 0 : index
    %c0_3 = arith.constant 0 : index
    %c0_4 = arith.constant 0 : index
    %c0_5 = arith.constant 0 : index
    %2 = vector.load %arg2[%c0_2, %c0_3, %c0_4, %c0_5] : memref<1x1x288x16xbf16, #tpu.memory_space<vmem>>, vector<1x1x288x16xbf16>
    %3 = vector.shape_cast %2 : vector<1x1x288x16xbf16> to vector<288x16xbf16>
    %cst = arith.constant dense<0.000000e+00> : vector<32x16xf32>
    %4 = tpu.matmul %1, %3, %cst {dimension_numbers = #tpu.dot_dimension_numbers<[1], [0], [0], [1], [0, 0, 1, 1], [], []>} : vector<32x288xbf16>, vector<288x16xbf16>, vector<32x16xf32> -> vector<32x16xf32>
    %cst_6 = arith.constant dense<0.000000e+00> : vector<32xf32>
    %5 = vector.multi_reduction <add>, %4, %cst_6 [1] : vector<32x16xf32> to vector<32xf32>
    %6 = vector.shape_cast %5 : vector<32xf32> to vector<32x1xf32>
    %cst_7 = arith.constant 1.600000e+01 : f32
    %7 = vector.broadcast %cst_7 : f32 to vector<32x1xf32>
    %8 = arith.divf %6, %7 : vector<32x1xf32>
    %9 = vector.broadcast %8 : vector<32x1xf32> to vector<32x16xf32>
    %10 = arith.subf %4, %9 : vector<32x16xf32>
    %11 = arith.mulf %10, %10 : vector<32x16xf32>
    %cst_8 = arith.constant dense<0.000000e+00> : vector<32xf32>
    %12 = vector.multi_reduction <add>, %11, %cst_8 [1] : vector<32x16xf32> to vector<32xf32>
    %13 = vector.shape_cast %12 : vector<32xf32> to vector<32x1xf32>
    %cst_9 = arith.constant 1.600000e+01 : f32
    %14 = vector.broadcast %cst_9 : f32 to vector<32x1xf32>
    %15 = arith.divf %13, %14 : vector<32x1xf32>
    %cst_10 = arith.constant 9.99999974E-6 : f32
    %16 = vector.broadcast %cst_10 : f32 to vector<32x1xf32>
    %17 = arith.addf %15, %16 : vector<32x1xf32>
    %18 = math.rsqrt %17 : vector<32x1xf32>
    %19 = vector.broadcast %18 : vector<32x1xf32> to vector<32x16xf32>
    %20 = arith.mulf %10, %19 : vector<32x16xf32>
    %cst_11 = arith.constant 0.000000e+00 : f32
    %21 = vector.broadcast %cst_11 : f32 to vector<32x16xf32>
    %22 = arith.maximumf %20, %21 : vector<32x16xf32>
    %c0_12 = arith.constant 0 : index
    %c0_13 = arith.constant 0 : index
    %c0_14 = arith.constant 0 : index
    %23 = vector.load %arg4[%c0_12, %c0_13, %c0_14] : memref<1x32x16xf32, #tpu.memory_space<vmem>>, vector<1x32x16xf32>
    %24 = vector.shape_cast %23 : vector<1x32x16xf32> to vector<32x16xf32>
    %25 = vector.shape_cast %22 : vector<32x16xf32> to vector<1x32x16xf32>
    tpu.vector_store %arg4[%c0_12, %c0_13, %c0_14], %25 {strides = array<i32>} : memref<1x32x16xf32, #tpu.memory_space<vmem>>, vector<1x32x16xf32>,
    return
  }
  func.func @transform_0(%arg0: i32) -> (i32, i32, i32) {
    %c0_i32 = arith.constant 0 : i32
    %c0_i32_0 = arith.constant 0 : i32
    %c0_i32_1 = arith.constant 0 : i32
    %c0_i32_2 = arith.constant 0 : i32
    return %c0_i32, %c0_i32_0, %c0_i32_1 : i32, i32, i32
  }
  func.func @transform_1(%arg0: i32) -> (i32, i32, i32, i32) {
    %c0_i32 = arith.constant 0 : i32
    %c0_i32_0 = arith.constant 0 : i32
    %c0_i32_1 = arith.constant 0 : i32
    %c0_i32_2 = arith.constant 0 : i32
    return %arg0, %c0_i32, %c0_i32_0, %c0_i32_1 : i32, i32, i32, i32
  }
  func.func @transform_2(%arg0: i32) -> (i32, i32) {
    %c0_i32 = arith.constant 0 : i32
    %c0_i32_0 = arith.constant 0 : i32
    %c0_i32_1 = arith.constant 0 : i32
    return %c0_i32, %c0_i32_0 : i32, i32
  }
  func.func @transform_3(%arg0: i32) -> (i32, i32, i32) {
    %c0_i32 = arith.constant 0 : i32
    %c0_i32_0 = arith.constant 0 : i32
    %c0_i32_1 = arith.constant 0 : i32
    return %arg0, %c0_i32, %c0_i32_0 : i32, i32, i32
  }
}

module attributes {stable_mosaic.version = 11 : i64} {
  func.func @_fused_gemm_kernel(%arg0: i32, %arg1: memref<1x32x288xbf16, #tpu.memory_space<vmem>>, %arg2: memref<1x1x288x16xbf16, #tpu.memory_space<vmem>>, %arg3: memref<32x1xf32, #tpu.memory_space<vmem>>, %arg4: memref<1x32x16xf32, #tpu.memory_space<vmem>>, %arg5: memref<1x32x16xf32, #tpu.memory_space<vmem>>) attributes {dimension_semantics = [#tpu.dimension_semantics<parallel>], iteration_bounds = array<i64: 2>, scalar_prefetch = 0 : i64, scratch_operands = 0 : i64, tpu.core_type = #tpu.core_type<tc>, window_params = [{pipeline_mode = #tpu.pipeline_mode<synchronous>, transform_indices = @transform_0, window_bounds = array<i64: 1, 32, 288>}, {transform_indices = @transform_1, window_bounds = array<i64: 1, 1, 288, 16>}, {pipeline_mode = #tpu.pipeline_mode<synchronous>, transform_indices = @transform_2, window_bounds = array<i64: 32, 1>}, {transform_indices = @transform_3, window_bounds = array<i64: 1, 32, 16>}, {transform_indices = @transform_4, window_bounds = array<i64: 1, 32, 16>}]} {
    %c0 = arith.constant 0 : index
    %c0_0 = arith.constant 0 : index
    %c0_1 = arith.constant 0 : index
    %0 = vector.load %arg1[%c0, %c0_0, %c0_1] : memref<1x32x288xbf16, #tpu.memory_space<vmem>>, vector<1x32x288xbf16>
    %1 = vector.shape_cast %0 : vector<1x32x288xbf16> to vector<32x288xbf16>
    %c0_2 = arith.constant 0 : index
    %c0_3 = arith.constant 0 : index
    %c0_4 = arith.constant 0 : index
    %c0_5 = arith.constant 0 : index
    %2 = vector.load %arg2[%c0_2, %c0_3, %c0_4, %c0_5] : memref<1x1x288x16xbf16, #tpu.memory_space<vmem>>, vector<1x1x288x16xbf16>
    %3 = vector.shape_cast %2 : vector<1x1x288x16xbf16> to vector<288x16xbf16>
    %cst = arith.constant dense<0.000000e+00> : vector<32x16xf32>
    %4 = tpu.matmul %1, %3, %cst {dimension_numbers = #tpu.dot_dimension_numbers<[1], [0], [0], [1], [0, 0, 1, 1], [], []>} : vector<32x288xbf16>, vector<288x16xbf16>, vector<32x16xf32> -> vector<32x16xf32>
    %cst_6 = arith.constant dense<0.000000e+00> : vector<32xf32>
    %5 = vector.multi_reduction <add>, %4, %cst_6 [1] : vector<32x16xf32> to vector<32xf32>
    %6 = vector.shape_cast %5 : vector<32xf32> to vector<32x1xf32>
    %cst_7 = arith.constant 1.600000e+01 : f32
    %7 = vector.broadcast %cst_7 : f32 to vector<32x1xf32>
    %8 = arith.divf %6, %7 : vector<32x1xf32>
    %9 = vector.broadcast %8 : vector<32x1xf32> to vector<32x16xf32>
    %10 = arith.subf %4, %9 : vector<32x16xf32>
    %11 = arith.mulf %10, %10 : vector<32x16xf32>
    %cst_8 = arith.constant dense<0.000000e+00> : vector<32xf32>
    %12 = vector.multi_reduction <add>, %11, %cst_8 [1] : vector<32x16xf32> to vector<32xf32>
    %13 = vector.shape_cast %12 : vector<32xf32> to vector<32x1xf32>
    %cst_9 = arith.constant 1.600000e+01 : f32
    %14 = vector.broadcast %cst_9 : f32 to vector<32x1xf32>
    %15 = arith.divf %13, %14 : vector<32x1xf32>
    %cst_10 = arith.constant 9.99999974E-6 : f32
    %16 = vector.broadcast %cst_10 : f32 to vector<32x1xf32>
    %17 = arith.addf %15, %16 : vector<32x1xf32>
    %18 = math.rsqrt %17 : vector<32x1xf32>
    %19 = vector.broadcast %18 : vector<32x1xf32> to vector<32x16xf32>
    %20 = arith.mulf %10, %19 : vector<32x16xf32>
    %c0_11 = arith.constant 0 : index
    %c0_12 = arith.constant 0 : index
    %c0_13 = arith.constant 0 : index
    %21 = vector.load %arg4[%c0_11, %c0_12, %c0_13] : memref<1x32x16xf32, #tpu.memory_space<vmem>>, vector<1x32x16xf32>
    %22 = vector.shape_cast %21 : vector<1x32x16xf32> to vector<32x16xf32>
    %23 = arith.addf %20, %22 : vector<32x16xf32>
    %c0_14 = arith.constant 0 : index
    %c0_15 = arith.constant 0 : index
    %c0_16 = arith.constant 0 : index
    %24 = vector.load %arg5[%c0_14, %c0_15, %c0_16] : memref<1x32x16xf32, #tpu.memory_space<vmem>>, vector<1x32x16xf32>
    %25 = vector.shape_cast %24 : vector<1x32x16xf32> to vector<32x16xf32>
    %26 = vector.shape_cast %23 : vector<32x16xf32> to vector<1x32x16xf32>
    tpu.vector_store %arg5[%c0_14, %c0_15, %c0_16], %26 {strides = array<i32>} : memref<1x32x16xf32, #tpu.memory_space<vmem>>, vector<1x32x16xf32>,
    return
  }
  func.func @transform_0(%arg0: i32) -> (i32, i32, i32) {
    %c0_i32 = arith.constant 0 : i32
    %c0_i32_0 = arith.constant 0 : i32
    %c0_i32_1 = arith.constant 0 : i32
    %c0_i32_2 = arith.constant 0 : i32
    return %c0_i32, %c0_i32_0, %c0_i32_1 : i32, i32, i32
  }
  func.func @transform_1(%arg0: i32) -> (i32, i32, i32, i32) {
    %c0_i32 = arith.constant 0 : i32
    %c0_i32_0 = arith.constant 0 : i32
    %c0_i32_1 = arith.constant 0 : i32
    %c0_i32_2 = arith.constant 0 : i32
    return %arg0, %c0_i32, %c0_i32_0, %c0_i32_1 : i32, i32, i32, i32
  }
  func.func @transform_2(%arg0: i32) -> (i32, i32) {
    %c0_i32 = arith.constant 0 : i32
    %c0_i32_0 = arith.constant 0 : i32
    %c0_i32_1 = arith.constant 0 : i32
    return %c0_i32, %c0_i32_0 : i32, i32
  }
  func.func @transform_3(%arg0: i32) -> (i32, i32, i32) {
    %c0_i32 = arith.constant 0 : i32
    %c0_i32_0 = arith.constant 0 : i32
    %c0_i32_1 = arith.constant 0 : i32
    return %arg0, %c0_i32, %c0_i32_0 : i32, i32, i32
  }
  func.func @transform_4(%arg0: i32) -> (i32, i32, i32) {
    %c0_i32 = arith.constant 0 : i32
    %c0_i32_0 = arith.constant 0 : i32
    %c0_i32_1 = arith.constant 0 : i32
    return %arg0, %c0_i32, %c0_i32_0 : i32, i32, i32
  }
}

module attributes {stable_mosaic.version = 11 : i64} {
  func.func @_fused_gemm_kernel(%arg0: i32, %arg1: memref<4x16x128xbf16, #tpu.memory_space<vmem>>, %arg2: memref<1x4x128x16xbf16, #tpu.memory_space<vmem>>, %arg3: memref<16x1xf32, #tpu.memory_space<vmem>>, %arg4: memref<1x16x64xf32, #tpu.memory_space<vmem>>) attributes {dimension_semantics = [#tpu.dimension_semantics<parallel>], iteration_bounds = array<i64: 2>, scalar_prefetch = 0 : i64, scratch_operands = 0 : i64, tpu.core_type = #tpu.core_type<tc>, window_params = [{pipeline_mode = #tpu.pipeline_mode<synchronous>, transform_indices = @transform_0, window_bounds = array<i64: 4, 16, 128>}, {transform_indices = @transform_1, window_bounds = array<i64: 1, 4, 128, 16>}, {pipeline_mode = #tpu.pipeline_mode<synchronous>, transform_indices = @transform_2, window_bounds = array<i64: 16, 1>}, {transform_indices = @transform_3, window_bounds = array<i64: 1, 16, 64>}]} {
    %c0 = arith.constant 0 : index
    %c0_0 = arith.constant 0 : index
    %c0_1 = arith.constant 0 : index
    %0 = vector.load %arg1[%c0, %c0_0, %c0_1] : memref<4x16x128xbf16, #tpu.memory_space<vmem>>, vector<1x16x128xbf16>
    %1 = vector.shape_cast %0 : vector<1x16x128xbf16> to vector<16x128xbf16>
    %c0_2 = arith.constant 0 : index
    %c0_3 = arith.constant 0 : index
    %c0_4 = arith.constant 0 : index
    %c0_5 = arith.constant 0 : index
    %2 = vector.load %arg2[%c0_2, %c0_3, %c0_4, %c0_5] : memref<1x4x128x16xbf16, #tpu.memory_space<vmem>>, vector<1x1x128x16xbf16>
    %3 = vector.shape_cast %2 : vector<1x1x128x16xbf16> to vector<128x16xbf16>
    %cst = arith.constant dense<0.000000e+00> : vector<16x16xf32>
    %4 = tpu.matmul %1, %3, %cst {dimension_numbers = #tpu.dot_dimension_numbers<[1], [0], [0], [1], [0, 0, 1, 1], [], []>} : vector<16x128xbf16>, vector<128x16xbf16>, vector<16x16xf32> -> vector<16x16xf32>
    %c1 = arith.constant 1 : index
    %c0_6 = arith.constant 0 : index
    %c0_7 = arith.constant 0 : index
    %5 = vector.load %arg1[%c1, %c0_6, %c0_7] : memref<4x16x128xbf16, #tpu.memory_space<vmem>>, vector<1x16x128xbf16>
    %6 = vector.shape_cast %5 : vector<1x16x128xbf16> to vector<16x128xbf16>
    %c0_8 = arith.constant 0 : index
    %c1_9 = arith.constant 1 : index
    %c0_10 = arith.constant 0 : index
    %c0_11 = arith.constant 0 : index
    %7 = vector.load %arg2[%c0_8, %c1_9, %c0_10, %c0_11] : memref<1x4x128x16xbf16, #tpu.memory_space<vmem>>, vector<1x1x128x16xbf16>
    %8 = vector.shape_cast %7 : vector<1x1x128x16xbf16> to vector<128x16xbf16>
    %cst_12 = arith.constant dense<0.000000e+00> : vector<16x16xf32>
    %9 = tpu.matmul %6, %8, %cst_12 {dimension_numbers = #tpu.dot_dimension_numbers<[1], [0], [0], [1], [0, 0, 1, 1], [], []>} : vector<16x128xbf16>, vector<128x16xbf16>, vector<16x16xf32> -> vector<16x16xf32>
    %c2 = arith.constant 2 : index
    %c0_13 = arith.constant 0 : index
    %c0_14 = arith.constant 0 : index
    %10 = vector.load %arg1[%c2, %c0_13, %c0_14] : memref<4x16x128xbf16, #tpu.memory_space<vmem>>, vector<1x16x128xbf16>
    %11 = vector.shape_cast %10 : vector<1x16x128xbf16> to vector<16x128xbf16>
    %c0_15 = arith.constant 0 : index
    %c2_16 = arith.constant 2 : index
    %c0_17 = arith.constant 0 : index
    %c0_18 = arith.constant 0 : index
    %12 = vector.load %arg2[%c0_15, %c2_16, %c0_17, %c0_18] : memref<1x4x128x16xbf16, #tpu.memory_space<vmem>>, vector<1x1x128x16xbf16>
    %13 = vector.shape_cast %12 : vector<1x1x128x16xbf16> to vector<128x16xbf16>
    %cst_19 = arith.constant dense<0.000000e+00> : vector<16x16xf32>
    %14 = tpu.matmul %11, %13, %cst_19 {dimension_numbers = #tpu.dot_dimension_numbers<[1], [0], [0], [1], [0, 0, 1, 1], [], []>} : vector<16x128xbf16>, vector<128x16xbf16>, vector<16x16xf32> -> vector<16x16xf32>
    %c3 = arith.constant 3 : index
    %c0_20 = arith.constant 0 : index
    %c0_21 = arith.constant 0 : index
    %15 = vector.load %arg1[%c3, %c0_20, %c0_21] : memref<4x16x128xbf16, #tpu.memory_space<vmem>>, vector<1x16x128xbf16>
    %16 = vector.shape_cast %15 : vector<1x16x128xbf16> to vector<16x128xbf16>
    %c0_22 = arith.constant 0 : index
    %c3_23 = arith.constant 3 : index
    %c0_24 = arith.constant 0 : index
    %c0_25 = arith.constant 0 : index
    %17 = vector.load %arg2[%c0_22, %c3_23, %c0_24, %c0_25] : memref<1x4x128x16xbf16, #tpu.memory_space<vmem>>, vector<1x1x128x16xbf16>
    %18 = vector.shape_cast %17 : vector<1x1x128x16xbf16> to vector<128x16xbf16>
    %cst_26 = arith.constant dense<0.000000e+00> : vector<16x16xf32>
    %19 = tpu.matmul %16, %18, %cst_26 {dimension_numbers = #tpu.dot_dimension_numbers<[1], [0], [0], [1], [0, 0, 1, 1], [], []>} : vector<16x128xbf16>, vector<128x16xbf16>, vector<16x16xf32> -> vector<16x16xf32>
    %20 = tpu.concatenate %4, %9, %14, %19 in 1 : vector<16x16xf32>, vector<16x16xf32>, vector<16x16xf32>, vector<16x16xf32> -> vector<16x64xf32>
    %cst_27 = arith.constant dense<0.000000e+00> : vector<16xf32>
    %21 = vector.multi_reduction <add>, %20, %cst_27 [1] : vector<16x64xf32> to vector<16xf32>
    %22 = vector.shape_cast %21 : vector<16xf32> to vector<16x1xf32>
    %cst_28 = arith.constant 6.400000e+01 : f32
    %23 = vector.broadcast %cst_28 : f32 to vector<16x1xf32>
    %24 = arith.divf %22, %23 : vector<16x1xf32>
    %25 = vector.broadcast %24 : vector<16x1xf32> to vector<16x64xf32>
    %26 = arith.subf %20, %25 : vector<16x64xf32>
    %27 = arith.mulf %26, %26 : vector<16x64xf32>
    %cst_29 = arith.constant dense<0.000000e+00> : vector<16xf32>
    %28 = vector.multi_reduction <add>, %27, %cst_29 [1] : vector<16x64xf32> to vector<16xf32>
    %29 = vector.shape_cast %28 : vector<16xf32> to vector<16x1xf32>
    %cst_30 = arith.constant 6.400000e+01 : f32
    %30 = vector.broadcast %cst_30 : f32 to vector<16x1xf32>
    %31 = arith.divf %29, %30 : vector<16x1xf32>
    %cst_31 = arith.constant 9.99999974E-6 : f32
    %32 = vector.broadcast %cst_31 : f32 to vector<16x1xf32>
    %33 = arith.addf %31, %32 : vector<16x1xf32>
    %34 = math.rsqrt %33 : vector<16x1xf32>
    %35 = vector.broadcast %34 : vector<16x1xf32> to vector<16x64xf32>
    %36 = arith.mulf %26, %35 : vector<16x64xf32>
    %cst_32 = arith.constant 0.000000e+00 : f32
    %37 = vector.broadcast %cst_32 : f32 to vector<16x64xf32>
    %38 = arith.maximumf %36, %37 : vector<16x64xf32>
    %c0_33 = arith.constant 0 : index
    %c0_34 = arith.constant 0 : index
    %c0_35 = arith.constant 0 : index
    %39 = vector.load %arg4[%c0_33, %c0_34, %c0_35] : memref<1x16x64xf32, #tpu.memory_space<vmem>>, vector<1x16x64xf32>
    %40 = vector.shape_cast %39 : vector<1x16x64xf32> to vector<16x64xf32>
    %41 = vector.shape_cast %38 : vector<16x64xf32> to vector<1x16x64xf32>
    tpu.vector_store %arg4[%c0_33, %c0_34, %c0_35], %41 {strides = array<i32>} : memref<1x16x64xf32, #tpu.memory_space<vmem>>, vector<1x16x64xf32>,
    return
  }
  func.func @transform_0(%arg0: i32) -> (i32, i32, i32) {
    %c0_i32 = arith.constant 0 : i32
    %c0_i32_0 = arith.constant 0 : i32
    %c0_i32_1 = arith.constant 0 : i32
    %c0_i32_2 = arith.constant 0 : i32
    return %c0_i32, %c0_i32_0, %c0_i32_1 : i32, i32, i32
  }
  func.func @transform_1(%arg0: i32) -> (i32, i32, i32, i32) {
    %c0_i32 = arith.constant 0 : i32
    %c0_i32_0 = arith.constant 0 : i32
    %c0_i32_1 = arith.constant 0 : i32
    %c0_i32_2 = arith.constant 0 : i32
    return %arg0, %c0_i32, %c0_i32_0, %c0_i32_1 : i32, i32, i32, i32
  }
  func.func @transform_2(%arg0: i32) -> (i32, i32) {
    %c0_i32 = arith.constant 0 : i32
    %c0_i32_0 = arith.constant 0 : i32
    %c0_i32_1 = arith.constant 0 : i32
    return %c0_i32, %c0_i32_0 : i32, i32
  }
  func.func @transform_3(%arg0: i32) -> (i32, i32, i32) {
    %c0_i32 = arith.constant 0 : i32
    %c0_i32_0 = arith.constant 0 : i32
    %c0_i32_1 = arith.constant 0 : i32
    return %arg0, %c0_i32, %c0_i32_0 : i32, i32, i32
  }
}

module attributes {stable_mosaic.version = 11 : i64} {
  func.func @_fused_gemm_kernel(%arg0: i32, %arg1: memref<4x8x64xbf16, #tpu.memory_space<vmem>>, %arg2: memref<1x4x64x64xbf16, #tpu.memory_space<vmem>>, %arg3: memref<8x1xf32, #tpu.memory_space<vmem>>, %arg4: memref<1x8x256xf32, #tpu.memory_space<vmem>>) attributes {dimension_semantics = [#tpu.dimension_semantics<parallel>], iteration_bounds = array<i64: 2>, scalar_prefetch = 0 : i64, scratch_operands = 0 : i64, tpu.core_type = #tpu.core_type<tc>, window_params = [{pipeline_mode = #tpu.pipeline_mode<synchronous>, transform_indices = @transform_0, window_bounds = array<i64: 4, 8, 64>}, {transform_indices = @transform_1, window_bounds = array<i64: 1, 4, 64, 64>}, {pipeline_mode = #tpu.pipeline_mode<synchronous>, transform_indices = @transform_2, window_bounds = array<i64: 8, 1>}, {transform_indices = @transform_3, window_bounds = array<i64: 1, 8, 256>}]} {
    %c0 = arith.constant 0 : index
    %c0_0 = arith.constant 0 : index
    %c0_1 = arith.constant 0 : index
    %0 = vector.load %arg1[%c0, %c0_0, %c0_1] : memref<4x8x64xbf16, #tpu.memory_space<vmem>>, vector<1x8x64xbf16>
    %1 = vector.shape_cast %0 : vector<1x8x64xbf16> to vector<8x64xbf16>
    %c0_2 = arith.constant 0 : index
    %c0_3 = arith.constant 0 : index
    %c0_4 = arith.constant 0 : index
    %c0_5 = arith.constant 0 : index
    %2 = vector.load %arg2[%c0_2, %c0_3, %c0_4, %c0_5] : memref<1x4x64x64xbf16, #tpu.memory_space<vmem>>, vector<1x1x64x64xbf16>
    %3 = vector.shape_cast %2 : vector<1x1x64x64xbf16> to vector<64x64xbf16>
    %cst = arith.constant dense<0.000000e+00> : vector<8x64xf32>
    %4 = tpu.matmul %1, %3, %cst {dimension_numbers = #tpu.dot_dimension_numbers<[1], [0], [0], [1], [0, 0, 1, 1], [], []>} : vector<8x64xbf16>, vector<64x64xbf16>, vector<8x64xf32> -> vector<8x64xf32>
    %c1 = arith.constant 1 : index
    %c0_6 = arith.constant 0 : index
    %c0_7 = arith.constant 0 : index
    %5 = vector.load %arg1[%c1, %c0_6, %c0_7] : memref<4x8x64xbf16, #tpu.memory_space<vmem>>, vector<1x8x64xbf16>
    %6 = vector.shape_cast %5 : vector<1x8x64xbf16> to vector<8x64xbf16>
    %c0_8 = arith.constant 0 : index
    %c1_9 = arith.constant 1 : index
    %c0_10 = arith.constant 0 : index
    %c0_11 = arith.constant 0 : index
    %7 = vector.load %arg2[%c0_8, %c1_9, %c0_10, %c0_11] : memref<1x4x64x64xbf16, #tpu.memory_space<vmem>>, vector<1x1x64x64xbf16>
    %8 = vector.shape_cast %7 : vector<1x1x64x64xbf16> to vector<64x64xbf16>
    %cst_12 = arith.constant dense<0.000000e+00> : vector<8x64xf32>
    %9 = tpu.matmul %6, %8, %cst_12 {dimension_numbers = #tpu.dot_dimension_numbers<[1], [0], [0], [1], [0, 0, 1, 1], [], []>} : vector<8x64xbf16>, vector<64x64xbf16>, vector<8x64xf32> -> vector<8x64xf32>
    %c2 = arith.constant 2 : index
    %c0_13 = arith.constant 0 : index
    %c0_14 = arith.constant 0 : index
    %10 = vector.load %arg1[%c2, %c0_13, %c0_14] : memref<4x8x64xbf16, #tpu.memory_space<vmem>>, vector<1x8x64xbf16>
    %11 = vector.shape_cast %10 : vector<1x8x64xbf16> to vector<8x64xbf16>
    %c0_15 = arith.constant 0 : index
    %c2_16 = arith.constant 2 : index
    %c0_17 = arith.constant 0 : index
    %c0_18 = arith.constant 0 : index
    %12 = vector.load %arg2[%c0_15, %c2_16, %c0_17, %c0_18] : memref<1x4x64x64xbf16, #tpu.memory_space<vmem>>, vector<1x1x64x64xbf16>
    %13 = vector.shape_cast %12 : vector<1x1x64x64xbf16> to vector<64x64xbf16>
    %cst_19 = arith.constant dense<0.000000e+00> : vector<8x64xf32>
    %14 = tpu.matmul %11, %13, %cst_19 {dimension_numbers = #tpu.dot_dimension_numbers<[1], [0], [0], [1], [0, 0, 1, 1], [], []>} : vector<8x64xbf16>, vector<64x64xbf16>, vector<8x64xf32> -> vector<8x64xf32>
    %c3 = arith.constant 3 : index
    %c0_20 = arith.constant 0 : index
    %c0_21 = arith.constant 0 : index
    %15 = vector.load %arg1[%c3, %c0_20, %c0_21] : memref<4x8x64xbf16, #tpu.memory_space<vmem>>, vector<1x8x64xbf16>
    %16 = vector.shape_cast %15 : vector<1x8x64xbf16> to vector<8x64xbf16>
    %c0_22 = arith.constant 0 : index
    %c3_23 = arith.constant 3 : index
    %c0_24 = arith.constant 0 : index
    %c0_25 = arith.constant 0 : index
    %17 = vector.load %arg2[%c0_22, %c3_23, %c0_24, %c0_25] : memref<1x4x64x64xbf16, #tpu.memory_space<vmem>>, vector<1x1x64x64xbf16>
    %18 = vector.shape_cast %17 : vector<1x1x64x64xbf16> to vector<64x64xbf16>
    %cst_26 = arith.constant dense<0.000000e+00> : vector<8x64xf32>
    %19 = tpu.matmul %16, %18, %cst_26 {dimension_numbers = #tpu.dot_dimension_numbers<[1], [0], [0], [1], [0, 0, 1, 1], [], []>} : vector<8x64xbf16>, vector<64x64xbf16>, vector<8x64xf32> -> vector<8x64xf32>
    %20 = tpu.concatenate %4, %9, %14, %19 in 1 : vector<8x64xf32>, vector<8x64xf32>, vector<8x64xf32>, vector<8x64xf32> -> vector<8x256xf32>
    %cst_27 = arith.constant dense<0.000000e+00> : vector<8xf32>
    %21 = vector.multi_reduction <add>, %20, %cst_27 [1] : vector<8x256xf32> to vector<8xf32>
    %22 = vector.shape_cast %21 : vector<8xf32> to vector<8x1xf32>
    %cst_28 = arith.constant 2.560000e+02 : f32
    %23 = vector.broadcast %cst_28 : f32 to vector<8x1xf32>
    %24 = arith.divf %22, %23 : vector<8x1xf32>
    %25 = vector.broadcast %24 : vector<8x1xf32> to vector<8x256xf32>
    %26 = arith.subf %20, %25 : vector<8x256xf32>
    %27 = arith.mulf %26, %26 : vector<8x256xf32>
    %cst_29 = arith.constant dense<0.000000e+00> : vector<8xf32>
    %28 = vector.multi_reduction <add>, %27, %cst_29 [1] : vector<8x256xf32> to vector<8xf32>
    %29 = vector.shape_cast %28 : vector<8xf32> to vector<8x1xf32>
    %cst_30 = arith.constant 2.560000e+02 : f32
    %30 = vector.broadcast %cst_30 : f32 to vector<8x1xf32>
    %31 = arith.divf %29, %30 : vector<8x1xf32>
    %cst_31 = arith.constant 9.99999974E-6 : f32
    %32 = vector.broadcast %cst_31 : f32 to vector<8x1xf32>
    %33 = arith.addf %31, %32 : vector<8x1xf32>
    %34 = math.rsqrt %33 : vector<8x1xf32>
    %35 = vector.broadcast %34 : vector<8x1xf32> to vector<8x256xf32>
    %36 = arith.mulf %26, %35 : vector<8x256xf32>
    %cst_32 = arith.constant 0.000000e+00 : f32
    %37 = vector.broadcast %cst_32 : f32 to vector<8x256xf32>
    %38 = arith.maximumf %36, %37 : vector<8x256xf32>
    %c0_33 = arith.constant 0 : index
    %c0_34 = arith.constant 0 : index
    %c0_35 = arith.constant 0 : index
    %39 = vector.load %arg4[%c0_33, %c0_34, %c0_35] : memref<1x8x256xf32, #tpu.memory_space<vmem>>, vector<1x8x256xf32>
    %40 = vector.shape_cast %39 : vector<1x8x256xf32> to vector<8x256xf32>
    %41 = vector.shape_cast %38 : vector<8x256xf32> to vector<1x8x256xf32>
    tpu.vector_store %arg4[%c0_33, %c0_34, %c0_35], %41 {strides = array<i32>} : memref<1x8x256xf32, #tpu.memory_space<vmem>>, vector<1x8x256xf32>,
    return
  }
  func.func @transform_0(%arg0: i32) -> (i32, i32, i32) {
    %c0_i32 = arith.constant 0 : i32
    %c0_i32_0 = arith.constant 0 : i32
    %c0_i32_1 = arith.constant 0 : i32
    %c0_i32_2 = arith.constant 0 : i32
    return %c0_i32, %c0_i32_0, %c0_i32_1 : i32, i32, i32
  }
  func.func @transform_1(%arg0: i32) -> (i32, i32, i32, i32) {
    %c0_i32 = arith.constant 0 : i32
    %c0_i32_0 = arith.constant 0 : i32
    %c0_i32_1 = arith.constant 0 : i32
    %c0_i32_2 = arith.constant 0 : i32
    return %arg0, %c0_i32, %c0_i32_0, %c0_i32_1 : i32, i32, i32, i32
  }
  func.func @transform_2(%arg0: i32) -> (i32, i32) {
    %c0_i32 = arith.constant 0 : i32
    %c0_i32_0 = arith.constant 0 : i32
    %c0_i32_1 = arith.constant 0 : i32
    return %c0_i32, %c0_i32_0 : i32, i32
  }
  func.func @transform_3(%arg0: i32) -> (i32, i32, i32) {
    %c0_i32 = arith.constant 0 : i32
    %c0_i32_0 = arith.constant 0 : i32
    %c0_i32_1 = arith.constant 0 : i32
    return %arg0, %c0_i32, %c0_i32_0 : i32, i32, i32
  }
}

module attributes {stable_mosaic.version = 11 : i64} {
  func.func @_fused_gemm_kernel(%arg0: i32, %arg1: memref<1x3x392xbf16, #tpu.memory_space<vmem>>, %arg2: memref<1x1x392x256xbf16, #tpu.memory_space<vmem>>, %arg3: memref<3x1xf32, #tpu.memory_space<vmem>>, %arg4: memref<1x3x256xf32, #tpu.memory_space<vmem>>) attributes {dimension_semantics = [#tpu.dimension_semantics<parallel>], iteration_bounds = array<i64: 2>, scalar_prefetch = 0 : i64, scratch_operands = 0 : i64, tpu.core_type = #tpu.core_type<tc>, window_params = [{pipeline_mode = #tpu.pipeline_mode<synchronous>, transform_indices = @transform_0, window_bounds = array<i64: 1, 3, 392>}, {transform_indices = @transform_1, window_bounds = array<i64: 1, 1, 392, 256>}, {pipeline_mode = #tpu.pipeline_mode<synchronous>, transform_indices = @transform_2, window_bounds = array<i64: 3, 1>}, {transform_indices = @transform_3, window_bounds = array<i64: 1, 3, 256>}]} {
    %c0 = arith.constant 0 : index
    %c0_0 = arith.constant 0 : index
    %c0_1 = arith.constant 0 : index
    %0 = vector.load %arg1[%c0, %c0_0, %c0_1] : memref<1x3x392xbf16, #tpu.memory_space<vmem>>, vector<1x3x392xbf16>
    %1 = vector.shape_cast %0 : vector<1x3x392xbf16> to vector<3x392xbf16>
    %c0_2 = arith.constant 0 : index
    %c0_3 = arith.constant 0 : index
    %c0_4 = arith.constant 0 : index
    %c0_5 = arith.constant 0 : index
    %2 = vector.load %arg2[%c0_2, %c0_3, %c0_4, %c0_5] : memref<1x1x392x256xbf16, #tpu.memory_space<vmem>>, vector<1x1x392x256xbf16>
    %3 = vector.shape_cast %2 : vector<1x1x392x256xbf16> to vector<392x256xbf16>
    %cst = arith.constant dense<0.000000e+00> : vector<3x256xf32>
    %4 = tpu.matmul %1, %3, %cst {dimension_numbers = #tpu.dot_dimension_numbers<[1], [0], [0], [1], [0, 0, 1, 1], [], []>} : vector<3x392xbf16>, vector<392x256xbf16>, vector<3x256xf32> -> vector<3x256xf32>
    %c0_6 = arith.constant 0 : index
    %c0_7 = arith.constant 0 : index
    %5 = vector.load %arg3[%c0_6, %c0_7] : memref<3x1xf32, #tpu.memory_space<vmem>>, vector<3x1xf32>
    %6 = vector.broadcast %5 : vector<3x1xf32> to vector<3x256xf32>
    %7 = arith.addf %4, %6 : vector<3x256xf32>
    %8 = math.tanh %7 : vector<3x256xf32>
    %cst_8 = arith.constant 1.000000e+00 : f32
    %9 = vector.broadcast %cst_8 : f32 to vector<3x256xf32>
    %10 = arith.addf %8, %9 : vector<3x256xf32>
    %cst_9 = arith.constant 5.000000e-01 : f32
    %11 = vector.broadcast %cst_9 : f32 to vector<3x256xf32>
    %12 = arith.mulf %10, %11 : vector<3x256xf32>
    %c0_10 = arith.constant 0 : index
    %c0_11 = arith.constant 0 : index
    %c0_12 = arith.constant 0 : index
    %13 = vector.load %arg4[%c0_10, %c0_11, %c0_12] : memref<1x3x256xf32, #tpu.memory_space<vmem>>, vector<1x3x256xf32>
    %14 = vector.shape_cast %13 : vector<1x3x256xf32> to vector<3x256xf32>
    %15 = vector.shape_cast %12 : vector<3x256xf32> to vector<1x3x256xf32>
    tpu.vector_store %arg4[%c0_10, %c0_11, %c0_12], %15 {strides = array<i32>} : memref<1x3x256xf32, #tpu.memory_space<vmem>>, vector<1x3x256xf32>,
    return
  }
  func.func @transform_0(%arg0: i32) -> (i32, i32, i32) {
    %c0_i32 = arith.constant 0 : i32
    %c0_i32_0 = arith.constant 0 : i32
    %c0_i32_1 = arith.constant 0 : i32
    %c0_i32_2 = arith.constant 0 : i32
    return %c0_i32, %c0_i32_0, %c0_i32_1 : i32, i32, i32
  }
  func.func @transform_1(%arg0: i32) -> (i32, i32, i32, i32) {
    %c0_i32 = arith.constant 0 : i32
    %c0_i32_0 = arith.constant 0 : i32
    %c0_i32_1 = arith.constant 0 : i32
    %c0_i32_2 = arith.constant 0 : i32
    return %arg0, %c0_i32, %c0_i32_0, %c0_i32_1 : i32, i32, i32, i32
  }
  func.func @transform_2(%arg0: i32) -> (i32, i32) {
    %c0_i32 = arith.constant 0 : i32
    %c0_i32_0 = arith.constant 0 : i32
    %c0_i32_1 = arith.constant 0 : i32
    return %c0_i32, %c0_i32_0 : i32, i32
  }
  func.func @transform_3(%arg0: i32) -> (i32, i32, i32) {
    %c0_i32 = arith.constant 0 : i32
    %c0_i32_0 = arith.constant 0 : i32
    %c0_i32_1 = arith.constant 0 : i32
    return %arg0, %c0_i32, %c0_i32_0 : i32, i32, i32
  }
}

</mosaic_0001>

<llo_original>
// kernel: _lambda_.10
$region0: #{_lambda_.10}
  #allocation0 [shape = 'u32[]', space=smem, size = 0x4, offset = 0x4, fixed_abs, tag = 'smem constant byte address 0x4 - core index']
  #allocation1 [shape = 'u32[144,128]{1,0:T(1,128)}', space=vmem, size = 0x12000, scoped, tag = 'internal scratch']
  %s0 = inlined_call_operand.hbm [shape: bf16[1,8,200], index: 0, kind: input, shape index: {}]
  %s1 = inlined_call_operand.hbm [shape: bf16[2,1,200,256], index: 1, kind: input, shape index: {}]
  %s2 = inlined_call_operand.hbm [shape: f32[8,1], index: 2, kind: input, shape index: {}]
  %s3 = inlined_call_operand.hbm [shape: f32[2,8,256], index: 3, kind: output, shape index: {}]
  %s4 = sld [smem:[#allocation0]]
  $region57: #{_lambda_.10} parent=0
    _
  %s6 = ssub.s32 1, %s4
  %s7 = scalar_select 0, %s6, %s4
  $region1: #{_lambda_.10} parent=0
    #allocation2 [shape = 'u8[4096]{0}', space=vmem, size = 0x1000, scoped, tag = 'input window, operand 0, single buffered']
    #allocation3 [shape = 's32[2]{0}', space=sflag, size = 0x8, scoped, tag = 'scoped memory for _lambda_.10']
    #allocation4 [shape = 's32[2]{0}', space=sflag, size = 0x8, scoped, tag = 'scoped memory for _lambda_.10']
    #allocation5 [shape = 'u8[204800]{0}', space=vmem, size = 0x32000, scoped, tag = 'input window, operand 1']
    #allocation6 [shape = 's32[2]{0}', space=sflag, size = 0x8, scoped, tag = 'scoped memory for _lambda_.10']
    #allocation7 [shape = 'u8[4096]{0}', space=vmem, size = 0x1000, scoped, tag = 'input window, operand 2, single buffered']
    #allocation8 [shape = 'u8[16384]{0}', space=vmem, size = 0x4000, scoped, tag = 'output window, operand 0']
    %8 = vsyncpa [#allocation3], 0
    %9 = vsyncpa [#allocation6], 0
    %s10 = scalar_lea.sflag [#allocation6], 1
    %11 = vsyncpa %s10, 0
    %12 = vsyncpa [#allocation4], 0
    %s13 = scalar_lea.sflag [#allocation4], 1
    %14 = vsyncpa %s13, 0
    loop: start=0, step=1, limit=4
    $region2: #{_lambda_.10} parent=1 // loop_pre_header
      _
    $region3: #{_lambda_.10} parent=1 // loop_header
      %s16 = sphi 0, %s20
      %p17 = scmp.ge.s32.totalorder %s16, 4
      %s24 = sphi 0, %s24
      %s26 = sphi 0, %s24
      %s27 = sphi 0, %s26
      %s41 = sphi 0, %s27
      %s47 = sphi 0, %s49
      %s50 = sphi 0, %s47
      %s51 = sphi 0, %s50
      %s67 = sphi 0, %s51
      %s71 = sphi 0, %s71
      %s73 = sphi 0, %s71
      %s74 = sphi 0, %s73
      %s88 = sphi 0, %s74
      %s94 = sphi 0, %s96
      %s97 = sphi 0, %s94
      %s98 = sphi 0, %s97
      %s114 = sphi 0, %s98
    $region4: #{_lambda_.10} parent=1 // loop_header_branch
      %19 = sbr.rel (%p17) target = $region8
    $region5: #{_lambda_.10} parent=1 // loop_body
      %s21 = ssub.s32 %s16, 1
      %s22 = ssub.s32 %s16, 2
      %s23 = sadd.s32 %s16, 1
      %s25 = sadd.s32 %s24, 1
      %p28 = scmp.eq.s32.totalorder %s16, 1
      %p29 = scmp.ne.s32.totalorder %s24, %s26
      %p30 = scmp.eq.s32.totalorder %s16, 0
      %p31 = por %p29, %p30
      %p32 = scmp.ne.s32.totalorder %s24, %s26
      %p33 = scmp.eq.s32.totalorder %s21, 1
      %p34 = por %p32, %p33
      %p35 = scmp.ne.s32.totalorder %s26, %s27
      %p36 = scmp.eq.s32.totalorder %s21, 0
      %p37 = por %p35, %p36
      %p38 = scmp.ne.s32.totalorder %s26, %s27
      %p39 = scmp.eq.s32.totalorder %s22, 1
      %p40 = por %p38, %p39
      %p42 = scmp.ne.s32.totalorder %s27, %s41
      %p43 = scmp.eq.s32.totalorder %s22, 0
      %p44 = por %p42, %p43
      %s45 = ssub.s32 %s16, %s23
      %p46 = scmp.eq.s32.totalorder %s45, 0
      %s48 = sadd.s32 %s47, 1
      %s49 = scalar_select %p46, %s47, %s48
      %p52 = pneg %p46
      %p53 = scmp.eq.s32.totalorder %s16, 1
      %p54 = por %p52, %p53
      %p55 = scmp.ne.s32.totalorder %s47, %s50
      %p56 = scmp.eq.s32.totalorder %s16, 0
      %p57 = por %p55, %p56
      %p58 = scmp.ne.s32.totalorder %s47, %s50
      %p59 = scmp.eq.s32.totalorder %s21, 1
      %p60 = por %p58, %p59
      %p61 = scmp.ne.s32.totalorder %s50, %s51
      %p62 = scmp.eq.s32.totalorder %s21, 0
      %p63 = por %p61, %p62
      %p64 = scmp.ne.s32.totalorder %s50, %s51
      %p65 = scmp.eq.s32.totalorder %s22, 1
      %p66 = por %p64, %p65
      %p68 = scmp.ne.s32.totalorder %s51, %s67
      %p69 = scmp.eq.s32.totalorder %s22, 0
      %p70 = por %p68, %p69
      %s72 = sadd.s32 %s71, 1
      %p75 = scmp.eq.s32.totalorder %s16, 1
      %p76 = scmp.ne.s32.totalorder %s71, %s73
      %p77 = scmp.eq.s32.totalorder %s16, 0
      %p78 = por %p76, %p77
      %p79 = scmp.ne.s32.totalorder %s71, %s73
      %p80 = scmp.eq.s32.totalorder %s21, 1
      %p81 = por %p79, %p80
      %p82 = scmp.ne.s32.totalorder %s73, %s74
      %p83 = scmp.eq.s32.totalorder %s21, 0
      %p84 = por %p82, %p83
      %p85 = scmp.ne.s32.totalorder %s73, %s74
      %p86 = scmp.eq.s32.totalorder %s22, 1
      %p87 = por %p85, %p86
      %p89 = scmp.ne.s32.totalorder %s74, %s88
      %p90 = scmp.eq.s32.totalorder %s22, 0
      %p91 = por %p89, %p90
      %s92 = ssub.s32 %s16, %s23
      %p93 = scmp.eq.s32.totalorder %s92, 0
      %s95 = sadd.s32 %s94, 1
      %s96 = scalar_select %p93, %s94, %s95
      %p99 = pneg %p93
      %p100 = scmp.eq.s32.totalorder %s16, 1
      %p101 = por %p99, %p100
      %p102 = scmp.ne.s32.totalorder %s94, %s97
      %p103 = scmp.eq.s32.totalorder %s16, 0
      %p104 = por %p102, %p103
      %p105 = scmp.ne.s32.totalorder %s94, %s97
      %p106 = scmp.eq.s32.totalorder %s21, 1
      %p107 = por %p105, %p106
      %p108 = scmp.ne.s32.totalorder %s97, %s98
      %p109 = scmp.eq.s32.totalorder %s21, 0
      %p110 = por %p108, %p109
      %p111 = scmp.ne.s32.totalorder %s97, %s98
      %p112 = scmp.eq.s32.totalorder %s22, 1
      %p113 = por %p111, %p112
      %p115 = scmp.ne.s32.totalorder %s98, %s114
      %p116 = scmp.eq.s32.totalorder %s22, 0
      %p117 = por %p115, %p116
      %p118 = scmp.le.s32.totalorder 1, %s16
      %p119 = scmp.lt.s32.totalorder %s16, 3
      %p120 = pnand %p118, %p119
      %p121 = pneg %p120
      // Predicated region
      $region9: #{_lambda_.10} parent=5 // pred_check
        _
      $region10: #{_lambda_.10} parent=5 // pred_check_branch
        %123 = sbr.rel (%p120) target = $region12
      $region11: #{_lambda_.10} parent=5 // pred_region
        %s124 = ssub.s32 %s16, 1
        // Predicated region
        $region13: #{_lambda_.10} parent=11 // pred_check
          %p125 = pneg %p37
        $region14: #{_lambda_.10} parent=11 // pred_check_branch
          %127 = sbr.rel (%p125) target = $region16
        $region15: #{_lambda_.10} parent=11 // pred_region
          %s129 = ssub.s32 128, 128
          %130 = vsyncadd [#allocation3], %s129
          %s132 = sshll.u32 [#allocation2], 4
          %s133 = int_to_ptr.vmem [resolvable:$true] %s132
          %135 = dma.hbm_to_vmem [thread:$0]  %s0, 128, %s133, [#allocation3]
        $region16: #{_lambda_.10} parent=11 // pred_fallthru
          _
        // Predicated region
        $region17: #{_lambda_.10} parent=11 // pred_check
          %p136 = pneg %p84
        $region18: #{_lambda_.10} parent=11 // pred_check_branch
          %138 = sbr.rel (%p136) target = $region20
        $region19: #{_lambda_.10} parent=11 // pred_region
          %s140 = ssub.s32 128, 128
          %141 = vsyncadd [#allocation6], %s140
          %s143 = sshll.u32 [#allocation7], 4
          %s144 = int_to_ptr.vmem [resolvable:$true] %s143
          %146 = dma.hbm_to_vmem [thread:$0]  %s2, 128, %s144, [#allocation6]
        $region20: #{_lambda_.10} parent=11 // pred_fallthru
          _
      $region12: #{_lambda_.10} parent=5 // pred_fallthru
        _
      %p147 = scmp.lt.s32.totalorder %s16, 2
      // Predicated region
      $region21: #{_lambda_.10} parent=5 // pred_check
        %p148 = pneg %p147
      $region22: #{_lambda_.10} parent=5 // pred_check_branch
        %150 = sbr.rel (%p148) target = $region24
      $region23: #{_lambda_.10} parent=5 // pred_region
        // Predicated region
        $region25: #{_lambda_.10} parent=23 // pred_check
          %p151 = pneg %p57
        $region26: #{_lambda_.10} parent=23 // pred_check_branch
          %153 = sbr.rel (%p151) target = $region28
        $region27: #{_lambda_.10} parent=23 // pred_region
          %s154 = sand.u32 %s16, 1
          %s155 = scalar_lea.sflag [#allocation6], %s154
          %s156 = sand.u32 %s47, 1
          %s157 = smul.addr %s156, 200
          %s158 = scalar_lea.vmem [#allocation5], %s157
          %s160 = ssub.s32 3200, 3200
          %161 = vsyncadd %s155, %s160
          %s162 = smul.addr %s16, 50
          %s163 = smul.addr %s162, 64
          %s164 = scalar_lea.hbm %s1, %s163
          %s165 = sshll.u32 %s158, 4
          %s166 = int_to_ptr.vmem [resolvable:$true] %s165
          %171 = dma.hbm_to_vmem [thread:$0]  %s164, 3200, %s166, %s155, 128, 128, 8
        $region28: #{_lambda_.10} parent=23 // pred_fallthru
          _
      $region24: #{_lambda_.10} parent=5 // pred_fallthru
        _
      %p172 = scmp.le.s32.totalorder 1, %s16
      %p173 = scmp.lt.s32.totalorder %s16, 3
      %p174 = pnand %p172, %p173
      %p175 = pneg %p174
      // Predicated region
      $region29: #{_lambda_.10} parent=5 // pred_check
        _
      $region30: #{_lambda_.10} parent=5 // pred_check_branch
        %177 = sbr.rel (%p174) target = $region32
      $region31: #{_lambda_.10} parent=5 // pred_region
        %s178 = ssub.s32 %s16, 1
        // Predicated region
        $region33: #{_lambda_.10} parent=31 // pred_check
          %p179 = pneg %p37
        $region34: #{_lambda_.10} parent=31 // pred_check_branch
          %181 = sbr.rel (%p179) target = $region36
        $region35: #{_lambda_.10} parent=31 // pred_region
          %182 = dma.done [#allocation3], 128
        $region36: #{_lambda_.10} parent=31 // pred_fallthru
          _
        %s183 = sand.u32 %s21, 1
        %s184 = scalar_lea.sflag [#allocation6], %s183
        %s185 = sand.u32 %s50, 1
        %s186 = smul.addr %s185, 200
        %s187 = scalar_lea.vmem [#allocation5], %s186
        // Predicated region
        $region37: #{_lambda_.10} parent=31 // pred_check
          %p188 = pneg %p63
        $region38: #{_lambda_.10} parent=31 // pred_check_branch
          %190 = sbr.rel (%p188) target = $region40
        $region39: #{_lambda_.10} parent=31 // pred_region
          %191 = dma.done %s184, 3200
        $region40: #{_lambda_.10} parent=31 // pred_fallthru
          _
        // Predicated region
        $region41: #{_lambda_.10} parent=31 // pred_check
          %p192 = pneg %p84
        $region42: #{_lambda_.10} parent=31 // pred_check_branch
          %194 = sbr.rel (%p192) target = $region44
        $region43: #{_lambda_.10} parent=31 // pred_region
          %195 = dma.done [#allocation6], 128
        $region44: #{_lambda_.10} parent=31 // pred_fallthru
          _
        %p196 = pneg %p37
        %p197 = pneg %p34
        %s198 = sand.u32 %s21, 1
        %s199 = scalar_lea.sflag [#allocation6], %s198
        %s200 = sand.u32 %s50, 1
        %s201 = smul.addr %s200, 200
        %s202 = scalar_lea.vmem [#allocation5], %s201
        %p203 = pneg %p63
        %p204 = pneg %p60
        %p205 = pneg %p84
        %p206 = pneg %p81
        %p207 = pneg %p110
        %p208 = pneg %p107
        %s209 = sand.u32 %s97, 1
        %s210 = scalar_lea.sflag [#allocation4], %s209
        %s211 = sand.u32 %s97, 1
        %s212 = smul.addr %s211, 16
        %s213 = scalar_lea.vmem [#allocation8], %s212
        %v215 = vld [vmem:[#allocation2] sm:$0xff]
        %v216 = vld [vmem:[%s187] sm:$0xff]
        %v217 = vld [vmem:[%s187 + $0x8] sm:$0xff]
        %v218 = vld [vmem:[%s187 + $0x10] sm:$0xff]
        %v219 = vld [vmem:[%s187 + $0x18] sm:$0xff]
        %v220 = vld [vmem:[%s187 + $0x20] sm:$0xff]
        %v221 = vld [vmem:[%s187 + $0x28] sm:$0xff]
        %v222 = vld [vmem:[%s187 + $0x30] sm:$0xff]
        %v223 = vld [vmem:[%s187 + $0x38] sm:$0xff]
        %v224 = vld [vmem:[%s187 + $0x40] sm:$0xff]
        %v225 = vld [vmem:[%s187 + $0x48] sm:$0xff]
        %v226 = vld [vmem:[%s187 + $0x50] sm:$0xff]
        %v227 = vld [vmem:[%s187 + $0x58] sm:$0xff]
        %v228 = vld [vmem:[%s187 + $0x60] sm:$0xff]
        %v229 = vld [vmem:[%s187 + $0x68] sm:$0xff]
        %v230 = vld [vmem:[%s187 + $0x70] sm:$0xff]
        %v231 = vld [vmem:[%s187 + $0x78] sm:$0xff]
        %v232 = vld [vmem:[%s187 + $0x80] sm:$0xff]
        %v233 = vld [vmem:[%s187 + $0x88] sm:$0xff]
        %v234 = vld [vmem:[%s187 + $0x90] sm:$0xff]
        %v235 = vld [vmem:[%s187 + $0x98] sm:$0xff]
        %v236 = vld [vmem:[%s187 + $0xa0] sm:$0xff]
        %v237 = vld [vmem:[%s187 + $0xa8] sm:$0xff]
        %v238 = vld [vmem:[%s187 + $0xb0] sm:$0xff]
        %v239 = vld [vmem:[%s187 + $0xb8] sm:$0xff]
        %v240 = vld [vmem:[%s187 + $0xc0] sm:$0xff]
        %v242 = vunpack.c.l.b16 %v215
        %v243 = vunpack.c.h.b16 %v215
        %v244 = vpack.c.b16 %v242, %v242
        %v245 = vpack.c.b16 %v243, %v243
        %v272 = vunpack.c.l.b16 %v216
        %v273 = vunpack.c.h.b16 %v216
        %v274 = vunpack.c.l.b16 %v217
        %v275 = vunpack.c.h.b16 %v217
        %v276 = vunpack.c.l.b16 %v218
        %v277 = vunpack.c.h.b16 %v218
        %v278 = vunpack.c.l.b16 %v219
        %v279 = vunpack.c.h.b16 %v219
        %v280 = vunpack.c.l.b16 %v220
        %v281 = vunpack.c.h.b16 %v220
        %v282 = vunpack.c.l.b16 %v221
        %v283 = vunpack.c.h.b16 %v221
        %v284 = vunpack.c.l.b16 %v222
        %v285 = vunpack.c.h.b16 %v222
        %v286 = vunpack.c.l.b16 %v223
        %v287 = vunpack.c.h.b16 %v223
        %v288 = vunpack.c.l.b16 %v224
        %v289 = vunpack.c.h.b16 %v224
        %v290 = vunpack.c.l.b16 %v225
        %v291 = vunpack.c.h.b16 %v225
        %v292 = vunpack.c.l.b16 %v226
        %v293 = vunpack.c.h.b16 %v226
        %v294 = vunpack.c.l.b16 %v227
        %v295 = vunpack.c.h.b16 %v227
        %v296 = vunpack.c.l.b16 %v228
        %v297 = vunpack.c.h.b16 %v228
        %v298 = vunpack.c.l.b16 %v229
        %v299 = vunpack.c.h.b16 %v229
        %v300 = vunpack.c.l.b16 %v230
        %v301 = vunpack.c.h.b16 %v230
        %v302 = vunpack.c.l.b16 %v231
        %v303 = vunpack.c.h.b16 %v231
        %v304 = vunpack.c.l.b16 %v232
        %v305 = vunpack.c.h.b16 %v232
        %v306 = vunpack.c.l.b16 %v233
        %v307 = vunpack.c.h.b16 %v233
        %v308 = vunpack.c.l.b16 %v234
        %v309 = vunpack.c.h.b16 %v234
        %v310 = vunpack.c.l.b16 %v235
        %v311 = vunpack.c.h.b16 %v235
        %v312 = vunpack.c.l.b16 %v236
        %v313 = vunpack.c.h.b16 %v236
        %v314 = vunpack.c.l.b16 %v237
        %v315 = vunpack.c.h.b16 %v237
        %v316 = vunpack.c.l.b16 %v238
        %v317 = vunpack.c.h.b16 %v238
        %v318 = vunpack.c.l.b16 %v239
        %v319 = vunpack.c.h.b16 %v239
        %v320 = vunpack.c.l.b16 %v240
        %v321 = vunpack.c.h.b16 %v240
        %v322 = vpack.c.b16 %v274, %v272
        %v323 = vpack.c.b16 %v275, %v273
        %v324 = vpack.c.b16 %v278, %v276
        %v325 = vpack.c.b16 %v279, %v277
        %v326 = vpack.c.b16 %v282, %v280
        %v327 = vpack.c.b16 %v283, %v281
        %v328 = vpack.c.b16 %v286, %v284
        %v329 = vpack.c.b16 %v287, %v285
        %v330 = vpack.c.b16 %v290, %v288
        %v331 = vpack.c.b16 %v291, %v289
        %v332 = vpack.c.b16 %v294, %v292
        %v333 = vpack.c.b16 %v295, %v293
        %v334 = vpack.c.b16 %v298, %v296
        %v335 = vpack.c.b16 %v299, %v297
        %v336 = vpack.c.b16 %v302, %v300
        %v337 = vpack.c.b16 %v303, %v301
        %v338 = vpack.c.b16 %v306, %v304
        %v339 = vpack.c.b16 %v307, %v305
        %v340 = vpack.c.b16 %v310, %v308
        %v341 = vpack.c.b16 %v311, %v309
        %v342 = vpack.c.b16 %v314, %v312
        %v343 = vpack.c.b16 %v315, %v313
        %v344 = vpack.c.b16 %v318, %v316
        %v345 = vpack.c.b16 %v319, %v317
        %v346 = vpack.c.b16 %v320, %v320
        %v347 = vpack.c.b16 %v321, %v321
        %vm372 = vcmask 588800
        %v374 = vsel %vm372, %v245, 0
        %vm376 = vcmask 1043456
        %v378 = vsel %vm376, %v346, 0
        %v381 = vsel %vm376, %v347, 0
        %383 = vmatprep.subr.bf16.mxu0 %v323
        %384 = vmatpush1.bf16.msra.mxu0 %v322
        %385 = vmatprep.subr.bf16.mxu0 %v325
        %386 = vmatpush1.bf16.msra.mxu0 %v324
        %387 = vmatprep.subr.bf16.mxu0 %v327
        %388 = vmatpush1.bf16.msra.mxu0 %v326
        %389 = vmatprep.subr.bf16.mxu0 %v329
        %390 = vmatpush1.bf16.msra.mxu0 %v328
        %391 = vmatprep.subr.bf16.mxu0 %v331
        %392 = vmatpush1.bf16.msra.mxu0 %v330
        %393 = vmatprep.subr.bf16.mxu0 %v333
        %394 = vmatpush1.bf16.msra.mxu0 %v332
        %395 = vmatprep.subr.bf16.mxu0 %v335
        %396 = vmatpush1.bf16.msra.mxu0 %v334
        %397 = vmatprep.subr.bf16.mxu0 %v337
        %398 = vmatpush1.bf16.msra.mxu0 %v336
        %399 = vmatprep.subr.bf16.mxu0 %v339
        %400 = vmatpush1.bf16.msra.mxu0 %v338
        %401 = vmatprep.subr.bf16.mxu0 %v341
        %402 = vmatpush1.bf16.msra.mxu0 %v340
        %403 = vmatprep.subr.bf16.mxu0 %v343
        %404 = vmatpush1.bf16.msra.mxu0 %v342
        %405 = vmatprep.subr.bf16.mxu0 %v345
        %406 = vmatpush1.bf16.msra.mxu0 %v344
        %407 = vmatprep.subr.bf16.mxu0 %v381
        %408 = vmatpush1.bf16.msra.mxu0 %v378
        %409 = vmatprep.subr.bf16.mxu0 0
        %410 = vmatpush1.bf16.msra.mxu0 0
        %411 = vmatprep.subr.bf16.mxu0 0
        %412 = vmatpush1.bf16.msra.mxu0 0
        %413 = vmatprep.subr.bf16.mxu0 0
        %414 = vmatpush1.bf16.msra.mxu0 0
        %415 = vmatprep.mubr.bf16.mxu0 %v374
        %416 = vmatmul.mubr.bf16.gmra.mrb[0].mxu0 %v244
        %v417 = vpop.f32.mrb[0].mxu0
        %v418 = vadd.f32 0.0, %v417
        %v419 = vpop.f32.mrb[0].mxu0
        %v420 = vadd.f32 0.0, %v419
        %v421 = vpop.f32.mrb[0].mxu0
        %v422 = vpop.f32.mrb[0].mxu0
        %423 = vdwg.mxu0
        %v424 = vadd.f32 %v418, %v420
        %425 = vadd.xlane.f32.xlu0 %v424
        %v426 = vpop.xlane.xlu0 %425
        %v427 = vrcp.pop 256.0
        %v428 = vmul.f32 %v426, %v427
        %v429 = vsub.f32 %v418, %v428
        %v430 = vsub.f32 %v420, %v428
        %v431 = vmul.f32 %v429, %v429
        %v432 = vmul.f32 %v430, %v430
        %v433 = vadd.f32 %v431, %v432
        %434 = vadd.xlane.f32.xlu0 %v433
        %v435 = vpop.xlane.xlu0 %434
        %v436 = vmul.f32 %v435, %v427
        %v437 = vadd.f32 %v436, 1e-05
        %v438 = vrsqrt.pop %v437
        %v439 = vmul.f32 %v429, %v438
        %v440 = vmul.f32 %v430, %v438
        %v441 = vmax.f32 %v439, 0.0
        %v442 = vmax.f32 %v440, 0.0
        %443 = vst [vmem:[%s213] sm:$0xff] %v441
        %444 = vst [vmem:[%s213 + $0x8] sm:$0xff] %v442
        %s445 = sand.u32 %s97, 1
        %s446 = scalar_lea.sflag [#allocation4], %s445
        %s447 = sand.u32 %s97, 1
        %s448 = smul.addr %s447, 16
        %s449 = scalar_lea.vmem [#allocation8], %s448
        // Predicated region
        $region45: #{_lambda_.10} parent=31 // pred_check
          %p450 = pneg %p107
        $region46: #{_lambda_.10} parent=31 // pred_check_branch
          %452 = sbr.rel (%p450) target = $region48
        $region47: #{_lambda_.10} parent=31 // pred_region
          %s454 = ssub.s32 256, 256
          %455 = vsyncadd %s446, %s454
          %s456 = smul.addr %s21, 2
          %s457 = smul.addr %s456, 128
          %s458 = scalar_lea.hbm %s3, %s457
          %s460 = sshll.u32 %s449, 4
          %s461 = int_to_ptr.vmem [resolvable:$true] %s460
          %463 = dma.vmem_to_hbm [thread:$0]  %s461, 256, %s458, %s446
        $region48: #{_lambda_.10} parent=31 // pred_fallthru
          _
      $region32: #{_lambda_.10} parent=5 // pred_fallthru
        _
      %p464 = scmp.le.s32.totalorder 2, %s16
      // Predicated region
      $region49: #{_lambda_.10} parent=5 // pred_check
        %p465 = pneg %p464
      $region50: #{_lambda_.10} parent=5 // pred_check_branch
        %467 = sbr.rel (%p465) target = $region52
      $region51: #{_lambda_.10} parent=5 // pred_region
        %s468 = ssub.s32 %s16, 2
        // Predicated region
        $region53: #{_lambda_.10} parent=51 // pred_check
          %p469 = pneg %p113
        $region54: #{_lambda_.10} parent=51 // pred_check_branch
          %471 = sbr.rel (%p469) target = $region56
        $region55: #{_lambda_.10} parent=51 // pred_region
          %s472 = sand.u32 %s98, 1
          %s473 = scalar_lea.sflag [#allocation4], %s472
          %s474 = sand.u32 %s98, 1
          %s475 = smul.addr %s474, 16
          %s476 = scalar_lea.vmem [#allocation8], %s475
          %477 = dma.done %s473, 256
        $region56: #{_lambda_.10} parent=51 // pred_fallthru
          _
      $region52: #{_lambda_.10} parent=5 // pred_fallthru
        _
    $region6: #{_lambda_.10} parent=1 // loop_footer
      %s20 = sadd.s32 1, %s16
    $region7: #{_lambda_.10} parent=1 // loop_footer_branch
      %15 = sbr.rel target = $region3
    $region8: #{_lambda_.10} parent=1 // loop_exit
      _
    %478 = vsyncpa [#allocation3], 1
    %s479 = scalar_lea.sflag [#allocation3], 1
    %480 = vsyncpa %s479, 1
    %481 = vsyncpa [#allocation6], 1
    %s482 = scalar_lea.sflag [#allocation6], 1
    %483 = vsyncpa %s482, 1
    %484 = vsyncpa [#allocation4], 1
    %s485 = scalar_lea.sflag [#allocation4], 1
    %486 = vsyncpa %s485, 1

// kernel: _lambda_.11
$region0: #{_lambda_.11}
  #allocation0 [shape = 'u32[]', space=smem, size = 0x4, offset = 0x4, fixed_abs, tag = 'smem constant byte address 0x4 - core index']
  #allocation1 [shape = 'u32[144,128]{1,0:T(1,128)}', space=vmem, size = 0x12000, scoped, tag = 'internal scratch']
  %s0 = inlined_call_operand.hbm [shape: bf16[1,16,128], index: 0, kind: input, shape index: {}]
  %s1 = inlined_call_operand.hbm [shape: bf16[2,1,128,64], index: 1, kind: input, shape index: {}]
  %s2 = inlined_call_operand.hbm [shape: f32[16,1], index: 2, kind: input, shape index: {}]
  %s3 = inlined_call_operand.hbm [shape: f32[2,16,64], index: 3, kind: output, shape index: {}]
  %s4 = sld [smem:[#allocation0]]
  $region57: #{_lambda_.11} parent=0
    _
  %s6 = ssub.s32 1, %s4
  %s7 = scalar_select 0, %s6, %s4
  $region1: #{_lambda_.11} parent=0
    #allocation2 [shape = 'u8[4096]{0}', space=vmem, size = 0x1000, scoped, tag = 'input window, operand 0, single buffered']
    #allocation3 [shape = 's32[2]{0}', space=sflag, size = 0x8, scoped, tag = 'scoped memory for _lambda_.11']
    #allocation4 [shape = 's32[2]{0}', space=sflag, size = 0x8, scoped, tag = 'scoped memory for _lambda_.11']
    #allocation5 [shape = 'u8[65536]{0}', space=vmem, size = 0x10000, scoped, tag = 'input window, operand 1']
    #allocation6 [shape = 's32[2]{0}', space=sflag, size = 0x8, scoped, tag = 'scoped memory for _lambda_.11']
    #allocation7 [shape = 'u8[8192]{0}', space=vmem, size = 0x2000, scoped, tag = 'input window, operand 2, single buffered']
    #allocation8 [shape = 'u8[16384]{0}', space=vmem, size = 0x4000, scoped, tag = 'output window, operand 0']
    %8 = vsyncpa [#allocation3], 0
    %9 = vsyncpa [#allocation6], 0
    %s10 = scalar_lea.sflag [#allocation6], 1
    %11 = vsyncpa %s10, 0
    %12 = vsyncpa [#allocation4], 0
    %s13 = scalar_lea.sflag [#allocation4], 1
    %14 = vsyncpa %s13, 0
    loop: start=0, step=1, limit=4
    $region2: #{_lambda_.11} parent=1 // loop_pre_header
      _
    $region3: #{_lambda_.11} parent=1 // loop_header
      %s16 = sphi 0, %s20
      %p17 = scmp.ge.s32.totalorder %s16, 4
      %s24 = sphi 0, %s24
      %s26 = sphi 0, %s24
      %s27 = sphi 0, %s26
      %s41 = sphi 0, %s27
      %s47 = sphi 0, %s49
      %s50 = sphi 0, %s47
      %s51 = sphi 0, %s50
      %s67 = sphi 0, %s51
      %s71 = sphi 0, %s71
      %s73 = sphi 0, %s71
      %s74 = sphi 0, %s73
      %s88 = sphi 0, %s74
      %s94 = sphi 0, %s96
      %s97 = sphi 0, %s94
      %s98 = sphi 0, %s97
      %s114 = sphi 0, %s98
    $region4: #{_lambda_.11} parent=1 // loop_header_branch
      %19 = sbr.rel (%p17) target = $region8
    $region5: #{_lambda_.11} parent=1 // loop_body
      %s21 = ssub.s32 %s16, 1
      %s22 = ssub.s32 %s16, 2
      %s23 = sadd.s32 %s16, 1
      %s25 = sadd.s32 %s24, 1
      %p28 = scmp.eq.s32.totalorder %s16, 1
      %p29 = scmp.ne.s32.totalorder %s24, %s26
      %p30 = scmp.eq.s32.totalorder %s16, 0
      %p31 = por %p29, %p30
      %p32 = scmp.ne.s32.totalorder %s24, %s26
      %p33 = scmp.eq.s32.totalorder %s21, 1
      %p34 = por %p32, %p33
      %p35 = scmp.ne.s32.totalorder %s26, %s27
      %p36 = scmp.eq.s32.totalorder %s21, 0
      %p37 = por %p35, %p36
      %p38 = scmp.ne.s32.totalorder %s26, %s27
      %p39 = scmp.eq.s32.totalorder %s22, 1
      %p40 = por %p38, %p39
      %p42 = scmp.ne.s32.totalorder %s27, %s41
      %p43 = scmp.eq.s32.totalorder %s22, 0
      %p44 = por %p42, %p43
      %s45 = ssub.s32 %s16, %s23
      %p46 = scmp.eq.s32.totalorder %s45, 0
      %s48 = sadd.s32 %s47, 1
      %s49 = scalar_select %p46, %s47, %s48
      %p52 = pneg %p46
      %p53 = scmp.eq.s32.totalorder %s16, 1
      %p54 = por %p52, %p53
      %p55 = scmp.ne.s32.totalorder %s47, %s50
      %p56 = scmp.eq.s32.totalorder %s16, 0
      %p57 = por %p55, %p56
      %p58 = scmp.ne.s32.totalorder %s47, %s50
      %p59 = scmp.eq.s32.totalorder %s21, 1
      %p60 = por %p58, %p59
      %p61 = scmp.ne.s32.totalorder %s50, %s51
      %p62 = scmp.eq.s32.totalorder %s21, 0
      %p63 = por %p61, %p62
      %p64 = scmp.ne.s32.totalorder %s50, %s51
      %p65 = scmp.eq.s32.totalorder %s22, 1
      %p66 = por %p64, %p65
      %p68 = scmp.ne.s32.totalorder %s51, %s67
      %p69 = scmp.eq.s32.totalorder %s22, 0
      %p70 = por %p68, %p69
      %s72 = sadd.s32 %s71, 1
      %p75 = scmp.eq.s32.totalorder %s16, 1
      %p76 = scmp.ne.s32.totalorder %s71, %s73
      %p77 = scmp.eq.s32.totalorder %s16, 0
      %p78 = por %p76, %p77
      %p79 = scmp.ne.s32.totalorder %s71, %s73
      %p80 = scmp.eq.s32.totalorder %s21, 1
      %p81 = por %p79, %p80
      %p82 = scmp.ne.s32.totalorder %s73, %s74
      %p83 = scmp.eq.s32.totalorder %s21, 0
      %p84 = por %p82, %p83
      %p85 = scmp.ne.s32.totalorder %s73, %s74
      %p86 = scmp.eq.s32.totalorder %s22, 1
      %p87 = por %p85, %p86
      %p89 = scmp.ne.s32.totalorder %s74, %s88
      %p90 = scmp.eq.s32.totalorder %s22, 0
      %p91 = por %p89, %p90
      %s92 = ssub.s32 %s16, %s23
      %p93 = scmp.eq.s32.totalorder %s92, 0
      %s95 = sadd.s32 %s94, 1
      %s96 = scalar_select %p93, %s94, %s95
      %p99 = pneg %p93
      %p100 = scmp.eq.s32.totalorder %s16, 1
      %p101 = por %p99, %p100
      %p102 = scmp.ne.s32.totalorder %s94, %s97
      %p103 = scmp.eq.s32.totalorder %s16, 0
      %p104 = por %p102, %p103
      %p105 = scmp.ne.s32.totalorder %s94, %s97
      %p106 = scmp.eq.s32.totalorder %s21, 1
      %p107 = por %p105, %p106
      %p108 = scmp.ne.s32.totalorder %s97, %s98
      %p109 = scmp.eq.s32.totalorder %s21, 0
      %p110 = por %p108, %p109
      %p111 = scmp.ne.s32.totalorder %s97, %s98
      %p112 = scmp.eq.s32.totalorder %s22, 1
      %p113 = por %p111, %p112
      %p115 = scmp.ne.s32.totalorder %s98, %s114
      %p116 = scmp.eq.s32.totalorder %s22, 0
      %p117 = por %p115, %p116
      %p118 = scmp.le.s32.totalorder 1, %s16
      %p119 = scmp.lt.s32.totalorder %s16, 3
      %p120 = pnand %p118, %p119
      %p121 = pneg %p120
      // Predicated region
      $region9: #{_lambda_.11} parent=5 // pred_check
        _
      $region10: #{_lambda_.11} parent=5 // pred_check_branch
        %123 = sbr.rel (%p120) target = $region12
      $region11: #{_lambda_.11} parent=5 // pred_region
        %s124 = ssub.s32 %s16, 1
        // Predicated region
        $region13: #{_lambda_.11} parent=11 // pred_check
          %p125 = pneg %p37
        $region14: #{_lambda_.11} parent=11 // pred_check_branch
          %127 = sbr.rel (%p125) target = $region16
        $region15: #{_lambda_.11} parent=11 // pred_region
          %s129 = ssub.s32 128, 128
          %130 = vsyncadd [#allocation3], %s129
          %s131 = sshll.u32 [#allocation2], 4
          %s132 = int_to_ptr.vmem [resolvable:$true] %s131
          %137 = dma.hbm_to_vmem [thread:$0]  %s0, 128, %s132, [#allocation3], 64, 64, 4
        $region16: #{_lambda_.11} parent=11 // pred_fallthru
          _
        // Predicated region
        $region17: #{_lambda_.11} parent=11 // pred_check
          %p138 = pneg %p84
        $region18: #{_lambda_.11} parent=11 // pred_check_branch
          %140 = sbr.rel (%p138) target = $region20
        $region19: #{_lambda_.11} parent=11 // pred_region
          %s142 = ssub.s32 256, 256
          %143 = vsyncadd [#allocation6], %s142
          %s144 = sshll.u32 [#allocation7], 4
          %s145 = int_to_ptr.vmem [resolvable:$true] %s144
          %150 = dma.hbm_to_vmem [thread:$0]  %s2, 256, %s145, [#allocation6], 128, 128, 8
        $region20: #{_lambda_.11} parent=11 // pred_fallthru
          _
      $region12: #{_lambda_.11} parent=5 // pred_fallthru
        _
      %p151 = scmp.lt.s32.totalorder %s16, 2
      // Predicated region
      $region21: #{_lambda_.11} parent=5 // pred_check
        %p152 = pneg %p151
      $region22: #{_lambda_.11} parent=5 // pred_check_branch
        %154 = sbr.rel (%p152) target = $region24
      $region23: #{_lambda_.11} parent=5 // pred_region
        // Predicated region
        $region25: #{_lambda_.11} parent=23 // pred_check
          %p155 = pneg %p57
        $region26: #{_lambda_.11} parent=23 // pred_check_branch
          %157 = sbr.rel (%p155) target = $region28
        $region27: #{_lambda_.11} parent=23 // pred_region
          %s158 = sand.u32 %s16, 1
          %s159 = scalar_lea.sflag [#allocation6], %s158
          %s160 = sand.u32 %s47, 1
          %s161 = smul.addr %s160, 64
          %s162 = scalar_lea.vmem [#allocation5], %s161
          %s164 = ssub.s32 1024, 1024
          %165 = vsyncadd %s159, %s164
          %s166 = smul.addr %s16, 16
          %s167 = smul.addr %s166, 64
          %s168 = scalar_lea.hbm %s1, %s167
          %s169 = sshll.u32 %s162, 4
          %s170 = int_to_ptr.vmem [resolvable:$true] %s169
          %175 = dma.hbm_to_vmem [thread:$0]  %s168, 1024, %s170, %s159, 64, 64, 4
        $region28: #{_lambda_.11} parent=23 // pred_fallthru
          _
      $region24: #{_lambda_.11} parent=5 // pred_fallthru
        _
      %p176 = scmp.le.s32.totalorder 1, %s16
      %p177 = scmp.lt.s32.totalorder %s16, 3
      %p178 = pnand %p176, %p177
      %p179 = pneg %p178
      // Predicated region
      $region29: #{_lambda_.11} parent=5 // pred_check
        _
      $region30: #{_lambda_.11} parent=5 // pred_check_branch
        %181 = sbr.rel (%p178) target = $region32
      $region31: #{_lambda_.11} parent=5 // pred_region
        %s182 = ssub.s32 %s16, 1
        // Predicated region
        $region33: #{_lambda_.11} parent=31 // pred_check
          %p183 = pneg %p37
        $region34: #{_lambda_.11} parent=31 // pred_check_branch
          %185 = sbr.rel (%p183) target = $region36
        $region35: #{_lambda_.11} parent=31 // pred_region
          %186 = dma.done [#allocation3], 128
        $region36: #{_lambda_.11} parent=31 // pred_fallthru
          _
        %s187 = sand.u32 %s21, 1
        %s188 = scalar_lea.sflag [#allocation6], %s187
        %s189 = sand.u32 %s50, 1
        %s190 = smul.addr %s189, 64
        %s191 = scalar_lea.vmem [#allocation5], %s190
        // Predicated region
        $region37: #{_lambda_.11} parent=31 // pred_check
          %p192 = pneg %p63
        $region38: #{_lambda_.11} parent=31 // pred_check_branch
          %194 = sbr.rel (%p192) target = $region40
        $region39: #{_lambda_.11} parent=31 // pred_region
          %195 = dma.done %s188, 1024
        $region40: #{_lambda_.11} parent=31 // pred_fallthru
          _
        // Predicated region
        $region41: #{_lambda_.11} parent=31 // pred_check
          %p196 = pneg %p84
        $region42: #{_lambda_.11} parent=31 // pred_check_branch
          %198 = sbr.rel (%p196) target = $region44
        $region43: #{_lambda_.11} parent=31 // pred_region
          %199 = dma.done [#allocation6], 256
        $region44: #{_lambda_.11} parent=31 // pred_fallthru
          _
        %p200 = pneg %p37
        %p201 = pneg %p34
        %s202 = sand.u32 %s21, 1
        %s203 = scalar_lea.sflag [#allocation6], %s202
        %s204 = sand.u32 %s50, 1
        %s205 = smul.addr %s204, 64
        %s206 = scalar_lea.vmem [#allocation5], %s205
        %p207 = pneg %p63
        %p208 = pneg %p60
        %p209 = pneg %p84
        %p210 = pneg %p81
        %p211 = pneg %p110
        %p212 = pneg %p107
        %s213 = sand.u32 %s97, 1
        %s214 = scalar_lea.sflag [#allocation4], %s213
        %s215 = sand.u32 %s97, 1
        %s216 = smul.addr %s215, 16
        %s217 = scalar_lea.vmem [#allocation8], %s216
        %v219 = vld [vmem:[#allocation2] sm:$0xf]
        %v220 = vld [vmem:[#allocation2 + $0x4] sm:$0xf]
        %v221 = vld [vmem:[%s191] sm:$0xf]
        %v222 = vld [vmem:[%s191 + $0x4] sm:$0xf]
        %v223 = vld [vmem:[%s191 + $0x8] sm:$0xf]
        %v224 = vld [vmem:[%s191 + $0xc] sm:$0xf]
        %v225 = vld [vmem:[%s191 + $0x10] sm:$0xf]
        %v226 = vld [vmem:[%s191 + $0x14] sm:$0xf]
        %v227 = vld [vmem:[%s191 + $0x18] sm:$0xf]
        %v228 = vld [vmem:[%s191 + $0x1c] sm:$0xf]
        %v229 = vld [vmem:[%s191 + $0x20] sm:$0xf]
        %v230 = vld [vmem:[%s191 + $0x24] sm:$0xf]
        %v231 = vld [vmem:[%s191 + $0x28] sm:$0xf]
        %v232 = vld [vmem:[%s191 + $0x2c] sm:$0xf]
        %v233 = vld [vmem:[%s191 + $0x30] sm:$0xf]
        %v234 = vld [vmem:[%s191 + $0x34] sm:$0xf]
        %v235 = vld [vmem:[%s191 + $0x38] sm:$0xf]
        %v236 = vld [vmem:[%s191 + $0x3c] sm:$0xf]
        %v239 = vunpack.c.l.b16 %v219
        %v240 = vunpack.c.l.b16 %v220
        %v241 = vpack.c.b16 %v240, %v239
        %v259 = vunpack.c.l.b16 %v221
        %v260 = vunpack.c.l.b16 %v222
        %v261 = vunpack.c.l.b16 %v223
        %v262 = vunpack.c.l.b16 %v224
        %v263 = vunpack.c.l.b16 %v225
        %v264 = vunpack.c.l.b16 %v226
        %v265 = vunpack.c.l.b16 %v227
        %v266 = vunpack.c.l.b16 %v228
        %v267 = vunpack.c.l.b16 %v229
        %v268 = vunpack.c.l.b16 %v230
        %v269 = vunpack.c.l.b16 %v231
        %v270 = vunpack.c.l.b16 %v232
        %v271 = vunpack.c.l.b16 %v233
        %v272 = vunpack.c.l.b16 %v234
        %v273 = vunpack.c.l.b16 %v235
        %v274 = vunpack.c.l.b16 %v236
        %v275 = vpack.c.b16 %v260, %v259
        %v276 = vpack.c.b16 %v262, %v261
        %v277 = vpack.c.b16 %v264, %v263
        %v278 = vpack.c.b16 %v266, %v265
        %v279 = vpack.c.b16 %v268, %v267
        %v280 = vpack.c.b16 %v270, %v269
        %v281 = vpack.c.b16 %v272, %v271
        %v282 = vpack.c.b16 %v274, %v273
        %291 = vmatprep.subr.bf16.mxu0 0
        %292 = vmatpush1.bf16.msra.mxu0 %v275
        %293 = vmatprep.subr.bf16.mxu0 0
        %294 = vmatpush1.bf16.msra.mxu0 %v276
        %295 = vmatprep.subr.bf16.mxu0 0
        %296 = vmatpush1.bf16.msra.mxu0 %v277
        %297 = vmatprep.subr.bf16.mxu0 0
        %298 = vmatpush1.bf16.msra.mxu0 %v278
        %299 = vmatprep.subr.bf16.mxu0 0
        %300 = vmatpush1.bf16.msra.mxu0 %v279
        %301 = vmatprep.subr.bf16.mxu0 0
        %302 = vmatpush1.bf16.msra.mxu0 %v280
        %303 = vmatprep.subr.bf16.mxu0 0
        %304 = vmatpush1.bf16.msra.mxu0 %v281
        %305 = vmatprep.subr.bf16.mxu0 0
        %306 = vmatpush1.bf16.msra.mxu0 %v282
        %307 = vmatprep.subr.bf16.mxu0 0
        %308 = vmatpush1.bf16.msra.mxu0 0
        %309 = vmatprep.subr.bf16.mxu0 0
        %310 = vmatpush1.bf16.msra.mxu0 0
        %311 = vmatprep.subr.bf16.mxu0 0
        %312 = vmatpush1.bf16.msra.mxu0 0
        %313 = vmatprep.subr.bf16.mxu0 0
        %314 = vmatpush1.bf16.msra.mxu0 0
        %315 = vmatprep.subr.bf16.mxu0 0
        %316 = vmatpush1.bf16.msra.mxu0 0
        %317 = vmatprep.subr.bf16.mxu0 0
        %318 = vmatpush1.bf16.msra.mxu0 0
        %319 = vmatprep.subr.bf16.mxu0 0
        %320 = vmatpush1.bf16.msra.mxu0 0
        %321 = vmatprep.subr.bf16.mxu0 0
        %322 = vmatpush1.bf16.msra.mxu0 0
        %323 = vmatprep.mubr.bf16.mxu0 0
        %324 = vmatmul.mubr.bf16.gmra.mrb[0].mxu0 %v241
        %v325 = vpop.f32.mrb[0].mxu0
        %v326 = vadd.f32 0.0, %v325
        %v327 = vpop.f32.mrb[0].mxu0
        %v328 = vpop.f32.mrb[0].mxu0
        %v329 = vadd.f32 0.0, %v328
        %v330 = vpop.f32.mrb[0].mxu0
        %331 = vdwg.mxu0
        %vm332 = vcmask 523264
        %v333 = vsel %vm332, %v326, 0.0
        %334 = vadd.xlane.f32.xlu0 %v333
        %v335 = vpop.xlane.xlu0 %334
        %v336 = vsel %vm332, %v329, 0.0
        %337 = vadd.xlane.f32.xlu0 %v336
        %v338 = vpop.xlane.xlu0 %337
        %v339 = vrcp.pop 64.0
        %v340 = vmul.f32 %v335, %v339
        %v341 = vmul.f32 %v338, %v339
        %v342 = vsub.f32 %v326, %v340
        %v343 = vsub.f32 %v329, %v341
        %v344 = vmul.f32 %v342, %v342
        %v345 = vmul.f32 %v343, %v343
        %v346 = vsel %vm332, %v344, 0.0
        %347 = vadd.xlane.f32.xlu0 %v346
        %v348 = vpop.xlane.xlu0 %347
        %v349 = vsel %vm332, %v345, 0.0
        %350 = vadd.xlane.f32.xlu0 %v349
        %v351 = vpop.xlane.xlu0 %350
        %v352 = vmul.f32 %v348, %v339
        %v353 = vmul.f32 %v351, %v339
        %v354 = vadd.f32 %v352, 1e-05
        %v355 = vadd.f32 %v353, 1e-05
        %v356 = vrsqrt.pop %v354
        %v357 = vrsqrt.pop %v355
        %v358 = vmul.f32 %v342, %v356
        %v359 = vmul.f32 %v343, %v357
        %v360 = vmax.f32 %v358, 0.0
        %v361 = vmax.f32 %v359, 0.0
        %362 = vst.msk [vmem:[%s217] sm:$0xff] %vm332, %v360
        %363 = vst.msk [vmem:[%s217 + $0x8] sm:$0xff] %vm332, %v361
        %s364 = sand.u32 %s97, 1
        %s365 = scalar_lea.sflag [#allocation4], %s364
        %s366 = sand.u32 %s97, 1
        %s367 = smul.addr %s366, 16
        %s368 = scalar_lea.vmem [#allocation8], %s367
        // Predicated region
        $region45: #{_lambda_.11} parent=31 // pred_check
          %p369 = pneg %p107
        $region46: #{_lambda_.11} parent=31 // pred_check_branch
          %371 = sbr.rel (%p369) target = $region48
        $region47: #{_lambda_.11} parent=31 // pred_region
          %s373 = ssub.s32 256, 256
          %374 = vsyncadd %s365, %s373
          %s375 = smul.addr %s21, 2
          %s376 = smul.addr %s375, 128
          %s377 = scalar_lea.hbm %s3, %s376
          %s378 = sshll.u32 %s368, 4
          %s379 = int_to_ptr.vmem [resolvable:$true] %s378
          %384 = dma.vmem_to_hbm [thread:$0]  %s379, 256, %s377, %s365, 128, 128, 8
        $region48: #{_lambda_.11} parent=31 // pred_fallthru
          _
      $region32: #{_lambda_.11} parent=5 // pred_fallthru
        _
      %p385 = scmp.le.s32.totalorder 2, %s16
      // Predicated region
      $region49: #{_lambda_.11} parent=5 // pred_check
        %p386 = pneg %p385
      $region50: #{_lambda_.11} parent=5 // pred_check_branch
        %388 = sbr.rel (%p386) target = $region52
      $region51: #{_lambda_.11} parent=5 // pred_region
        %s389 = ssub.s32 %s16, 2
        // Predicated region
        $region53: #{_lambda_.11} parent=51 // pred_check
          %p390 = pneg %p113
        $region54: #{_lambda_.11} parent=51 // pred_check_branch
          %392 = sbr.rel (%p390) target = $region56
        $region55: #{_lambda_.11} parent=51 // pred_region
          %s393 = sand.u32 %s98, 1
          %s394 = scalar_lea.sflag [#allocation4], %s393
          %s395 = sand.u32 %s98, 1
          %s396 = smul.addr %s395, 16
          %s397 = scalar_lea.vmem [#allocation8], %s396
          %398 = dma.done %s394, 256
        $region56: #{_lambda_.11} parent=51 // pred_fallthru
          _
      $region52: #{_lambda_.11} parent=5 // pred_fallthru
        _
    $region6: #{_lambda_.11} parent=1 // loop_footer
      %s20 = sadd.s32 1, %s16
    $region7: #{_lambda_.11} parent=1 // loop_footer_branch
      %15 = sbr.rel target = $region3
    $region8: #{_lambda_.11} parent=1 // loop_exit
      _
    %399 = vsyncpa [#allocation3], 1
    %s400 = scalar_lea.sflag [#allocation3], 1
    %401 = vsyncpa %s400, 1
    %402 = vsyncpa [#allocation6], 1
    %s403 = scalar_lea.sflag [#allocation6], 1
    %404 = vsyncpa %s403, 1
    %405 = vsyncpa [#allocation4], 1
    %s406 = scalar_lea.sflag [#allocation4], 1
    %407 = vsyncpa %s406, 1

// kernel: _lambda_.12
$region0: #{_lambda_.12}
  #allocation0 [shape = 'u32[]', space=smem, size = 0x4, offset = 0x4, fixed_abs, tag = 'smem constant byte address 0x4 - core index']
  #allocation1 [shape = 'u32[144,128]{1,0:T(1,128)}', space=vmem, size = 0x12000, scoped, tag = 'internal scratch']
  %s0 = inlined_call_operand.hbm [shape: bf16[1,32,256], index: 0, kind: input, shape index: {}]
  %s1 = inlined_call_operand.hbm [shape: bf16[2,1,256,16], index: 1, kind: input, shape index: {}]
  %s2 = inlined_call_operand.hbm [shape: f32[32,1], index: 2, kind: input, shape index: {}]
  %s3 = inlined_call_operand.hbm [shape: f32[2,32,16], index: 3, kind: output, shape index: {}]
  %s4 = sld [smem:[#allocation0]]
  $region57: #{_lambda_.12} parent=0
    _
  %s6 = ssub.s32 1, %s4
  %s7 = scalar_select 0, %s6, %s4
  $region1: #{_lambda_.12} parent=0
    #allocation2 [shape = 'u8[16384]{0}', space=vmem, size = 0x4000, scoped, tag = 'input window, operand 0, single buffered']
    #allocation3 [shape = 's32[2]{0}', space=sflag, size = 0x8, scoped, tag = 'scoped memory for _lambda_.12']
    #allocation4 [shape = 's32[2]{0}', space=sflag, size = 0x8, scoped, tag = 'scoped memory for _lambda_.12']
    #allocation5 [shape = 'u8[131072]{0}', space=vmem, size = 0x20000, scoped, tag = 'input window, operand 1']
    #allocation6 [shape = 's32[2]{0}', space=sflag, size = 0x8, scoped, tag = 'scoped memory for _lambda_.12']
    #allocation7 [shape = 'u8[16384]{0}', space=vmem, size = 0x4000, scoped, tag = 'input window, operand 2, single buffered']
    #allocation8 [shape = 'u8[32768]{0}', space=vmem, size = 0x8000, scoped, tag = 'output window, operand 0']
    %8 = vsyncpa [#allocation3], 0
    %9 = vsyncpa [#allocation6], 0
    %s10 = scalar_lea.sflag [#allocation6], 1
    %11 = vsyncpa %s10, 0
    %12 = vsyncpa [#allocation4], 0
    %s13 = scalar_lea.sflag [#allocation4], 1
    %14 = vsyncpa %s13, 0
    loop: start=0, step=1, limit=4
    $region2: #{_lambda_.12} parent=1 // loop_pre_header
      _
    $region3: #{_lambda_.12} parent=1 // loop_header
      %s16 = sphi 0, %s20
      %p17 = scmp.ge.s32.totalorder %s16, 4
      %s24 = sphi 0, %s24
      %s26 = sphi 0, %s24
      %s27 = sphi 0, %s26
      %s41 = sphi 0, %s27
      %s47 = sphi 0, %s49
      %s50 = sphi 0, %s47
      %s51 = sphi 0, %s50
      %s67 = sphi 0, %s51
      %s71 = sphi 0, %s71
      %s73 = sphi 0, %s71
      %s74 = sphi 0, %s73
      %s88 = sphi 0, %s74
      %s94 = sphi 0, %s96
      %s97 = sphi 0, %s94
      %s98 = sphi 0, %s97
      %s114 = sphi 0, %s98
    $region4: #{_lambda_.12} parent=1 // loop_header_branch
      %19 = sbr.rel (%p17) target = $region8
    $region5: #{_lambda_.12} parent=1 // loop_body
      %s21 = ssub.s32 %s16, 1
      %s22 = ssub.s32 %s16, 2
      %s23 = sadd.s32 %s16, 1
      %s25 = sadd.s32 %s24, 1
      %p28 = scmp.eq.s32.totalorder %s16, 1
      %p29 = scmp.ne.s32.totalorder %s24, %s26
      %p30 = scmp.eq.s32.totalorder %s16, 0
      %p31 = por %p29, %p30
      %p32 = scmp.ne.s32.totalorder %s24, %s26
      %p33 = scmp.eq.s32.totalorder %s21, 1
      %p34 = por %p32, %p33
      %p35 = scmp.ne.s32.totalorder %s26, %s27
      %p36 = scmp.eq.s32.totalorder %s21, 0
      %p37 = por %p35, %p36
      %p38 = scmp.ne.s32.totalorder %s26, %s27
      %p39 = scmp.eq.s32.totalorder %s22, 1
      %p40 = por %p38, %p39
      %p42 = scmp.ne.s32.totalorder %s27, %s41
      %p43 = scmp.eq.s32.totalorder %s22, 0
      %p44 = por %p42, %p43
      %s45 = ssub.s32 %s16, %s23
      %p46 = scmp.eq.s32.totalorder %s45, 0
      %s48 = sadd.s32 %s47, 1
      %s49 = scalar_select %p46, %s47, %s48
      %p52 = pneg %p46
      %p53 = scmp.eq.s32.totalorder %s16, 1
      %p54 = por %p52, %p53
      %p55 = scmp.ne.s32.totalorder %s47, %s50
      %p56 = scmp.eq.s32.totalorder %s16, 0
      %p57 = por %p55, %p56
      %p58 = scmp.ne.s32.totalorder %s47, %s50
      %p59 = scmp.eq.s32.totalorder %s21, 1
      %p60 = por %p58, %p59
      %p61 = scmp.ne.s32.totalorder %s50, %s51
      %p62 = scmp.eq.s32.totalorder %s21, 0
      %p63 = por %p61, %p62
      %p64 = scmp.ne.s32.totalorder %s50, %s51
      %p65 = scmp.eq.s32.totalorder %s22, 1
      %p66 = por %p64, %p65
      %p68 = scmp.ne.s32.totalorder %s51, %s67
      %p69 = scmp.eq.s32.totalorder %s22, 0
      %p70 = por %p68, %p69
      %s72 = sadd.s32 %s71, 1
      %p75 = scmp.eq.s32.totalorder %s16, 1
      %p76 = scmp.ne.s32.totalorder %s71, %s73
      %p77 = scmp.eq.s32.totalorder %s16, 0
      %p78 = por %p76, %p77
      %p79 = scmp.ne.s32.totalorder %s71, %s73
      %p80 = scmp.eq.s32.totalorder %s21, 1
      %p81 = por %p79, %p80
      %p82 = scmp.ne.s32.totalorder %s73, %s74
      %p83 = scmp.eq.s32.totalorder %s21, 0
      %p84 = por %p82, %p83
      %p85 = scmp.ne.s32.totalorder %s73, %s74
      %p86 = scmp.eq.s32.totalorder %s22, 1
      %p87 = por %p85, %p86
      %p89 = scmp.ne.s32.totalorder %s74, %s88
      %p90 = scmp.eq.s32.totalorder %s22, 0
      %p91 = por %p89, %p90
      %s92 = ssub.s32 %s16, %s23
      %p93 = scmp.eq.s32.totalorder %s92, 0
      %s95 = sadd.s32 %s94, 1
      %s96 = scalar_select %p93, %s94, %s95
      %p99 = pneg %p93
      %p100 = scmp.eq.s32.totalorder %s16, 1
      %p101 = por %p99, %p100
      %p102 = scmp.ne.s32.totalorder %s94, %s97
      %p103 = scmp.eq.s32.totalorder %s16, 0
      %p104 = por %p102, %p103
      %p105 = scmp.ne.s32.totalorder %s94, %s97
      %p106 = scmp.eq.s32.totalorder %s21, 1
      %p107 = por %p105, %p106
      %p108 = scmp.ne.s32.totalorder %s97, %s98
      %p109 = scmp.eq.s32.totalorder %s21, 0
      %p110 = por %p108, %p109
      %p111 = scmp.ne.s32.totalorder %s97, %s98
      %p112 = scmp.eq.s32.totalorder %s22, 1
      %p113 = por %p111, %p112
      %p115 = scmp.ne.s32.totalorder %s98, %s114
      %p116 = scmp.eq.s32.totalorder %s22, 0
      %p117 = por %p115, %p116
      %p118 = scmp.le.s32.totalorder 1, %s16
      %p119 = scmp.lt.s32.totalorder %s16, 3
      %p120 = pnand %p118, %p119
      %p121 = pneg %p120
      // Predicated region
      $region9: #{_lambda_.12} parent=5 // pred_check
        _
      $region10: #{_lambda_.12} parent=5 // pred_check_branch
        %123 = sbr.rel (%p120) target = $region12
      $region11: #{_lambda_.12} parent=5 // pred_region
        %s124 = ssub.s32 %s16, 1
        // Predicated region
        $region13: #{_lambda_.12} parent=11 // pred_check
          %p125 = pneg %p37
        $region14: #{_lambda_.12} parent=11 // pred_check_branch
          %127 = sbr.rel (%p125) target = $region16
        $region15: #{_lambda_.12} parent=11 // pred_region
          %s129 = ssub.s32 512, 512
          %130 = vsyncadd [#allocation3], %s129
          %s131 = sshll.u32 [#allocation2], 4
          %s132 = int_to_ptr.vmem [resolvable:$true] %s131
          %137 = dma.hbm_to_vmem [thread:$0]  %s0, 512, %s132, [#allocation3], 128, 128, 8
        $region16: #{_lambda_.12} parent=11 // pred_fallthru
          _
        // Predicated region
        $region17: #{_lambda_.12} parent=11 // pred_check
          %p138 = pneg %p84
        $region18: #{_lambda_.12} parent=11 // pred_check_branch
          %140 = sbr.rel (%p138) target = $region20
        $region19: #{_lambda_.12} parent=11 // pred_region
          %s142 = ssub.s32 512, 512
          %143 = vsyncadd [#allocation6], %s142
          %s144 = sshll.u32 [#allocation7], 4
          %s145 = int_to_ptr.vmem [resolvable:$true] %s144
          %150 = dma.hbm_to_vmem [thread:$0]  %s2, 512, %s145, [#allocation6], 128, 128, 8
        $region20: #{_lambda_.12} parent=11 // pred_fallthru
          _
      $region12: #{_lambda_.12} parent=5 // pred_fallthru
        _
      %p151 = scmp.lt.s32.totalorder %s16, 2
      // Predicated region
      $region21: #{_lambda_.12} parent=5 // pred_check
        %p152 = pneg %p151
      $region22: #{_lambda_.12} parent=5 // pred_check_branch
        %154 = sbr.rel (%p152) target = $region24
      $region23: #{_lambda_.12} parent=5 // pred_region
        // Predicated region
        $region25: #{_lambda_.12} parent=23 // pred_check
          %p155 = pneg %p57
        $region26: #{_lambda_.12} parent=23 // pred_check_branch
          %157 = sbr.rel (%p155) target = $region28
        $region27: #{_lambda_.12} parent=23 // pred_region
          %s158 = sand.u32 %s16, 1
          %s159 = scalar_lea.sflag [#allocation6], %s158
          %s160 = sand.u32 %s47, 1
          %s161 = smul.addr %s160, 128
          %s162 = scalar_lea.vmem [#allocation5], %s161
          %s164 = ssub.s32 2048, 2048
          %165 = vsyncadd %s159, %s164
          %s166 = smul.addr %s16, 32
          %s167 = smul.addr %s166, 64
          %s168 = scalar_lea.hbm %s1, %s167
          %s169 = sshll.u32 %s162, 4
          %s170 = int_to_ptr.vmem [resolvable:$true] %s169
          %175 = dma.hbm_to_vmem [thread:$0]  %s168, 2048, %s170, %s159, 64, 64, 4
        $region28: #{_lambda_.12} parent=23 // pred_fallthru
          _
      $region24: #{_lambda_.12} parent=5 // pred_fallthru
        _
      %p176 = scmp.le.s32.totalorder 1, %s16
      %p177 = scmp.lt.s32.totalorder %s16, 3
      %p178 = pnand %p176, %p177
      %p179 = pneg %p178
      // Predicated region
      $region29: #{_lambda_.12} parent=5 // pred_check
        _
      $region30: #{_lambda_.12} parent=5 // pred_check_branch
        %181 = sbr.rel (%p178) target = $region32
      $region31: #{_lambda_.12} parent=5 // pred_region
        %s182 = ssub.s32 %s16, 1
        // Predicated region
        $region33: #{_lambda_.12} parent=31 // pred_check
          %p183 = pneg %p37
        $region34: #{_lambda_.12} parent=31 // pred_check_branch
          %185 = sbr.rel (%p183) target = $region36
        $region35: #{_lambda_.12} parent=31 // pred_region
          %186 = dma.done [#allocation3], 512
        $region36: #{_lambda_.12} parent=31 // pred_fallthru
          _
        %s187 = sand.u32 %s21, 1
        %s188 = scalar_lea.sflag [#allocation6], %s187
        %s189 = sand.u32 %s50, 1
        %s190 = smul.addr %s189, 128
        %s191 = scalar_lea.vmem [#allocation5], %s190
        // Predicated region
        $region37: #{_lambda_.12} parent=31 // pred_check
          %p192 = pneg %p63
        $region38: #{_lambda_.12} parent=31 // pred_check_branch
          %194 = sbr.rel (%p192) target = $region40
        $region39: #{_lambda_.12} parent=31 // pred_region
          %195 = dma.done %s188, 2048
        $region40: #{_lambda_.12} parent=31 // pred_fallthru
          _
        // Predicated region
        $region41: #{_lambda_.12} parent=31 // pred_check
          %p196 = pneg %p84
        $region42: #{_lambda_.12} parent=31 // pred_check_branch
          %198 = sbr.rel (%p196) target = $region44
        $region43: #{_lambda_.12} parent=31 // pred_region
          %199 = dma.done [#allocation6], 512
        $region44: #{_lambda_.12} parent=31 // pred_fallthru
          _
        %p200 = pneg %p37
        %p201 = pneg %p34
        %s202 = sand.u32 %s21, 1
        %s203 = scalar_lea.sflag [#allocation6], %s202
        %s204 = sand.u32 %s50, 1
        %s205 = smul.addr %s204, 128
        %s206 = scalar_lea.vmem [#allocation5], %s205
        %p207 = pneg %p63
        %p208 = pneg %p60
        %p209 = pneg %p84
        %p210 = pneg %p81
        %p211 = pneg %p110
        %p212 = pneg %p107
        %s213 = sand.u32 %s97, 1
        %s214 = scalar_lea.sflag [#allocation4], %s213
        %s215 = sand.u32 %s97, 1
        %s216 = smul.addr %s215, 32
        %s217 = scalar_lea.vmem [#allocation8], %s216
        %v219 = vld [vmem:[#allocation2] sm:$0xff]
        %v220 = vld [vmem:[#allocation2 + $0x8] sm:$0xff]
        %v221 = vld [vmem:[#allocation2 + $0x10] sm:$0xff]
        %v222 = vld [vmem:[#allocation2 + $0x18] sm:$0xff]
        %v223 = vld [vmem:[%s191] sm:$0xf]
        %v224 = vld [vmem:[%s191 + $0x4] sm:$0xf]
        %v225 = vld [vmem:[%s191 + $0x8] sm:$0xf]
        %v226 = vld [vmem:[%s191 + $0xc] sm:$0xf]
        %v227 = vld [vmem:[%s191 + $0x10] sm:$0xf]
        %v228 = vld [vmem:[%s191 + $0x14] sm:$0xf]
        %v229 = vld [vmem:[%s191 + $0x18] sm:$0xf]
        %v230 = vld [vmem:[%s191 + $0x1c] sm:$0xf]
        %v231 = vld [vmem:[%s191 + $0x20] sm:$0xf]
        %v232 = vld [vmem:[%s191 + $0x24] sm:$0xf]
        %v233 = vld [vmem:[%s191 + $0x28] sm:$0xf]
        %v234 = vld [vmem:[%s191 + $0x2c] sm:$0xf]
        %v235 = vld [vmem:[%s191 + $0x30] sm:$0xf]
        %v236 = vld [vmem:[%s191 + $0x34] sm:$0xf]
        %v237 = vld [vmem:[%s191 + $0x38] sm:$0xf]
        %v238 = vld [vmem:[%s191 + $0x3c] sm:$0xf]
        %v239 = vld [vmem:[%s191 + $0x40] sm:$0xf]
        %v240 = vld [vmem:[%s191 + $0x44] sm:$0xf]
        %v241 = vld [vmem:[%s191 + $0x48] sm:$0xf]
        %v242 = vld [vmem:[%s191 + $0x4c] sm:$0xf]
        %v243 = vld [vmem:[%s191 + $0x50] sm:$0xf]
        %v244 = vld [vmem:[%s191 + $0x54] sm:$0xf]
        %v245 = vld [vmem:[%s191 + $0x58] sm:$0xf]
        %v246 = vld [vmem:[%s191 + $0x5c] sm:$0xf]
        %v247 = vld [vmem:[%s191 + $0x60] sm:$0xf]
        %v248 = vld [vmem:[%s191 + $0x64] sm:$0xf]
        %v249 = vld [vmem:[%s191 + $0x68] sm:$0xf]
        %v250 = vld [vmem:[%s191 + $0x6c] sm:$0xf]
        %v251 = vld [vmem:[%s191 + $0x70] sm:$0xf]
        %v252 = vld [vmem:[%s191 + $0x74] sm:$0xf]
        %v253 = vld [vmem:[%s191 + $0x78] sm:$0xf]
        %v254 = vld [vmem:[%s191 + $0x7c] sm:$0xf]
        %v259 = vunpack.c.l.b16 %v219
        %v260 = vunpack.c.h.b16 %v219
        %v261 = vunpack.c.l.b16 %v220
        %v262 = vunpack.c.h.b16 %v220
        %v263 = vunpack.c.l.b16 %v221
        %v264 = vunpack.c.h.b16 %v221
        %v265 = vunpack.c.l.b16 %v222
        %v266 = vunpack.c.h.b16 %v222
        %v267 = vpack.c.b16 %v261, %v259
        %v268 = vpack.c.b16 %v262, %v260
        %v269 = vpack.c.b16 %v265, %v263
        %v270 = vpack.c.b16 %v266, %v264
        %v307 = vunpack.c.l.b16 %v223
        %v308 = vunpack.c.l.b16 %v224
        %v309 = vunpack.c.l.b16 %v225
        %v310 = vunpack.c.l.b16 %v226
        %v311 = vunpack.c.l.b16 %v227
        %v312 = vunpack.c.l.b16 %v228
        %v313 = vunpack.c.l.b16 %v229
        %v314 = vunpack.c.l.b16 %v230
        %v315 = vunpack.c.l.b16 %v231
        %v316 = vunpack.c.l.b16 %v232
        %v317 = vunpack.c.l.b16 %v233
        %v318 = vunpack.c.l.b16 %v234
        %v319 = vunpack.c.l.b16 %v235
        %v320 = vunpack.c.l.b16 %v236
        %v321 = vunpack.c.l.b16 %v237
        %v322 = vunpack.c.l.b16 %v238
        %v323 = vunpack.c.l.b16 %v239
        %v324 = vunpack.c.l.b16 %v240
        %v325 = vunpack.c.l.b16 %v241
        %v326 = vunpack.c.l.b16 %v242
        %v327 = vunpack.c.l.b16 %v243
        %v328 = vunpack.c.l.b16 %v244
        %v329 = vunpack.c.l.b16 %v245
        %v330 = vunpack.c.l.b16 %v246
        %v331 = vunpack.c.l.b16 %v247
        %v332 = vunpack.c.l.b16 %v248
        %v333 = vunpack.c.l.b16 %v249
        %v334 = vunpack.c.l.b16 %v250
        %v335 = vunpack.c.l.b16 %v251
        %v336 = vunpack.c.l.b16 %v252
        %v337 = vunpack.c.l.b16 %v253
        %v338 = vunpack.c.l.b16 %v254
        %v339 = vpack.c.b16 %v308, %v307
        %v340 = vpack.c.b16 %v310, %v309
        %v341 = vpack.c.b16 %v312, %v311
        %v342 = vpack.c.b16 %v314, %v313
        %v343 = vpack.c.b16 %v316, %v315
        %v344 = vpack.c.b16 %v318, %v317
        %v345 = vpack.c.b16 %v320, %v319
        %v346 = vpack.c.b16 %v322, %v321
        %v347 = vpack.c.b16 %v324, %v323
        %v348 = vpack.c.b16 %v326, %v325
        %v349 = vpack.c.b16 %v328, %v327
        %v350 = vpack.c.b16 %v330, %v329
        %v351 = vpack.c.b16 %v332, %v331
        %v352 = vpack.c.b16 %v334, %v333
        %v353 = vpack.c.b16 %v336, %v335
        %v354 = vpack.c.b16 %v338, %v337
        %371 = vmatprep.subr.bf16.mxu0 0
        %372 = vmatpush1.bf16.msra.mxu0 %v339
        %373 = vmatprep.subr.bf16.mxu0 0
        %374 = vmatpush1.bf16.msra.mxu0 %v340
        %375 = vmatprep.subr.bf16.mxu0 0
        %376 = vmatpush1.bf16.msra.mxu0 %v341
        %377 = vmatprep.subr.bf16.mxu0 0
        %378 = vmatpush1.bf16.msra.mxu0 %v342
        %379 = vmatprep.subr.bf16.mxu0 0
        %380 = vmatpush1.bf16.msra.mxu0 %v343
        %381 = vmatprep.subr.bf16.mxu0 0
        %382 = vmatpush1.bf16.msra.mxu0 %v344
        %383 = vmatprep.subr.bf16.mxu0 0
        %384 = vmatpush1.bf16.msra.mxu0 %v345
        %385 = vmatprep.subr.bf16.mxu0 0
        %386 = vmatpush1.bf16.msra.mxu0 %v346
        %387 = vmatprep.subr.bf16.mxu0 0
        %388 = vmatpush1.bf16.msra.mxu0 %v347
        %389 = vmatprep.subr.bf16.mxu0 0
        %390 = vmatpush1.bf16.msra.mxu0 %v348
        %391 = vmatprep.subr.bf16.mxu0 0
        %392 = vmatpush1.bf16.msra.mxu0 %v349
        %393 = vmatprep.subr.bf16.mxu0 0
        %394 = vmatpush1.bf16.msra.mxu0 %v350
        %395 = vmatprep.subr.bf16.mxu0 0
        %396 = vmatpush1.bf16.msra.mxu0 %v351
        %397 = vmatprep.subr.bf16.mxu0 0
        %398 = vmatpush1.bf16.msra.mxu0 %v352
        %399 = vmatprep.subr.bf16.mxu0 0
        %400 = vmatpush1.bf16.msra.mxu0 %v353
        %401 = vmatprep.subr.bf16.mxu0 0
        %402 = vmatpush1.bf16.msra.mxu0 %v354
        %403 = vmatprep.mubr.bf16.mxu0 %v268
        %404 = vmatmul.mubr.bf16.gmra.mrb[0].mxu0 %v267
        %v405 = vpop.f32.mrb[0].mxu0
        %v406 = vadd.f32 0.0, %v405
        %v407 = vpop.f32.mrb[0].mxu0
        %v408 = vpop.f32.mrb[0].mxu0
        %v409 = vadd.f32 0.0, %v408
        %v410 = vpop.f32.mrb[0].mxu0
        %411 = vmatprep.mubr.bf16.mxu0 %v270
        %412 = vmatmul.mubr.bf16.gmra.mrb[0].mxu0 %v269
        %v413 = vpop.f32.mrb[0].mxu0
        %v414 = vadd.f32 0.0, %v413
        %v415 = vpop.f32.mrb[0].mxu0
        %v416 = vpop.f32.mrb[0].mxu0
        %v417 = vadd.f32 0.0, %v416
        %v418 = vpop.f32.mrb[0].mxu0
        %419 = vdwg.mxu0
        %vm420 = vcmask 130048
        %v421 = vsel %vm420, %v406, 0.0
        %422 = vadd.xlane.f32.xlu0 %v421
        %v423 = vpop.xlane.xlu0 %422
        %v424 = vsel %vm420, %v409, 0.0
        %425 = vadd.xlane.f32.xlu0 %v424
        %v426 = vpop.xlane.xlu0 %425
        %v427 = vsel %vm420, %v414, 0.0
        %428 = vadd.xlane.f32.xlu0 %v427
        %v429 = vpop.xlane.xlu0 %428
        %v430 = vsel %vm420, %v417, 0.0
        %431 = vadd.xlane.f32.xlu0 %v430
        %v432 = vpop.xlane.xlu0 %431
        %v433 = vrcp.pop 16.0
        %v434 = vmul.f32 %v423, %v433
        %v435 = vmul.f32 %v426, %v433
        %v436 = vmul.f32 %v429, %v433
        %v437 = vmul.f32 %v432, %v433
        %v438 = vsub.f32 %v406, %v434
        %v439 = vsub.f32 %v409, %v435
        %v440 = vsub.f32 %v414, %v436
        %v441 = vsub.f32 %v417, %v437
        %v442 = vmul.f32 %v438, %v438
        %v443 = vmul.f32 %v439, %v439
        %v444 = vmul.f32 %v440, %v440
        %v445 = vmul.f32 %v441, %v441
        %v446 = vsel %vm420, %v442, 0.0
        %447 = vadd.xlane.f32.xlu0 %v446
        %v448 = vpop.xlane.xlu0 %447
        %v449 = vsel %vm420, %v443, 0.0
        %450 = vadd.xlane.f32.xlu0 %v449
        %v451 = vpop.xlane.xlu0 %450
        %v452 = vsel %vm420, %v444, 0.0
        %453 = vadd.xlane.f32.xlu0 %v452
        %v454 = vpop.xlane.xlu0 %453
        %v455 = vsel %vm420, %v445, 0.0
        %456 = vadd.xlane.f32.xlu0 %v455
        %v457 = vpop.xlane.xlu0 %456
        %v458 = vmul.f32 %v448, %v433
        %v459 = vmul.f32 %v451, %v433
        %v460 = vmul.f32 %v454, %v433
        %v461 = vmul.f32 %v457, %v433
        %v462 = vadd.f32 %v458, 1e-05
        %v463 = vadd.f32 %v459, 1e-05
        %v464 = vadd.f32 %v460, 1e-05
        %v465 = vadd.f32 %v461, 1e-05
        %v466 = vrsqrt.pop %v462
        %v467 = vrsqrt.pop %v463
        %v468 = vrsqrt.pop %v464
        %v469 = vrsqrt.pop %v465
        %v470 = vmul.f32 %v438, %v466
        %v471 = vmul.f32 %v439, %v467
        %v472 = vmul.f32 %v440, %v468
        %v473 = vmul.f32 %v441, %v469
        %v474 = vmax.f32 %v470, 0.0
        %v475 = vmax.f32 %v471, 0.0
        %v476 = vmax.f32 %v472, 0.0
        %v477 = vmax.f32 %v473, 0.0
        %478 = vst.msk [vmem:[%s217] sm:$0xff] %vm420, %v474
        %479 = vst.msk [vmem:[%s217 + $0x8] sm:$0xff] %vm420, %v475
        %480 = vst.msk [vmem:[%s217 + $0x10] sm:$0xff] %vm420, %v476
        %481 = vst.msk [vmem:[%s217 + $0x18] sm:$0xff] %vm420, %v477
        %s482 = sand.u32 %s97, 1
        %s483 = scalar_lea.sflag [#allocation4], %s482
        %s484 = sand.u32 %s97, 1
        %s485 = smul.addr %s484, 32
        %s486 = scalar_lea.vmem [#allocation8], %s485
        // Predicated region
        $region45: #{_lambda_.12} parent=31 // pred_check
          %p487 = pneg %p107
        $region46: #{_lambda_.12} parent=31 // pred_check_branch
          %489 = sbr.rel (%p487) target = $region48
        $region47: #{_lambda_.12} parent=31 // pred_region
          %s491 = ssub.s32 512, 512
          %492 = vsyncadd %s483, %s491
          %s493 = smul.addr %s21, 4
          %s494 = smul.addr %s493, 128
          %s495 = scalar_lea.hbm %s3, %s494
          %s496 = sshll.u32 %s486, 4
          %s497 = int_to_ptr.vmem [resolvable:$true] %s496
          %502 = dma.vmem_to_hbm [thread:$0]  %s497, 512, %s495, %s483, 128, 128, 8
        $region48: #{_lambda_.12} parent=31 // pred_fallthru
          _
      $region32: #{_lambda_.12} parent=5 // pred_fallthru
        _
      %p503 = scmp.le.s32.totalorder 2, %s16
      // Predicated region
      $region49: #{_lambda_.12} parent=5 // pred_check
        %p504 = pneg %p503
      $region50: #{_lambda_.12} parent=5 // pred_check_branch
        %506 = sbr.rel (%p504) target = $region52
      $region51: #{_lambda_.12} parent=5 // pred_region
        %s507 = ssub.s32 %s16, 2
        // Predicated region
        $region53: #{_lambda_.12} parent=51 // pred_check
          %p508 = pneg %p113
        $region54: #{_lambda_.12} parent=51 // pred_check_branch
          %510 = sbr.rel (%p508) target = $region56
        $region55: #{_lambda_.12} parent=51 // pred_region
          %s511 = sand.u32 %s98, 1
          %s512 = scalar_lea.sflag [#allocation4], %s511
          %s513 = sand.u32 %s98, 1
          %s514 = smul.addr %s513, 32
          %s515 = scalar_lea.vmem [#allocation8], %s514
          %516 = dma.done %s512, 512
        $region56: #{_lambda_.12} parent=51 // pred_fallthru
          _
      $region52: #{_lambda_.12} parent=5 // pred_fallthru
        _
    $region6: #{_lambda_.12} parent=1 // loop_footer
      %s20 = sadd.s32 1, %s16
    $region7: #{_lambda_.12} parent=1 // loop_footer_branch
      %15 = sbr.rel target = $region3
    $region8: #{_lambda_.12} parent=1 // loop_exit
      _
    %517 = vsyncpa [#allocation3], 1
    %s518 = scalar_lea.sflag [#allocation3], 1
    %519 = vsyncpa %s518, 1
    %520 = vsyncpa [#allocation6], 1
    %s521 = scalar_lea.sflag [#allocation6], 1
    %522 = vsyncpa %s521, 1
    %523 = vsyncpa [#allocation4], 1
    %s524 = scalar_lea.sflag [#allocation4], 1
    %525 = vsyncpa %s524, 1

// kernel: _lambda_.13
$region0: #{_lambda_.13}
  #allocation0 [shape = 'u32[]', space=smem, size = 0x4, offset = 0x4, fixed_abs, tag = 'smem constant byte address 0x4 - core index']
  #allocation1 [shape = 'u32[144,128]{1,0:T(1,128)}', space=vmem, size = 0x12000, scoped, tag = 'internal scratch']
  %s0 = inlined_call_operand.hbm [shape: bf16[1,32,288], index: 0, kind: input, shape index: {}]
  %s1 = inlined_call_operand.hbm [shape: bf16[2,1,288,16], index: 1, kind: input, shape index: {}]
  %s2 = inlined_call_operand.hbm [shape: f32[32,1], index: 2, kind: input, shape index: {}]
  %s3 = inlined_call_operand.hbm [shape: f32[2,32,16], index: 3, kind: output, shape index: {}]
  %s4 = sld [smem:[#allocation0]]
  $region57: #{_lambda_.13} parent=0
    _
  %s6 = ssub.s32 1, %s4
  %s7 = scalar_select 0, %s6, %s4
  $region1: #{_lambda_.13} parent=0
    #allocation2 [shape = 'u8[24576]{0}', space=vmem, size = 0x6000, scoped, tag = 'input window, operand 0, single buffered']
    #allocation3 [shape = 's32[2]{0}', space=sflag, size = 0x8, scoped, tag = 'scoped memory for _lambda_.13']
    #allocation4 [shape = 's32[2]{0}', space=sflag, size = 0x8, scoped, tag = 'scoped memory for _lambda_.13']
    #allocation5 [shape = 'u8[147456]{0}', space=vmem, size = 0x24000, scoped, tag = 'input window, operand 1']
    #allocation6 [shape = 's32[2]{0}', space=sflag, size = 0x8, scoped, tag = 'scoped memory for _lambda_.13']
    #allocation7 [shape = 'u8[16384]{0}', space=vmem, size = 0x4000, scoped, tag = 'input window, operand 2, single buffered']
    #allocation8 [shape = 'u8[32768]{0}', space=vmem, size = 0x8000, scoped, tag = 'output window, operand 0']
    %8 = vsyncpa [#allocation3], 0
    %9 = vsyncpa [#allocation6], 0
    %s10 = scalar_lea.sflag [#allocation6], 1
    %11 = vsyncpa %s10, 0
    %12 = vsyncpa [#allocation4], 0
    %s13 = scalar_lea.sflag [#allocation4], 1
    %14 = vsyncpa %s13, 0
    loop: start=0, step=1, limit=4
    $region2: #{_lambda_.13} parent=1 // loop_pre_header
      _
    $region3: #{_lambda_.13} parent=1 // loop_header
      %s16 = sphi 0, %s20
      %p17 = scmp.ge.s32.totalorder %s16, 4
      %s24 = sphi 0, %s24
      %s26 = sphi 0, %s24
      %s27 = sphi 0, %s26
      %s41 = sphi 0, %s27
      %s47 = sphi 0, %s49
      %s50 = sphi 0, %s47
      %s51 = sphi 0, %s50
      %s67 = sphi 0, %s51
      %s71 = sphi 0, %s71
      %s73 = sphi 0, %s71
      %s74 = sphi 0, %s73
      %s88 = sphi 0, %s74
      %s94 = sphi 0, %s96
      %s97 = sphi 0, %s94
      %s98 = sphi 0, %s97
      %s114 = sphi 0, %s98
    $region4: #{_lambda_.13} parent=1 // loop_header_branch
      %19 = sbr.rel (%p17) target = $region8
    $region5: #{_lambda_.13} parent=1 // loop_body
      %s21 = ssub.s32 %s16, 1
      %s22 = ssub.s32 %s16, 2
      %s23 = sadd.s32 %s16, 1
      %s25 = sadd.s32 %s24, 1
      %p28 = scmp.eq.s32.totalorder %s16, 1
      %p29 = scmp.ne.s32.totalorder %s24, %s26
      %p30 = scmp.eq.s32.totalorder %s16, 0
      %p31 = por %p29, %p30
      %p32 = scmp.ne.s32.totalorder %s24, %s26
      %p33 = scmp.eq.s32.totalorder %s21, 1
      %p34 = por %p32, %p33
      %p35 = scmp.ne.s32.totalorder %s26, %s27
      %p36 = scmp.eq.s32.totalorder %s21, 0
      %p37 = por %p35, %p36
      %p38 = scmp.ne.s32.totalorder %s26, %s27
      %p39 = scmp.eq.s32.totalorder %s22, 1
      %p40 = por %p38, %p39
      %p42 = scmp.ne.s32.totalorder %s27, %s41
      %p43 = scmp.eq.s32.totalorder %s22, 0
      %p44 = por %p42, %p43
      %s45 = ssub.s32 %s16, %s23
      %p46 = scmp.eq.s32.totalorder %s45, 0
      %s48 = sadd.s32 %s47, 1
      %s49 = scalar_select %p46, %s47, %s48
      %p52 = pneg %p46
      %p53 = scmp.eq.s32.totalorder %s16, 1
      %p54 = por %p52, %p53
      %p55 = scmp.ne.s32.totalorder %s47, %s50
      %p56 = scmp.eq.s32.totalorder %s16, 0
      %p57 = por %p55, %p56
      %p58 = scmp.ne.s32.totalorder %s47, %s50
      %p59 = scmp.eq.s32.totalorder %s21, 1
      %p60 = por %p58, %p59
      %p61 = scmp.ne.s32.totalorder %s50, %s51
      %p62 = scmp.eq.s32.totalorder %s21, 0
      %p63 = por %p61, %p62
      %p64 = scmp.ne.s32.totalorder %s50, %s51
      %p65 = scmp.eq.s32.totalorder %s22, 1
      %p66 = por %p64, %p65
      %p68 = scmp.ne.s32.totalorder %s51, %s67
      %p69 = scmp.eq.s32.totalorder %s22, 0
      %p70 = por %p68, %p69
      %s72 = sadd.s32 %s71, 1
      %p75 = scmp.eq.s32.totalorder %s16, 1
      %p76 = scmp.ne.s32.totalorder %s71, %s73
      %p77 = scmp.eq.s32.totalorder %s16, 0
      %p78 = por %p76, %p77
      %p79 = scmp.ne.s32.totalorder %s71, %s73
      %p80 = scmp.eq.s32.totalorder %s21, 1
      %p81 = por %p79, %p80
      %p82 = scmp.ne.s32.totalorder %s73, %s74
      %p83 = scmp.eq.s32.totalorder %s21, 0
      %p84 = por %p82, %p83
      %p85 = scmp.ne.s32.totalorder %s73, %s74
      %p86 = scmp.eq.s32.totalorder %s22, 1
      %p87 = por %p85, %p86
      %p89 = scmp.ne.s32.totalorder %s74, %s88
      %p90 = scmp.eq.s32.totalorder %s22, 0
      %p91 = por %p89, %p90
      %s92 = ssub.s32 %s16, %s23
      %p93 = scmp.eq.s32.totalorder %s92, 0
      %s95 = sadd.s32 %s94, 1
      %s96 = scalar_select %p93, %s94, %s95
      %p99 = pneg %p93
      %p100 = scmp.eq.s32.totalorder %s16, 1
      %p101 = por %p99, %p100
      %p102 = scmp.ne.s32.totalorder %s94, %s97
      %p103 = scmp.eq.s32.totalorder %s16, 0
      %p104 = por %p102, %p103
      %p105 = scmp.ne.s32.totalorder %s94, %s97
      %p106 = scmp.eq.s32.totalorder %s21, 1
      %p107 = por %p105, %p106
      %p108 = scmp.ne.s32.totalorder %s97, %s98
      %p109 = scmp.eq.s32.totalorder %s21, 0
      %p110 = por %p108, %p109
      %p111 = scmp.ne.s32.totalorder %s97, %s98
      %p112 = scmp.eq.s32.totalorder %s22, 1
      %p113 = por %p111, %p112
      %p115 = scmp.ne.s32.totalorder %s98, %s114
      %p116 = scmp.eq.s32.totalorder %s22, 0
      %p117 = por %p115, %p116
      %p118 = scmp.le.s32.totalorder 1, %s16
      %p119 = scmp.lt.s32.totalorder %s16, 3
      %p120 = pnand %p118, %p119
      %p121 = pneg %p120
      // Predicated region
      $region9: #{_lambda_.13} parent=5 // pred_check
        _
      $region10: #{_lambda_.13} parent=5 // pred_check_branch
        %123 = sbr.rel (%p120) target = $region12
      $region11: #{_lambda_.13} parent=5 // pred_region
        %s124 = ssub.s32 %s16, 1
        // Predicated region
        $region13: #{_lambda_.13} parent=11 // pred_check
          %p125 = pneg %p37
        $region14: #{_lambda_.13} parent=11 // pred_check_branch
          %127 = sbr.rel (%p125) target = $region16
        $region15: #{_lambda_.13} parent=11 // pred_region
          %s129 = ssub.s32 768, 768
          %130 = vsyncadd [#allocation3], %s129
          %s131 = sshll.u32 [#allocation2], 4
          %s132 = int_to_ptr.vmem [resolvable:$true] %s131
          %137 = dma.hbm_to_vmem [thread:$0]  %s0, 768, %s132, [#allocation3], 192, 192, 12
        $region16: #{_lambda_.13} parent=11 // pred_fallthru
          _
        // Predicated region
        $region17: #{_lambda_.13} parent=11 // pred_check
          %p138 = pneg %p84
        $region18: #{_lambda_.13} parent=11 // pred_check_branch
          %140 = sbr.rel (%p138) target = $region20
        $region19: #{_lambda_.13} parent=11 // pred_region
          %s142 = ssub.s32 512, 512
          %143 = vsyncadd [#allocation6], %s142
          %s144 = sshll.u32 [#allocation7], 4
          %s145 = int_to_ptr.vmem [resolvable:$true] %s144
          %150 = dma.hbm_to_vmem [thread:$0]  %s2, 512, %s145, [#allocation6], 128, 128, 8
        $region20: #{_lambda_.13} parent=11 // pred_fallthru
          _
      $region12: #{_lambda_.13} parent=5 // pred_fallthru
        _
      %p151 = scmp.lt.s32.totalorder %s16, 2
      // Predicated region
      $region21: #{_lambda_.13} parent=5 // pred_check
        %p152 = pneg %p151
      $region22: #{_lambda_.13} parent=5 // pred_check_branch
        %154 = sbr.rel (%p152) target = $region24
      $region23: #{_lambda_.13} parent=5 // pred_region
        // Predicated region
        $region25: #{_lambda_.13} parent=23 // pred_check
          %p155 = pneg %p57
        $region26: #{_lambda_.13} parent=23 // pred_check_branch
          %157 = sbr.rel (%p155) target = $region28
        $region27: #{_lambda_.13} parent=23 // pred_region
          %s158 = sand.u32 %s16, 1
          %s159 = scalar_lea.sflag [#allocation6], %s158
          %s160 = sand.u32 %s47, 1
          %s161 = smul.addr %s160, 144
          %s162 = scalar_lea.vmem [#allocation5], %s161
          %s164 = ssub.s32 2304, 2304
          %165 = vsyncadd %s159, %s164
          %s166 = smul.addr %s16, 36
          %s167 = smul.addr %s166, 64
          %s168 = scalar_lea.hbm %s1, %s167
          %s169 = sshll.u32 %s162, 4
          %s170 = int_to_ptr.vmem [resolvable:$true] %s169
          %175 = dma.hbm_to_vmem [thread:$0]  %s168, 2304, %s170, %s159, 64, 64, 4
        $region28: #{_lambda_.13} parent=23 // pred_fallthru
          _
      $region24: #{_lambda_.13} parent=5 // pred_fallthru
        _
      %p176 = scmp.le.s32.totalorder 1, %s16
      %p177 = scmp.lt.s32.totalorder %s16, 3
      %p178 = pnand %p176, %p177
      %p179 = pneg %p178
      // Predicated region
      $region29: #{_lambda_.13} parent=5 // pred_check
        _
      $region30: #{_lambda_.13} parent=5 // pred_check_branch
        %181 = sbr.rel (%p178) target = $region32
      $region31: #{_lambda_.13} parent=5 // pred_region
        %s182 = ssub.s32 %s16, 1
        // Predicated region
        $region33: #{_lambda_.13} parent=31 // pred_check
          %p183 = pneg %p37
        $region34: #{_lambda_.13} parent=31 // pred_check_branch
          %185 = sbr.rel (%p183) target = $region36
        $region35: #{_lambda_.13} parent=31 // pred_region
          %186 = dma.done [#allocation3], 768
        $region36: #{_lambda_.13} parent=31 // pred_fallthru
          _
        %s187 = sand.u32 %s21, 1
        %s188 = scalar_lea.sflag [#allocation6], %s187
        %s189 = sand.u32 %s50, 1
        %s190 = smul.addr %s189, 144
        %s191 = scalar_lea.vmem [#allocation5], %s190
        // Predicated region
        $region37: #{_lambda_.13} parent=31 // pred_check
          %p192 = pneg %p63
        $region38: #{_lambda_.13} parent=31 // pred_check_branch
          %194 = sbr.rel (%p192) target = $region40
        $region39: #{_lambda_.13} parent=31 // pred_region
          %195 = dma.done %s188, 2304
        $region40: #{_lambda_.13} parent=31 // pred_fallthru
          _
        // Predicated region
        $region41: #{_lambda_.13} parent=31 // pred_check
          %p196 = pneg %p84
        $region42: #{_lambda_.13} parent=31 // pred_check_branch
          %198 = sbr.rel (%p196) target = $region44
        $region43: #{_lambda_.13} parent=31 // pred_region
          %199 = dma.done [#allocation6], 512
        $region44: #{_lambda_.13} parent=31 // pred_fallthru
          _
        %p200 = pneg %p37
        %p201 = pneg %p34
        %s202 = sand.u32 %s21, 1
        %s203 = scalar_lea.sflag [#allocation6], %s202
        %s204 = sand.u32 %s50, 1
        %s205 = smul.addr %s204, 144
        %s206 = scalar_lea.vmem [#allocation5], %s205
        %p207 = pneg %p63
        %p208 = pneg %p60
        %p209 = pneg %p84
        %p210 = pneg %p81
        %p211 = pneg %p110
        %p212 = pneg %p107
        %s213 = sand.u32 %s97, 1
        %s214 = scalar_lea.sflag [#allocation4], %s213
        %s215 = sand.u32 %s97, 1
        %s216 = smul.addr %s215, 32
        %s217 = scalar_lea.vmem [#allocation8], %s216
        %v219 = vld [vmem:[#allocation2] sm:$0xff]
        %v220 = vld [vmem:[#allocation2 + $0x8] sm:$0xf]
        %v221 = vld [vmem:[#allocation2 + $0xc] sm:$0xff]
        %v222 = vld [vmem:[#allocation2 + $0x14] sm:$0xf]
        %v223 = vld [vmem:[#allocation2 + $0x18] sm:$0xff]
        %v224 = vld [vmem:[#allocation2 + $0x20] sm:$0xf]
        %v225 = vld [vmem:[#allocation2 + $0x24] sm:$0xff]
        %v226 = vld [vmem:[#allocation2 + $0x2c] sm:$0xf]
        %v227 = vld [vmem:[%s191] sm:$0xf]
        %v228 = vld [vmem:[%s191 + $0x4] sm:$0xf]
        %v229 = vld [vmem:[%s191 + $0x8] sm:$0xf]
        %v230 = vld [vmem:[%s191 + $0xc] sm:$0xf]
        %v231 = vld [vmem:[%s191 + $0x10] sm:$0xf]
        %v232 = vld [vmem:[%s191 + $0x14] sm:$0xf]
        %v233 = vld [vmem:[%s191 + $0x18] sm:$0xf]
        %v234 = vld [vmem:[%s191 + $0x1c] sm:$0xf]
        %v235 = vld [vmem:[%s191 + $0x20] sm:$0xf]
        %v236 = vld [vmem:[%s191 + $0x24] sm:$0xf]
        %v237 = vld [vmem:[%s191 + $0x28] sm:$0xf]
        %v238 = vld [vmem:[%s191 + $0x2c] sm:$0xf]
        %v239 = vld [vmem:[%s191 + $0x30] sm:$0xf]
        %v240 = vld [vmem:[%s191 + $0x34] sm:$0xf]
        %v241 = vld [vmem:[%s191 + $0x38] sm:$0xf]
        %v242 = vld [vmem:[%s191 + $0x3c] sm:$0xf]
        %v243 = vld [vmem:[%s191 + $0x40] sm:$0xf]
        %v244 = vld [vmem:[%s191 + $0x44] sm:$0xf]
        %v245 = vld [vmem:[%s191 + $0x48] sm:$0xf]
        %v246 = vld [vmem:[%s191 + $0x4c] sm:$0xf]
        %v247 = vld [vmem:[%s191 + $0x50] sm:$0xf]
        %v248 = vld [vmem:[%s191 + $0x54] sm:$0xf]
        %v249 = vld [vmem:[%s191 + $0x58] sm:$0xf]
        %v250 = vld [vmem:[%s191 + $0x5c] sm:$0xf]
        %v251 = vld [vmem:[%s191 + $0x60] sm:$0xf]
        %v252 = vld [vmem:[%s191 + $0x64] sm:$0xf]
        %v253 = vld [vmem:[%s191 + $0x68] sm:$0xf]
        %v254 = vld [vmem:[%s191 + $0x6c] sm:$0xf]
        %v255 = vld [vmem:[%s191 + $0x70] sm:$0xf]
        %v256 = vld [vmem:[%s191 + $0x74] sm:$0xf]
        %v257 = vld [vmem:[%s191 + $0x78] sm:$0xf]
        %v258 = vld [vmem:[%s191 + $0x7c] sm:$0xf]
        %v259 = vld [vmem:[%s191 + $0x80] sm:$0xf]
        %v260 = vld [vmem:[%s191 + $0x84] sm:$0xf]
        %v261 = vld [vmem:[%s191 + $0x88] sm:$0xf]
        %v262 = vld [vmem:[%s191 + $0x8c] sm:$0xf]
        %v271 = vunpack.c.l.b16 %v219
        %v272 = vunpack.c.h.b16 %v219
        %v273 = vunpack.c.l.b16 %v220
        %v274 = vunpack.c.l.b16 %v221
        %v275 = vunpack.c.h.b16 %v221
        %v276 = vunpack.c.l.b16 %v222
        %v277 = vunpack.c.l.b16 %v223
        %v278 = vunpack.c.h.b16 %v223
        %v279 = vunpack.c.l.b16 %v224
        %v280 = vunpack.c.l.b16 %v225
        %v281 = vunpack.c.h.b16 %v225
        %v282 = vunpack.c.l.b16 %v226
        %v283 = vpack.c.b16 %v274, %v271
        %v284 = vpack.c.b16 %v275, %v272
        %v285 = vpack.c.b16 %v276, %v273
        %v286 = vpack.c.b16 %v280, %v277
        %v287 = vpack.c.b16 %v281, %v278
        %v288 = vpack.c.b16 %v282, %v279
        %v329 = vunpack.c.l.b16 %v227
        %v330 = vunpack.c.l.b16 %v228
        %v331 = vunpack.c.l.b16 %v229
        %v332 = vunpack.c.l.b16 %v230
        %v333 = vunpack.c.l.b16 %v231
        %v334 = vunpack.c.l.b16 %v232
        %v335 = vunpack.c.l.b16 %v233
        %v336 = vunpack.c.l.b16 %v234
        %v337 = vunpack.c.l.b16 %v235
        %v338 = vunpack.c.l.b16 %v236
        %v339 = vunpack.c.l.b16 %v237
        %v340 = vunpack.c.l.b16 %v238
        %v341 = vunpack.c.l.b16 %v239
        %v342 = vunpack.c.l.b16 %v240
        %v343 = vunpack.c.l.b16 %v241
        %v344 = vunpack.c.l.b16 %v242
        %v345 = vunpack.c.l.b16 %v243
        %v346 = vunpack.c.l.b16 %v244
        %v347 = vunpack.c.l.b16 %v245
        %v348 = vunpack.c.l.b16 %v246
        %v349 = vunpack.c.l.b16 %v247
        %v350 = vunpack.c.l.b16 %v248
        %v351 = vunpack.c.l.b16 %v249
        %v352 = vunpack.c.l.b16 %v250
        %v353 = vunpack.c.l.b16 %v251
        %v354 = vunpack.c.l.b16 %v252
        %v355 = vunpack.c.l.b16 %v253
        %v356 = vunpack.c.l.b16 %v254
        %v357 = vunpack.c.l.b16 %v255
        %v358 = vunpack.c.l.b16 %v256
        %v359 = vunpack.c.l.b16 %v257
        %v360 = vunpack.c.l.b16 %v258
        %v361 = vunpack.c.l.b16 %v259
        %v362 = vunpack.c.l.b16 %v260
        %v363 = vunpack.c.l.b16 %v261
        %v364 = vunpack.c.l.b16 %v262
        %v365 = vpack.c.b16 %v330, %v329
        %v366 = vpack.c.b16 %v332, %v331
        %v367 = vpack.c.b16 %v334, %v333
        %v368 = vpack.c.b16 %v336, %v335
        %v369 = vpack.c.b16 %v338, %v337
        %v370 = vpack.c.b16 %v340, %v339
        %v371 = vpack.c.b16 %v342, %v341
        %v372 = vpack.c.b16 %v344, %v343
        %v373 = vpack.c.b16 %v346, %v345
        %v374 = vpack.c.b16 %v348, %v347
        %v375 = vpack.c.b16 %v350, %v349
        %v376 = vpack.c.b16 %v352, %v351
        %v377 = vpack.c.b16 %v354, %v353
        %v378 = vpack.c.b16 %v356, %v355
        %v379 = vpack.c.b16 %v358, %v357
        %v380 = vpack.c.b16 %v360, %v359
        %v381 = vpack.c.b16 %v362, %v361
        %v382 = vpack.c.b16 %v364, %v363
        %vm401 = vcmask 261120
        %v403 = vsel %vm401, %v285, 0
        %v406 = vsel %vm401, %v288, 0
        %408 = vmatprep.subr.bf16.mxu0 0
        %409 = vmatpush1.bf16.msra.mxu0 %v365
        %410 = vmatprep.subr.bf16.mxu0 0
        %411 = vmatpush1.bf16.msra.mxu0 %v366
        %412 = vmatprep.subr.bf16.mxu0 0
        %413 = vmatpush1.bf16.msra.mxu0 %v367
        %414 = vmatprep.subr.bf16.mxu0 0
        %415 = vmatpush1.bf16.msra.mxu0 %v368
        %416 = vmatprep.subr.bf16.mxu0 0
        %417 = vmatpush1.bf16.msra.mxu0 %v369
        %418 = vmatprep.subr.bf16.mxu0 0
        %419 = vmatpush1.bf16.msra.mxu0 %v370
        %420 = vmatprep.subr.bf16.mxu0 0
        %421 = vmatpush1.bf16.msra.mxu0 %v371
        %422 = vmatprep.subr.bf16.mxu0 0
        %423 = vmatpush1.bf16.msra.mxu0 %v372
        %424 = vmatprep.subr.bf16.mxu0 0
        %425 = vmatpush1.bf16.msra.mxu0 %v373
        %426 = vmatprep.subr.bf16.mxu0 0
        %427 = vmatpush1.bf16.msra.mxu0 %v374
        %428 = vmatprep.subr.bf16.mxu0 0
        %429 = vmatpush1.bf16.msra.mxu0 %v375
        %430 = vmatprep.subr.bf16.mxu0 0
        %431 = vmatpush1.bf16.msra.mxu0 %v376
        %432 = vmatprep.subr.bf16.mxu0 0
        %433 = vmatpush1.bf16.msra.mxu0 %v377
        %434 = vmatprep.subr.bf16.mxu0 0
        %435 = vmatpush1.bf16.msra.mxu0 %v378
        %436 = vmatprep.subr.bf16.mxu0 0
        %437 = vmatpush1.bf16.msra.mxu0 %v379
        %438 = vmatprep.subr.bf16.mxu0 0
        %439 = vmatpush1.bf16.msra.mxu0 %v380
        %440 = vmatprep.mubr.bf16.mxu0 %v284
        %441 = vmatmul.mubr.bf16.gmra.mrb[0].mxu0 %v283
        %v442 = vpop.f32.mrb[0].mxu0
        %v443 = vadd.f32 0.0, %v442
        %v444 = vpop.f32.mrb[0].mxu0
        %v445 = vpop.f32.mrb[0].mxu0
        %v446 = vadd.f32 0.0, %v445
        %v447 = vpop.f32.mrb[0].mxu0
        %448 = vmatprep.mubr.bf16.mxu0 %v287
        %449 = vmatmul.mubr.bf16.gmra.mrb[0].mxu0 %v286
        %v450 = vpop.f32.mrb[0].mxu0
        %v451 = vadd.f32 0.0, %v450
        %v452 = vpop.f32.mrb[0].mxu0
        %v453 = vpop.f32.mrb[0].mxu0
        %v454 = vadd.f32 0.0, %v453
        %v455 = vpop.f32.mrb[0].mxu0
        %456 = vdwg.mxu0
        %457 = vmatprep.subr.bf16.mxu0 0
        %458 = vmatpush1.bf16.msra.mxu0 %v381
        %459 = vmatprep.subr.bf16.mxu0 0
        %460 = vmatpush1.bf16.msra.mxu0 %v382
        %461 = vmatprep.subr.bf16.mxu0 0
        %462 = vmatpush1.bf16.msra.mxu0 0
        %463 = vmatprep.subr.bf16.mxu0 0
        %464 = vmatpush1.bf16.msra.mxu0 0
        %465 = vmatprep.subr.bf16.mxu0 0
        %466 = vmatpush1.bf16.msra.mxu0 0
        %467 = vmatprep.subr.bf16.mxu0 0
        %468 = vmatpush1.bf16.msra.mxu0 0
        %469 = vmatprep.subr.bf16.mxu0 0
        %470 = vmatpush1.bf16.msra.mxu0 0
        %471 = vmatprep.subr.bf16.mxu0 0
        %472 = vmatpush1.bf16.msra.mxu0 0
        %473 = vmatprep.subr.bf16.mxu0 0
        %474 = vmatpush1.bf16.msra.mxu0 0
        %475 = vmatprep.subr.bf16.mxu0 0
        %476 = vmatpush1.bf16.msra.mxu0 0
        %477 = vmatprep.subr.bf16.mxu0 0
        %478 = vmatpush1.bf16.msra.mxu0 0
        %479 = vmatprep.subr.bf16.mxu0 0
        %480 = vmatpush1.bf16.msra.mxu0 0
        %481 = vmatprep.subr.bf16.mxu0 0
        %482 = vmatpush1.bf16.msra.mxu0 0
        %483 = vmatprep.subr.bf16.mxu0 0
        %484 = vmatpush1.bf16.msra.mxu0 0
        %485 = vmatprep.subr.bf16.mxu0 0
        %486 = vmatpush1.bf16.msra.mxu0 0
        %487 = vmatprep.subr.bf16.mxu0 0
        %488 = vmatpush1.bf16.msra.mxu0 0
        %489 = vmatprep.mubr.bf16.mxu0 0
        %490 = vmatmul.mubr.bf16.gmra.mrb[0].mxu0 %v403
        %v491 = vpop.f32.mrb[0].mxu0
        %v492 = vadd.f32 %v443, %v491
        %v493 = vpop.f32.mrb[0].mxu0
        %v494 = vpop.f32.mrb[0].mxu0
        %v495 = vadd.f32 %v446, %v494
        %v496 = vpop.f32.mrb[0].mxu0
        %497 = vmatprep.mubr.bf16.mxu0 0
        %498 = vmatmul.mubr.bf16.gmra.mrb[0].mxu0 %v406
        %v499 = vpop.f32.mrb[0].mxu0
        %v500 = vadd.f32 %v451, %v499
        %v501 = vpop.f32.mrb[0].mxu0
        %v502 = vpop.f32.mrb[0].mxu0
        %v503 = vadd.f32 %v454, %v502
        %v504 = vpop.f32.mrb[0].mxu0
        %505 = vdwg.mxu0
        %vm506 = vcmask 130048
        %v507 = vsel %vm506, %v492, 0.0
        %508 = vadd.xlane.f32.xlu0 %v507
        %v509 = vpop.xlane.xlu0 %508
        %v510 = vsel %vm506, %v495, 0.0
        %511 = vadd.xlane.f32.xlu0 %v510
        %v512 = vpop.xlane.xlu0 %511
        %v513 = vsel %vm506, %v500, 0.0
        %514 = vadd.xlane.f32.xlu0 %v513
        %v515 = vpop.xlane.xlu0 %514
        %v516 = vsel %vm506, %v503, 0.0
        %517 = vadd.xlane.f32.xlu0 %v516
        %v518 = vpop.xlane.xlu0 %517
        %v519 = vrcp.pop 16.0
        %v520 = vmul.f32 %v509, %v519
        %v521 = vmul.f32 %v512, %v519
        %v522 = vmul.f32 %v515, %v519
        %v523 = vmul.f32 %v518, %v519
        %v524 = vsub.f32 %v492, %v520
        %v525 = vsub.f32 %v495, %v521
        %v526 = vsub.f32 %v500, %v522
        %v527 = vsub.f32 %v503, %v523
        %v528 = vmul.f32 %v524, %v524
        %v529 = vmul.f32 %v525, %v525
        %v530 = vmul.f32 %v526, %v526
        %v531 = vmul.f32 %v527, %v527
        %v532 = vsel %vm506, %v528, 0.0
        %533 = vadd.xlane.f32.xlu0 %v532
        %v534 = vpop.xlane.xlu0 %533
        %v535 = vsel %vm506, %v529, 0.0
        %536 = vadd.xlane.f32.xlu0 %v535
        %v537 = vpop.xlane.xlu0 %536
        %v538 = vsel %vm506, %v530, 0.0
        %539 = vadd.xlane.f32.xlu0 %v538
        %v540 = vpop.xlane.xlu0 %539
        %v541 = vsel %vm506, %v531, 0.0
        %542 = vadd.xlane.f32.xlu0 %v541
        %v543 = vpop.xlane.xlu0 %542
        %v544 = vmul.f32 %v534, %v519
        %v545 = vmul.f32 %v537, %v519
        %v546 = vmul.f32 %v540, %v519
        %v547 = vmul.f32 %v543, %v519
        %v548 = vadd.f32 %v544, 1e-05
        %v549 = vadd.f32 %v545, 1e-05
        %v550 = vadd.f32 %v546, 1e-05
        %v551 = vadd.f32 %v547, 1e-05
        %v552 = vrsqrt.pop %v548
        %v553 = vrsqrt.pop %v549
        %v554 = vrsqrt.pop %v550
        %v555 = vrsqrt.pop %v551
        %v556 = vmul.f32 %v524, %v552
        %v557 = vmul.f32 %v525, %v553
        %v558 = vmul.f32 %v526, %v554
        %v559 = vmul.f32 %v527, %v555
        %v560 = vmax.f32 %v556, 0.0
        %v561 = vmax.f32 %v557, 0.0
        %v562 = vmax.f32 %v558, 0.0
        %v563 = vmax.f32 %v559, 0.0
        %564 = vst.msk [vmem:[%s217] sm:$0xff] %vm506, %v560
        %565 = vst.msk [vmem:[%s217 + $0x8] sm:$0xff] %vm506, %v561
        %566 = vst.msk [vmem:[%s217 + $0x10] sm:$0xff] %vm506, %v562
        %567 = vst.msk [vmem:[%s217 + $0x18] sm:$0xff] %vm506, %v563
        %s568 = sand.u32 %s97, 1
        %s569 = scalar_lea.sflag [#allocation4], %s568
        %s570 = sand.u32 %s97, 1
        %s571 = smul.addr %s570, 32
        %s572 = scalar_lea.vmem [#allocation8], %s571
        // Predicated region
        $region45: #{_lambda_.13} parent=31 // pred_check
          %p573 = pneg %p107
        $region46: #{_lambda_.13} parent=31 // pred_check_branch
          %575 = sbr.rel (%p573) target = $region48
        $region47: #{_lambda_.13} parent=31 // pred_region
          %s577 = ssub.s32 512, 512
          %578 = vsyncadd %s569, %s577
          %s579 = smul.addr %s21, 4
          %s580 = smul.addr %s579, 128
          %s581 = scalar_lea.hbm %s3, %s580
          %s582 = sshll.u32 %s572, 4
          %s583 = int_to_ptr.vmem [resolvable:$true] %s582
          %588 = dma.vmem_to_hbm [thread:$0]  %s583, 512, %s581, %s569, 128, 128, 8
        $region48: #{_lambda_.13} parent=31 // pred_fallthru
          _
      $region32: #{_lambda_.13} parent=5 // pred_fallthru
        _
      %p589 = scmp.le.s32.totalorder 2, %s16
      // Predicated region
      $region49: #{_lambda_.13} parent=5 // pred_check
        %p590 = pneg %p589
      $region50: #{_lambda_.13} parent=5 // pred_check_branch
        %592 = sbr.rel (%p590) target = $region52
      $region51: #{_lambda_.13} parent=5 // pred_region
        %s593 = ssub.s32 %s16, 2
        // Predicated region
        $region53: #{_lambda_.13} parent=51 // pred_check
          %p594 = pneg %p113
        $region54: #{_lambda_.13} parent=51 // pred_check_branch
          %596 = sbr.rel (%p594) target = $region56
        $region55: #{_lambda_.13} parent=51 // pred_region
          %s597 = sand.u32 %s98, 1
          %s598 = scalar_lea.sflag [#allocation4], %s597
          %s599 = sand.u32 %s98, 1
          %s600 = smul.addr %s599, 32
          %s601 = scalar_lea.vmem [#allocation8], %s600
          %602 = dma.done %s598, 512
        $region56: #{_lambda_.13} parent=51 // pred_fallthru
          _
      $region52: #{_lambda_.13} parent=5 // pred_fallthru
        _
    $region6: #{_lambda_.13} parent=1 // loop_footer
      %s20 = sadd.s32 1, %s16
    $region7: #{_lambda_.13} parent=1 // loop_footer_branch
      %15 = sbr.rel target = $region3
    $region8: #{_lambda_.13} parent=1 // loop_exit
      _
    %603 = vsyncpa [#allocation3], 1
    %s604 = scalar_lea.sflag [#allocation3], 1
    %605 = vsyncpa %s604, 1
    %606 = vsyncpa [#allocation6], 1
    %s607 = scalar_lea.sflag [#allocation6], 1
    %608 = vsyncpa %s607, 1
    %609 = vsyncpa [#allocation4], 1
    %s610 = scalar_lea.sflag [#allocation4], 1
    %611 = vsyncpa %s610, 1

// kernel: _lambda_.14
$region0: #{_lambda_.14}
  #allocation0 [shape = 'u32[]', space=smem, size = 0x4, offset = 0x4, fixed_abs, tag = 'smem constant byte address 0x4 - core index']
  #allocation1 [shape = 'u32[144,128]{1,0:T(1,128)}', space=vmem, size = 0x12000, scoped, tag = 'internal scratch']
  %s0 = inlined_call_operand.hbm [shape: bf16[1,32,288], index: 0, kind: input, shape index: {}]
  %s1 = inlined_call_operand.hbm [shape: bf16[2,1,288,16], index: 1, kind: input, shape index: {}]
  %s2 = inlined_call_operand.hbm [shape: f32[32,1], index: 2, kind: input, shape index: {}]
  %s3 = inlined_call_operand.hbm [shape: f32[2,32,16], index: 3, kind: input, shape index: {}]
  %s4 = inlined_call_operand.hbm [shape: f32[2,32,16], index: 4, kind: output, shape index: {}]
  %s5 = sld [smem:[#allocation0]]
  $region65: #{_lambda_.14} parent=0
    _
  %s7 = ssub.s32 1, %s5
  %s8 = scalar_select 0, %s7, %s5
  $region1: #{_lambda_.14} parent=0
    #allocation2 [shape = 'u8[24576]{0}', space=vmem, size = 0x6000, scoped, tag = 'input window, operand 0, single buffered']
    #allocation3 [shape = 's32[2]{0}', space=sflag, size = 0x8, scoped, tag = 'scoped memory for _lambda_.14']
    #allocation4 [shape = 's32[2]{0}', space=sflag, size = 0x8, scoped, tag = 'scoped memory for _lambda_.14']
    #allocation5 [shape = 'u8[147456]{0}', space=vmem, size = 0x24000, scoped, tag = 'input window, operand 1']
    #allocation6 [shape = 's32[2]{0}', space=sflag, size = 0x8, scoped, tag = 'scoped memory for _lambda_.14']
    #allocation7 [shape = 'u8[16384]{0}', space=vmem, size = 0x4000, scoped, tag = 'input window, operand 2, single buffered']
    #allocation8 [shape = 'u8[32768]{0}', space=vmem, size = 0x8000, scoped, tag = 'input window, operand 3']
    #allocation9 [shape = 's32[2]{0}', space=sflag, size = 0x8, scoped, tag = 'scoped memory for _lambda_.14']
    #allocation10 [shape = 'u8[32768]{0}', space=vmem, size = 0x8000, scoped, tag = 'output window, operand 0']
    %9 = vsyncpa [#allocation3], 0
    %10 = vsyncpa [#allocation6], 0
    %s11 = scalar_lea.sflag [#allocation6], 1
    %12 = vsyncpa %s11, 0
    %13 = vsyncpa [#allocation9], 0
    %s14 = scalar_lea.sflag [#allocation9], 1
    %15 = vsyncpa %s14, 0
    %16 = vsyncpa [#allocation4], 0
    %s17 = scalar_lea.sflag [#allocation4], 1
    %18 = vsyncpa %s17, 0
    loop: start=0, step=1, limit=4
    $region2: #{_lambda_.14} parent=1 // loop_pre_header
      _
    $region3: #{_lambda_.14} parent=1 // loop_header
      %s20 = sphi 0, %s24
      %p21 = scmp.ge.s32.totalorder %s20, 4
      %s28 = sphi 0, %s28
      %s30 = sphi 0, %s28
      %s31 = sphi 0, %s30
      %s45 = sphi 0, %s31
      %s51 = sphi 0, %s53
      %s54 = sphi 0, %s51
      %s55 = sphi 0, %s54
      %s71 = sphi 0, %s55
      %s75 = sphi 0, %s75
      %s77 = sphi 0, %s75
      %s78 = sphi 0, %s77
      %s92 = sphi 0, %s78
      %s98 = sphi 0, %s100
      %s101 = sphi 0, %s98
      %s102 = sphi 0, %s101
      %s118 = sphi 0, %s102
      %s124 = sphi 0, %s126
      %s127 = sphi 0, %s124
      %s128 = sphi 0, %s127
      %s144 = sphi 0, %s128
    $region4: #{_lambda_.14} parent=1 // loop_header_branch
      %23 = sbr.rel (%p21) target = $region8
    $region5: #{_lambda_.14} parent=1 // loop_body
      %s25 = ssub.s32 %s20, 1
      %s26 = ssub.s32 %s20, 2
      %s27 = sadd.s32 %s20, 1
      %s29 = sadd.s32 %s28, 1
      %p32 = scmp.eq.s32.totalorder %s20, 1
      %p33 = scmp.ne.s32.totalorder %s28, %s30
      %p34 = scmp.eq.s32.totalorder %s20, 0
      %p35 = por %p33, %p34
      %p36 = scmp.ne.s32.totalorder %s28, %s30
      %p37 = scmp.eq.s32.totalorder %s25, 1
      %p38 = por %p36, %p37
      %p39 = scmp.ne.s32.totalorder %s30, %s31
      %p40 = scmp.eq.s32.totalorder %s25, 0
      %p41 = por %p39, %p40
      %p42 = scmp.ne.s32.totalorder %s30, %s31
      %p43 = scmp.eq.s32.totalorder %s26, 1
      %p44 = por %p42, %p43
      %p46 = scmp.ne.s32.totalorder %s31, %s45
      %p47 = scmp.eq.s32.totalorder %s26, 0
      %p48 = por %p46, %p47
      %s49 = ssub.s32 %s20, %s27
      %p50 = scmp.eq.s32.totalorder %s49, 0
      %s52 = sadd.s32 %s51, 1
      %s53 = scalar_select %p50, %s51, %s52
      %p56 = pneg %p50
      %p57 = scmp.eq.s32.totalorder %s20, 1
      %p58 = por %p56, %p57
      %p59 = scmp.ne.s32.totalorder %s51, %s54
      %p60 = scmp.eq.s32.totalorder %s20, 0
      %p61 = por %p59, %p60
      %p62 = scmp.ne.s32.totalorder %s51, %s54
      %p63 = scmp.eq.s32.totalorder %s25, 1
      %p64 = por %p62, %p63
      %p65 = scmp.ne.s32.totalorder %s54, %s55
      %p66 = scmp.eq.s32.totalorder %s25, 0
      %p67 = por %p65, %p66
      %p68 = scmp.ne.s32.totalorder %s54, %s55
      %p69 = scmp.eq.s32.totalorder %s26, 1
      %p70 = por %p68, %p69
      %p72 = scmp.ne.s32.totalorder %s55, %s71
      %p73 = scmp.eq.s32.totalorder %s26, 0
      %p74 = por %p72, %p73
      %s76 = sadd.s32 %s75, 1
      %p79 = scmp.eq.s32.totalorder %s20, 1
      %p80 = scmp.ne.s32.totalorder %s75, %s77
      %p81 = scmp.eq.s32.totalorder %s20, 0
      %p82 = por %p80, %p81
      %p83 = scmp.ne.s32.totalorder %s75, %s77
      %p84 = scmp.eq.s32.totalorder %s25, 1
      %p85 = por %p83, %p84
      %p86 = scmp.ne.s32.totalorder %s77, %s78
      %p87 = scmp.eq.s32.totalorder %s25, 0
      %p88 = por %p86, %p87
      %p89 = scmp.ne.s32.totalorder %s77, %s78
      %p90 = scmp.eq.s32.totalorder %s26, 1
      %p91 = por %p89, %p90
      %p93 = scmp.ne.s32.totalorder %s78, %s92
      %p94 = scmp.eq.s32.totalorder %s26, 0
      %p95 = por %p93, %p94
      %s96 = ssub.s32 %s20, %s27
      %p97 = scmp.eq.s32.totalorder %s96, 0
      %s99 = sadd.s32 %s98, 1
      %s100 = scalar_select %p97, %s98, %s99
      %p103 = pneg %p97
      %p104 = scmp.eq.s32.totalorder %s20, 1
      %p105 = por %p103, %p104
      %p106 = scmp.ne.s32.totalorder %s98, %s101
      %p107 = scmp.eq.s32.totalorder %s20, 0
      %p108 = por %p106, %p107
      %p109 = scmp.ne.s32.totalorder %s98, %s101
      %p110 = scmp.eq.s32.totalorder %s25, 1
      %p111 = por %p109, %p110
      %p112 = scmp.ne.s32.totalorder %s101, %s102
      %p113 = scmp.eq.s32.totalorder %s25, 0
      %p114 = por %p112, %p113
      %p115 = scmp.ne.s32.totalorder %s101, %s102
      %p116 = scmp.eq.s32.totalorder %s26, 1
      %p117 = por %p115, %p116
      %p119 = scmp.ne.s32.totalorder %s102, %s118
      %p120 = scmp.eq.s32.totalorder %s26, 0
      %p121 = por %p119, %p120
      %s122 = ssub.s32 %s20, %s27
      %p123 = scmp.eq.s32.totalorder %s122, 0
      %s125 = sadd.s32 %s124, 1
      %s126 = scalar_select %p123, %s124, %s125
      %p129 = pneg %p123
      %p130 = scmp.eq.s32.totalorder %s20, 1
      %p131 = por %p129, %p130
      %p132 = scmp.ne.s32.totalorder %s124, %s127
      %p133 = scmp.eq.s32.totalorder %s20, 0
      %p134 = por %p132, %p133
      %p135 = scmp.ne.s32.totalorder %s124, %s127
      %p136 = scmp.eq.s32.totalorder %s25, 1
      %p137 = por %p135, %p136
      %p138 = scmp.ne.s32.totalorder %s127, %s128
      %p139 = scmp.eq.s32.totalorder %s25, 0
      %p140 = por %p138, %p139
      %p141 = scmp.ne.s32.totalorder %s127, %s128
      %p142 = scmp.eq.s32.totalorder %s26, 1
      %p143 = por %p141, %p142
      %p145 = scmp.ne.s32.totalorder %s128, %s144
      %p146 = scmp.eq.s32.totalorder %s26, 0
      %p147 = por %p145, %p146
      %p148 = scmp.le.s32.totalorder 1, %s20
      %p149 = scmp.lt.s32.totalorder %s20, 3
      %p150 = pnand %p148, %p149
      %p151 = pneg %p150
      // Predicated region
      $region9: #{_lambda_.14} parent=5 // pred_check
        _
      $region10: #{_lambda_.14} parent=5 // pred_check_branch
        %153 = sbr.rel (%p150) target = $region12
      $region11: #{_lambda_.14} parent=5 // pred_region
        %s154 = ssub.s32 %s20, 1
        // Predicated region
        $region13: #{_lambda_.14} parent=11 // pred_check
          %p155 = pneg %p41
        $region14: #{_lambda_.14} parent=11 // pred_check_branch
          %157 = sbr.rel (%p155) target = $region16
        $region15: #{_lambda_.14} parent=11 // pred_region
          %s159 = ssub.s32 768, 768
          %160 = vsyncadd [#allocation3], %s159
          %s161 = sshll.u32 [#allocation2], 4
          %s162 = int_to_ptr.vmem [resolvable:$true] %s161
          %167 = dma.hbm_to_vmem [thread:$0]  %s0, 768, %s162, [#allocation3], 192, 192, 12
        $region16: #{_lambda_.14} parent=11 // pred_fallthru
          _
        // Predicated region
        $region17: #{_lambda_.14} parent=11 // pred_check
          %p168 = pneg %p88
        $region18: #{_lambda_.14} parent=11 // pred_check_branch
          %170 = sbr.rel (%p168) target = $region20
        $region19: #{_lambda_.14} parent=11 // pred_region
          %s172 = ssub.s32 512, 512
          %173 = vsyncadd [#allocation6], %s172
          %s174 = sshll.u32 [#allocation7], 4
          %s175 = int_to_ptr.vmem [resolvable:$true] %s174
          %180 = dma.hbm_to_vmem [thread:$0]  %s2, 512, %s175, [#allocation6], 128, 128, 8
        $region20: #{_lambda_.14} parent=11 // pred_fallthru
          _
      $region12: #{_lambda_.14} parent=5 // pred_fallthru
        _
      %p181 = scmp.lt.s32.totalorder %s20, 2
      // Predicated region
      $region21: #{_lambda_.14} parent=5 // pred_check
        %p182 = pneg %p181
      $region22: #{_lambda_.14} parent=5 // pred_check_branch
        %184 = sbr.rel (%p182) target = $region24
      $region23: #{_lambda_.14} parent=5 // pred_region
        // Predicated region
        $region25: #{_lambda_.14} parent=23 // pred_check
          %p185 = pneg %p61
        $region26: #{_lambda_.14} parent=23 // pred_check_branch
          %187 = sbr.rel (%p185) target = $region28
        $region27: #{_lambda_.14} parent=23 // pred_region
          %s188 = sand.u32 %s20, 1
          %s189 = scalar_lea.sflag [#allocation6], %s188
          %s190 = sand.u32 %s51, 1
          %s191 = smul.addr %s190, 144
          %s192 = scalar_lea.vmem [#allocation5], %s191
          %s194 = ssub.s32 2304, 2304
          %195 = vsyncadd %s189, %s194
          %s196 = smul.addr %s20, 36
          %s197 = smul.addr %s196, 64
          %s198 = scalar_lea.hbm %s1, %s197
          %s199 = sshll.u32 %s192, 4
          %s200 = int_to_ptr.vmem [resolvable:$true] %s199
          %205 = dma.hbm_to_vmem [thread:$0]  %s198, 2304, %s200, %s189, 64, 64, 4
        $region28: #{_lambda_.14} parent=23 // pred_fallthru
          _
        // Predicated region
        $region29: #{_lambda_.14} parent=23 // pred_check
          %p206 = pneg %p108
        $region30: #{_lambda_.14} parent=23 // pred_check_branch
          %208 = sbr.rel (%p206) target = $region32
        $region31: #{_lambda_.14} parent=23 // pred_region
          %s209 = sand.u32 %s98, 1
          %s210 = scalar_lea.sflag [#allocation9], %s209
          %s211 = sand.u32 %s98, 1
          %s212 = smul.addr %s211, 32
          %s213 = scalar_lea.vmem [#allocation8], %s212
          %s215 = ssub.s32 512, 512
          %216 = vsyncadd %s210, %s215
          %s217 = smul.addr %s20, 4
          %s218 = smul.addr %s217, 128
          %s219 = scalar_lea.hbm %s3, %s218
          %s220 = sshll.u32 %s213, 4
          %s221 = int_to_ptr.vmem [resolvable:$true] %s220
          %226 = dma.hbm_to_vmem [thread:$0]  %s219, 512, %s221, %s210, 128, 128, 8
        $region32: #{_lambda_.14} parent=23 // pred_fallthru
          _
      $region24: #{_lambda_.14} parent=5 // pred_fallthru
        _
      %p227 = scmp.le.s32.totalorder 1, %s20
      %p228 = scmp.lt.s32.totalorder %s20, 3
      %p229 = pnand %p227, %p228
      %p230 = pneg %p229
      // Predicated region
      $region33: #{_lambda_.14} parent=5 // pred_check
        _
      $region34: #{_lambda_.14} parent=5 // pred_check_branch
        %232 = sbr.rel (%p229) target = $region36
      $region35: #{_lambda_.14} parent=5 // pred_region
        %s233 = ssub.s32 %s20, 1
        // Predicated region
        $region37: #{_lambda_.14} parent=35 // pred_check
          %p234 = pneg %p41
        $region38: #{_lambda_.14} parent=35 // pred_check_branch
          %236 = sbr.rel (%p234) target = $region40
        $region39: #{_lambda_.14} parent=35 // pred_region
          %237 = dma.done [#allocation3], 768
        $region40: #{_lambda_.14} parent=35 // pred_fallthru
          _
        %s238 = sand.u32 %s25, 1
        %s239 = scalar_lea.sflag [#allocation6], %s238
        %s240 = sand.u32 %s54, 1
        %s241 = smul.addr %s240, 144
        %s242 = scalar_lea.vmem [#allocation5], %s241
        // Predicated region
        $region41: #{_lambda_.14} parent=35 // pred_check
          %p243 = pneg %p67
        $region42: #{_lambda_.14} parent=35 // pred_check_branch
          %245 = sbr.rel (%p243) target = $region44
        $region43: #{_lambda_.14} parent=35 // pred_region
          %246 = dma.done %s239, 2304
        $region44: #{_lambda_.14} parent=35 // pred_fallthru
          _
        // Predicated region
        $region45: #{_lambda_.14} parent=35 // pred_check
          %p247 = pneg %p88
        $region46: #{_lambda_.14} parent=35 // pred_check_branch
          %249 = sbr.rel (%p247) target = $region48
        $region47: #{_lambda_.14} parent=35 // pred_region
          %250 = dma.done [#allocation6], 512
        $region48: #{_lambda_.14} parent=35 // pred_fallthru
          _
        %s251 = sand.u32 %s101, 1
        %s252 = scalar_lea.sflag [#allocation9], %s251
        %s253 = sand.u32 %s101, 1
        %s254 = smul.addr %s253, 32
        %s255 = scalar_lea.vmem [#allocation8], %s254
        // Predicated region
        $region49: #{_lambda_.14} parent=35 // pred_check
          %p256 = pneg %p114
        $region50: #{_lambda_.14} parent=35 // pred_check_branch
          %258 = sbr.rel (%p256) target = $region52
        $region51: #{_lambda_.14} parent=35 // pred_region
          %259 = dma.done %s252, 512
        $region52: #{_lambda_.14} parent=35 // pred_fallthru
          _
        %p260 = pneg %p41
        %p261 = pneg %p38
        %s262 = sand.u32 %s25, 1
        %s263 = scalar_lea.sflag [#allocation6], %s262
        %s264 = sand.u32 %s54, 1
        %s265 = smul.addr %s264, 144
        %s266 = scalar_lea.vmem [#allocation5], %s265
        %p267 = pneg %p67
        %p268 = pneg %p64
        %p269 = pneg %p88
        %p270 = pneg %p85
        %s271 = sand.u32 %s101, 1
        %s272 = scalar_lea.sflag [#allocation9], %s271
        %s273 = sand.u32 %s101, 1
        %s274 = smul.addr %s273, 32
        %s275 = scalar_lea.vmem [#allocation8], %s274
        %p276 = pneg %p114
        %p277 = pneg %p111
        %p278 = pneg %p140
        %p279 = pneg %p137
        %s280 = sand.u32 %s127, 1
        %s281 = scalar_lea.sflag [#allocation4], %s280
        %s282 = sand.u32 %s127, 1
        %s283 = smul.addr %s282, 32
        %s284 = scalar_lea.vmem [#allocation10], %s283
        %v286 = vld [vmem:[#allocation2] sm:$0xff]
        %v287 = vld [vmem:[#allocation2 + $0x8] sm:$0xf]
        %v288 = vld [vmem:[#allocation2 + $0xc] sm:$0xff]
        %v289 = vld [vmem:[#allocation2 + $0x14] sm:$0xf]
        %v290 = vld [vmem:[#allocation2 + $0x18] sm:$0xff]
        %v291 = vld [vmem:[#allocation2 + $0x20] sm:$0xf]
        %v292 = vld [vmem:[#allocation2 + $0x24] sm:$0xff]
        %v293 = vld [vmem:[#allocation2 + $0x2c] sm:$0xf]
        %v294 = vld [vmem:[%s242] sm:$0xf]
        %v295 = vld [vmem:[%s242 + $0x4] sm:$0xf]
        %v296 = vld [vmem:[%s242 + $0x8] sm:$0xf]
        %v297 = vld [vmem:[%s242 + $0xc] sm:$0xf]
        %v298 = vld [vmem:[%s242 + $0x10] sm:$0xf]
        %v299 = vld [vmem:[%s242 + $0x14] sm:$0xf]
        %v300 = vld [vmem:[%s242 + $0x18] sm:$0xf]
        %v301 = vld [vmem:[%s242 + $0x1c] sm:$0xf]
        %v302 = vld [vmem:[%s242 + $0x20] sm:$0xf]
        %v303 = vld [vmem:[%s242 + $0x24] sm:$0xf]
        %v304 = vld [vmem:[%s242 + $0x28] sm:$0xf]
        %v305 = vld [vmem:[%s242 + $0x2c] sm:$0xf]
        %v306 = vld [vmem:[%s242 + $0x30] sm:$0xf]
        %v307 = vld [vmem:[%s242 + $0x34] sm:$0xf]
        %v308 = vld [vmem:[%s242 + $0x38] sm:$0xf]
        %v309 = vld [vmem:[%s242 + $0x3c] sm:$0xf]
        %v310 = vld [vmem:[%s242 + $0x40] sm:$0xf]
        %v311 = vld [vmem:[%s242 + $0x44] sm:$0xf]
        %v312 = vld [vmem:[%s242 + $0x48] sm:$0xf]
        %v313 = vld [vmem:[%s242 + $0x4c] sm:$0xf]
        %v314 = vld [vmem:[%s242 + $0x50] sm:$0xf]
        %v315 = vld [vmem:[%s242 + $0x54] sm:$0xf]
        %v316 = vld [vmem:[%s242 + $0x58] sm:$0xf]
        %v317 = vld [vmem:[%s242 + $0x5c] sm:$0xf]
        %v318 = vld [vmem:[%s242 + $0x60] sm:$0xf]
        %v319 = vld [vmem:[%s242 + $0x64] sm:$0xf]
        %v320 = vld [vmem:[%s242 + $0x68] sm:$0xf]
        %v321 = vld [vmem:[%s242 + $0x6c] sm:$0xf]
        %v322 = vld [vmem:[%s242 + $0x70] sm:$0xf]
        %v323 = vld [vmem:[%s242 + $0x74] sm:$0xf]
        %v324 = vld [vmem:[%s242 + $0x78] sm:$0xf]
        %v325 = vld [vmem:[%s242 + $0x7c] sm:$0xf]
        %v326 = vld [vmem:[%s242 + $0x80] sm:$0xf]
        %v327 = vld [vmem:[%s242 + $0x84] sm:$0xf]
        %v328 = vld [vmem:[%s242 + $0x88] sm:$0xf]
        %v329 = vld [vmem:[%s242 + $0x8c] sm:$0xf]
        %v338 = vunpack.c.l.b16 %v286
        %v339 = vunpack.c.h.b16 %v286
        %v340 = vunpack.c.l.b16 %v287
        %v341 = vunpack.c.l.b16 %v288
        %v342 = vunpack.c.h.b16 %v288
        %v343 = vunpack.c.l.b16 %v289
        %v344 = vunpack.c.l.b16 %v290
        %v345 = vunpack.c.h.b16 %v290
        %v346 = vunpack.c.l.b16 %v291
        %v347 = vunpack.c.l.b16 %v292
        %v348 = vunpack.c.h.b16 %v292
        %v349 = vunpack.c.l.b16 %v293
        %v350 = vpack.c.b16 %v341, %v338
        %v351 = vpack.c.b16 %v342, %v339
        %v352 = vpack.c.b16 %v343, %v340
        %v353 = vpack.c.b16 %v347, %v344
        %v354 = vpack.c.b16 %v348, %v345
        %v355 = vpack.c.b16 %v349, %v346
        %v396 = vunpack.c.l.b16 %v294
        %v397 = vunpack.c.l.b16 %v295
        %v398 = vunpack.c.l.b16 %v296
        %v399 = vunpack.c.l.b16 %v297
        %v400 = vunpack.c.l.b16 %v298
        %v401 = vunpack.c.l.b16 %v299
        %v402 = vunpack.c.l.b16 %v300
        %v403 = vunpack.c.l.b16 %v301
        %v404 = vunpack.c.l.b16 %v302
        %v405 = vunpack.c.l.b16 %v303
        %v406 = vunpack.c.l.b16 %v304
        %v407 = vunpack.c.l.b16 %v305
        %v408 = vunpack.c.l.b16 %v306
        %v409 = vunpack.c.l.b16 %v307
        %v410 = vunpack.c.l.b16 %v308
        %v411 = vunpack.c.l.b16 %v309
        %v412 = vunpack.c.l.b16 %v310
        %v413 = vunpack.c.l.b16 %v311
        %v414 = vunpack.c.l.b16 %v312
        %v415 = vunpack.c.l.b16 %v313
        %v416 = vunpack.c.l.b16 %v314
        %v417 = vunpack.c.l.b16 %v315
        %v418 = vunpack.c.l.b16 %v316
        %v419 = vunpack.c.l.b16 %v317
        %v420 = vunpack.c.l.b16 %v318
        %v421 = vunpack.c.l.b16 %v319
        %v422 = vunpack.c.l.b16 %v320
        %v423 = vunpack.c.l.b16 %v321
        %v424 = vunpack.c.l.b16 %v322
        %v425 = vunpack.c.l.b16 %v323
        %v426 = vunpack.c.l.b16 %v324
        %v427 = vunpack.c.l.b16 %v325
        %v428 = vunpack.c.l.b16 %v326
        %v429 = vunpack.c.l.b16 %v327
        %v430 = vunpack.c.l.b16 %v328
        %v431 = vunpack.c.l.b16 %v329
        %v432 = vpack.c.b16 %v397, %v396
        %v433 = vpack.c.b16 %v399, %v398
        %v434 = vpack.c.b16 %v401, %v400
        %v435 = vpack.c.b16 %v403, %v402
        %v436 = vpack.c.b16 %v405, %v404
        %v437 = vpack.c.b16 %v407, %v406
        %v438 = vpack.c.b16 %v409, %v408
        %v439 = vpack.c.b16 %v411, %v410
        %v440 = vpack.c.b16 %v413, %v412
        %v441 = vpack.c.b16 %v415, %v414
        %v442 = vpack.c.b16 %v417, %v416
        %v443 = vpack.c.b16 %v419, %v418
        %v444 = vpack.c.b16 %v421, %v420
        %v445 = vpack.c.b16 %v423, %v422
        %v446 = vpack.c.b16 %v425, %v424
        %v447 = vpack.c.b16 %v427, %v426
        %v448 = vpack.c.b16 %v429, %v428
        %v449 = vpack.c.b16 %v431, %v430
        %vm468 = vcmask 261120
        %v470 = vsel %vm468, %v352, 0
        %v473 = vsel %vm468, %v355, 0
        %475 = vmatprep.subr.bf16.mxu0 0
        %476 = vmatpush1.bf16.msra.mxu0 %v432
        %477 = vmatprep.subr.bf16.mxu0 0
        %478 = vmatpush1.bf16.msra.mxu0 %v433
        %479 = vmatprep.subr.bf16.mxu0 0
        %480 = vmatpush1.bf16.msra.mxu0 %v434
        %481 = vmatprep.subr.bf16.mxu0 0
        %482 = vmatpush1.bf16.msra.mxu0 %v435
        %483 = vmatprep.subr.bf16.mxu0 0
        %484 = vmatpush1.bf16.msra.mxu0 %v436
        %485 = vmatprep.subr.bf16.mxu0 0
        %486 = vmatpush1.bf16.msra.mxu0 %v437
        %487 = vmatprep.subr.bf16.mxu0 0
        %488 = vmatpush1.bf16.msra.mxu0 %v438
        %489 = vmatprep.subr.bf16.mxu0 0
        %490 = vmatpush1.bf16.msra.mxu0 %v439
        %491 = vmatprep.subr.bf16.mxu0 0
        %492 = vmatpush1.bf16.msra.mxu0 %v440
        %493 = vmatprep.subr.bf16.mxu0 0
        %494 = vmatpush1.bf16.msra.mxu0 %v441
        %495 = vmatprep.subr.bf16.mxu0 0
        %496 = vmatpush1.bf16.msra.mxu0 %v442
        %497 = vmatprep.subr.bf16.mxu0 0
        %498 = vmatpush1.bf16.msra.mxu0 %v443
        %499 = vmatprep.subr.bf16.mxu0 0
        %500 = vmatpush1.bf16.msra.mxu0 %v444
        %501 = vmatprep.subr.bf16.mxu0 0
        %502 = vmatpush1.bf16.msra.mxu0 %v445
        %503 = vmatprep.subr.bf16.mxu0 0
        %504 = vmatpush1.bf16.msra.mxu0 %v446
        %505 = vmatprep.subr.bf16.mxu0 0
        %506 = vmatpush1.bf16.msra.mxu0 %v447
        %507 = vmatprep.mubr.bf16.mxu0 %v351
        %508 = vmatmul.mubr.bf16.gmra.mrb[0].mxu0 %v350
        %v509 = vpop.f32.mrb[0].mxu0
        %v510 = vadd.f32 0.0, %v509
        %v511 = vpop.f32.mrb[0].mxu0
        %v512 = vpop.f32.mrb[0].mxu0
        %v513 = vadd.f32 0.0, %v512
        %v514 = vpop.f32.mrb[0].mxu0
        %515 = vmatprep.mubr.bf16.mxu0 %v354
        %516 = vmatmul.mubr.bf16.gmra.mrb[0].mxu0 %v353
        %v517 = vpop.f32.mrb[0].mxu0
        %v518 = vadd.f32 0.0, %v517
        %v519 = vpop.f32.mrb[0].mxu0
        %v520 = vpop.f32.mrb[0].mxu0
        %v521 = vadd.f32 0.0, %v520
        %v522 = vpop.f32.mrb[0].mxu0
        %523 = vdwg.mxu0
        %524 = vmatprep.subr.bf16.mxu0 0
        %525 = vmatpush1.bf16.msra.mxu0 %v448
        %526 = vmatprep.subr.bf16.mxu0 0
        %527 = vmatpush1.bf16.msra.mxu0 %v449
        %528 = vmatprep.subr.bf16.mxu0 0
        %529 = vmatpush1.bf16.msra.mxu0 0
        %530 = vmatprep.subr.bf16.mxu0 0
        %531 = vmatpush1.bf16.msra.mxu0 0
        %532 = vmatprep.subr.bf16.mxu0 0
        %533 = vmatpush1.bf16.msra.mxu0 0
        %534 = vmatprep.subr.bf16.mxu0 0
        %535 = vmatpush1.bf16.msra.mxu0 0
        %536 = vmatprep.subr.bf16.mxu0 0
        %537 = vmatpush1.bf16.msra.mxu0 0
        %538 = vmatprep.subr.bf16.mxu0 0
        %539 = vmatpush1.bf16.msra.mxu0 0
        %540 = vmatprep.subr.bf16.mxu0 0
        %541 = vmatpush1.bf16.msra.mxu0 0
        %542 = vmatprep.subr.bf16.mxu0 0
        %543 = vmatpush1.bf16.msra.mxu0 0
        %544 = vmatprep.subr.bf16.mxu0 0
        %545 = vmatpush1.bf16.msra.mxu0 0
        %546 = vmatprep.subr.bf16.mxu0 0
        %547 = vmatpush1.bf16.msra.mxu0 0
        %548 = vmatprep.subr.bf16.mxu0 0
        %549 = vmatpush1.bf16.msra.mxu0 0
        %550 = vmatprep.subr.bf16.mxu0 0
        %551 = vmatpush1.bf16.msra.mxu0 0
        %552 = vmatprep.subr.bf16.mxu0 0
        %553 = vmatpush1.bf16.msra.mxu0 0
        %554 = vmatprep.subr.bf16.mxu0 0
        %555 = vmatpush1.bf16.msra.mxu0 0
        %556 = vmatprep.mubr.bf16.mxu0 0
        %557 = vmatmul.mubr.bf16.gmra.mrb[0].mxu0 %v470
        %v558 = vpop.f32.mrb[0].mxu0
        %v559 = vadd.f32 %v510, %v558
        %v560 = vpop.f32.mrb[0].mxu0
        %v561 = vpop.f32.mrb[0].mxu0
        %v562 = vadd.f32 %v513, %v561
        %v563 = vpop.f32.mrb[0].mxu0
        %564 = vmatprep.mubr.bf16.mxu0 0
        %565 = vmatmul.mubr.bf16.gmra.mrb[0].mxu0 %v473
        %v566 = vpop.f32.mrb[0].mxu0
        %v567 = vadd.f32 %v518, %v566
        %v568 = vpop.f32.mrb[0].mxu0
        %v569 = vpop.f32.mrb[0].mxu0
        %v570 = vadd.f32 %v521, %v569
        %v571 = vpop.f32.mrb[0].mxu0
        %572 = vdwg.mxu0
        %vm573 = vcmask 130048
        %v574 = vsel %vm573, %v559, 0.0
        %575 = vadd.xlane.f32.xlu0 %v574
        %v576 = vpop.xlane.xlu0 %575
        %v577 = vsel %vm573, %v562, 0.0
        %578 = vadd.xlane.f32.xlu0 %v577
        %v579 = vpop.xlane.xlu0 %578
        %v580 = vsel %vm573, %v567, 0.0
        %581 = vadd.xlane.f32.xlu0 %v580
        %v582 = vpop.xlane.xlu0 %581
        %v583 = vsel %vm573, %v570, 0.0
        %584 = vadd.xlane.f32.xlu0 %v583
        %v585 = vpop.xlane.xlu0 %584
        %v586 = vrcp.pop 16.0
        %v587 = vmul.f32 %v576, %v586
        %v588 = vmul.f32 %v579, %v586
        %v589 = vmul.f32 %v582, %v586
        %v590 = vmul.f32 %v585, %v586
        %v591 = vsub.f32 %v559, %v587
        %v592 = vsub.f32 %v562, %v588
        %v593 = vsub.f32 %v567, %v589
        %v594 = vsub.f32 %v570, %v590
        %v595 = vmul.f32 %v591, %v591
        %v596 = vmul.f32 %v592, %v592
        %v597 = vmul.f32 %v593, %v593
        %v598 = vmul.f32 %v594, %v594
        %v599 = vsel %vm573, %v595, 0.0
        %600 = vadd.xlane.f32.xlu0 %v599
        %v601 = vpop.xlane.xlu0 %600
        %v602 = vsel %vm573, %v596, 0.0
        %603 = vadd.xlane.f32.xlu0 %v602
        %v604 = vpop.xlane.xlu0 %603
        %v605 = vsel %vm573, %v597, 0.0
        %606 = vadd.xlane.f32.xlu0 %v605
        %v607 = vpop.xlane.xlu0 %606
        %v608 = vsel %vm573, %v598, 0.0
        %609 = vadd.xlane.f32.xlu0 %v608
        %v610 = vpop.xlane.xlu0 %609
        %v611 = vmul.f32 %v601, %v586
        %v612 = vmul.f32 %v604, %v586
        %v613 = vmul.f32 %v607, %v586
        %v614 = vmul.f32 %v610, %v586
        %v615 = vadd.f32 %v611, 1e-05
        %v616 = vadd.f32 %v612, 1e-05
        %v617 = vadd.f32 %v613, 1e-05
        %v618 = vadd.f32 %v614, 1e-05
        %v619 = vrsqrt.pop %v615
        %v620 = vrsqrt.pop %v616
        %v621 = vrsqrt.pop %v617
        %v622 = vrsqrt.pop %v618
        %v623 = vmul.f32 %v591, %v619
        %v624 = vmul.f32 %v592, %v620
        %v625 = vmul.f32 %v593, %v621
        %v626 = vmul.f32 %v594, %v622
        %v627 = vld [vmem:[%s255] sm:$0xff]
        %v628 = vld [vmem:[%s255 + $0x8] sm:$0xff]
        %v629 = vld [vmem:[%s255 + $0x10] sm:$0xff]
        %v630 = vld [vmem:[%s255 + $0x18] sm:$0xff]
        %v631 = vadd.f32 %v623, %v627
        %v632 = vadd.f32 %v624, %v628
        %v633 = vadd.f32 %v625, %v629
        %v634 = vadd.f32 %v626, %v630
        %635 = vst.msk [vmem:[%s284] sm:$0xff] %vm573, %v631
        %636 = vst.msk [vmem:[%s284 + $0x8] sm:$0xff] %vm573, %v632
        %637 = vst.msk [vmem:[%s284 + $0x10] sm:$0xff] %vm573, %v633
        %638 = vst.msk [vmem:[%s284 + $0x18] sm:$0xff] %vm573, %v634
        %s639 = sand.u32 %s127, 1
        %s640 = scalar_lea.sflag [#allocation4], %s639
        %s641 = sand.u32 %s127, 1
        %s642 = smul.addr %s641, 32
        %s643 = scalar_lea.vmem [#allocation10], %s642
        // Predicated region
        $region53: #{_lambda_.14} parent=35 // pred_check
          %p644 = pneg %p137
        $region54: #{_lambda_.14} parent=35 // pred_check_branch
          %646 = sbr.rel (%p644) target = $region56
        $region55: #{_lambda_.14} parent=35 // pred_region
          %s648 = ssub.s32 512, 512
          %649 = vsyncadd %s640, %s648
          %s650 = smul.addr %s25, 4
          %s651 = smul.addr %s650, 128
          %s652 = scalar_lea.hbm %s4, %s651
          %s653 = sshll.u32 %s643, 4
          %s654 = int_to_ptr.vmem [resolvable:$true] %s653
          %659 = dma.vmem_to_hbm [thread:$0]  %s654, 512, %s652, %s640, 128, 128, 8
        $region56: #{_lambda_.14} parent=35 // pred_fallthru
          _
      $region36: #{_lambda_.14} parent=5 // pred_fallthru
        _
      %p660 = scmp.le.s32.totalorder 2, %s20
      // Predicated region
      $region57: #{_lambda_.14} parent=5 // pred_check
        %p661 = pneg %p660
      $region58: #{_lambda_.14} parent=5 // pred_check_branch
        %663 = sbr.rel (%p661) target = $region60
      $region59: #{_lambda_.14} parent=5 // pred_region
        %s664 = ssub.s32 %s20, 2
        // Predicated region
        $region61: #{_lambda_.14} parent=59 // pred_check
          %p665 = pneg %p143
        $region62: #{_lambda_.14} parent=59 // pred_check_branch
          %667 = sbr.rel (%p665) target = $region64
        $region63: #{_lambda_.14} parent=59 // pred_region
          %s668 = sand.u32 %s128, 1
          %s669 = scalar_lea.sflag [#allocation4], %s668
          %s670 = sand.u32 %s128, 1
          %s671 = smul.addr %s670, 32
          %s672 = scalar_lea.vmem [#allocation10], %s671
          %673 = dma.done %s669, 512
        $region64: #{_lambda_.14} parent=59 // pred_fallthru
          _
      $region60: #{_lambda_.14} parent=5 // pred_fallthru
        _
    $region6: #{_lambda_.14} parent=1 // loop_footer
      %s24 = sadd.s32 1, %s20
    $region7: #{_lambda_.14} parent=1 // loop_footer_branch
      %19 = sbr.rel target = $region3
    $region8: #{_lambda_.14} parent=1 // loop_exit
      _
    %674 = vsyncpa [#allocation3], 1
    %s675 = scalar_lea.sflag [#allocation3], 1
    %676 = vsyncpa %s675, 1
    %677 = vsyncpa [#allocation6], 1
    %s678 = scalar_lea.sflag [#allocation6], 1
    %679 = vsyncpa %s678, 1
    %680 = vsyncpa [#allocation9], 1
    %s681 = scalar_lea.sflag [#allocation9], 1
    %682 = vsyncpa %s681, 1
    %683 = vsyncpa [#allocation4], 1
    %s684 = scalar_lea.sflag [#allocation4], 1
    %685 = vsyncpa %s684, 1

// kernel: _lambda_.17
$region0: #{_lambda_.17}
  #allocation0 [shape = 'u32[]', space=smem, size = 0x4, offset = 0x4, fixed_abs, tag = 'smem constant byte address 0x4 - core index']
  #allocation1 [shape = 'u32[144,128]{1,0:T(1,128)}', space=vmem, size = 0x12000, scoped, tag = 'internal scratch']
  %s0 = inlined_call_operand.hbm [shape: bf16[4,16,128], index: 0, kind: input, shape index: {}]
  %s1 = inlined_call_operand.hbm [shape: bf16[2,4,128,16], index: 1, kind: input, shape index: {}]
  %s2 = inlined_call_operand.hbm [shape: f32[16,1], index: 2, kind: input, shape index: {}]
  %s3 = inlined_call_operand.hbm [shape: f32[2,16,64], index: 3, kind: output, shape index: {}]
  %s4 = sld [smem:[#allocation0]]
  $region57: #{_lambda_.17} parent=0
    _
  %s6 = ssub.s32 1, %s4
  %s7 = scalar_select 0, %s6, %s4
  $region1: #{_lambda_.17} parent=0
    #allocation2 [shape = 'u8[16384]{0}', space=vmem, size = 0x4000, scoped, tag = 'input window, operand 0, single buffered']
    #allocation3 [shape = 's32[2]{0}', space=sflag, size = 0x8, scoped, tag = 'scoped memory for _lambda_.17']
    #allocation4 [shape = 's32[2]{0}', space=sflag, size = 0x8, scoped, tag = 'scoped memory for _lambda_.17']
    #allocation5 [shape = 'u8[262144]{0}', space=vmem, size = 0x40000, scoped, tag = 'input window, operand 1']
    #allocation6 [shape = 's32[2]{0}', space=sflag, size = 0x8, scoped, tag = 'scoped memory for _lambda_.17']
    #allocation7 [shape = 'u8[8192]{0}', space=vmem, size = 0x2000, scoped, tag = 'input window, operand 2, single buffered']
    #allocation8 [shape = 'u8[16384]{0}', space=vmem, size = 0x4000, scoped, tag = 'output window, operand 0']
    %8 = vsyncpa [#allocation3], 0
    %9 = vsyncpa [#allocation6], 0
    %s10 = scalar_lea.sflag [#allocation6], 1
    %11 = vsyncpa %s10, 0
    %12 = vsyncpa [#allocation4], 0
    %s13 = scalar_lea.sflag [#allocation4], 1
    %14 = vsyncpa %s13, 0
    loop: start=0, step=1, limit=4
    $region2: #{_lambda_.17} parent=1 // loop_pre_header
      _
    $region3: #{_lambda_.17} parent=1 // loop_header
      %s16 = sphi 0, %s20
      %p17 = scmp.ge.s32.totalorder %s16, 4
      %s24 = sphi 0, %s24
      %s26 = sphi 0, %s24
      %s27 = sphi 0, %s26
      %s41 = sphi 0, %s27
      %s47 = sphi 0, %s49
      %s50 = sphi 0, %s47
      %s51 = sphi 0, %s50
      %s67 = sphi 0, %s51
      %s71 = sphi 0, %s71
      %s73 = sphi 0, %s71
      %s74 = sphi 0, %s73
      %s88 = sphi 0, %s74
      %s94 = sphi 0, %s96
      %s97 = sphi 0, %s94
      %s98 = sphi 0, %s97
      %s114 = sphi 0, %s98
    $region4: #{_lambda_.17} parent=1 // loop_header_branch
      %19 = sbr.rel (%p17) target = $region8
    $region5: #{_lambda_.17} parent=1 // loop_body
      %s21 = ssub.s32 %s16, 1
      %s22 = ssub.s32 %s16, 2
      %s23 = sadd.s32 %s16, 1
      %s25 = sadd.s32 %s24, 1
      %p28 = scmp.eq.s32.totalorder %s16, 1
      %p29 = scmp.ne.s32.totalorder %s24, %s26
      %p30 = scmp.eq.s32.totalorder %s16, 0
      %p31 = por %p29, %p30
      %p32 = scmp.ne.s32.totalorder %s24, %s26
      %p33 = scmp.eq.s32.totalorder %s21, 1
      %p34 = por %p32, %p33
      %p35 = scmp.ne.s32.totalorder %s26, %s27
      %p36 = scmp.eq.s32.totalorder %s21, 0
      %p37 = por %p35, %p36
      %p38 = scmp.ne.s32.totalorder %s26, %s27
      %p39 = scmp.eq.s32.totalorder %s22, 1
      %p40 = por %p38, %p39
      %p42 = scmp.ne.s32.totalorder %s27, %s41
      %p43 = scmp.eq.s32.totalorder %s22, 0
      %p44 = por %p42, %p43
      %s45 = ssub.s32 %s16, %s23
      %p46 = scmp.eq.s32.totalorder %s45, 0
      %s48 = sadd.s32 %s47, 1
      %s49 = scalar_select %p46, %s47, %s48
      %p52 = pneg %p46
      %p53 = scmp.eq.s32.totalorder %s16, 1
      %p54 = por %p52, %p53
      %p55 = scmp.ne.s32.totalorder %s47, %s50
      %p56 = scmp.eq.s32.totalorder %s16, 0
      %p57 = por %p55, %p56
      %p58 = scmp.ne.s32.totalorder %s47, %s50
      %p59 = scmp.eq.s32.totalorder %s21, 1
      %p60 = por %p58, %p59
      %p61 = scmp.ne.s32.totalorder %s50, %s51
      %p62 = scmp.eq.s32.totalorder %s21, 0
      %p63 = por %p61, %p62
      %p64 = scmp.ne.s32.totalorder %s50, %s51
      %p65 = scmp.eq.s32.totalorder %s22, 1
      %p66 = por %p64, %p65
      %p68 = scmp.ne.s32.totalorder %s51, %s67
      %p69 = scmp.eq.s32.totalorder %s22, 0
      %p70 = por %p68, %p69
      %s72 = sadd.s32 %s71, 1
      %p75 = scmp.eq.s32.totalorder %s16, 1
      %p76 = scmp.ne.s32.totalorder %s71, %s73
      %p77 = scmp.eq.s32.totalorder %s16, 0
      %p78 = por %p76, %p77
      %p79 = scmp.ne.s32.totalorder %s71, %s73
      %p80 = scmp.eq.s32.totalorder %s21, 1
      %p81 = por %p79, %p80
      %p82 = scmp.ne.s32.totalorder %s73, %s74
      %p83 = scmp.eq.s32.totalorder %s21, 0
      %p84 = por %p82, %p83
      %p85 = scmp.ne.s32.totalorder %s73, %s74
      %p86 = scmp.eq.s32.totalorder %s22, 1
      %p87 = por %p85, %p86
      %p89 = scmp.ne.s32.totalorder %s74, %s88
      %p90 = scmp.eq.s32.totalorder %s22, 0
      %p91 = por %p89, %p90
      %s92 = ssub.s32 %s16, %s23
      %p93 = scmp.eq.s32.totalorder %s92, 0
      %s95 = sadd.s32 %s94, 1
      %s96 = scalar_select %p93, %s94, %s95
      %p99 = pneg %p93
      %p100 = scmp.eq.s32.totalorder %s16, 1
      %p101 = por %p99, %p100
      %p102 = scmp.ne.s32.totalorder %s94, %s97
      %p103 = scmp.eq.s32.totalorder %s16, 0
      %p104 = por %p102, %p103
      %p105 = scmp.ne.s32.totalorder %s94, %s97
      %p106 = scmp.eq.s32.totalorder %s21, 1
      %p107 = por %p105, %p106
      %p108 = scmp.ne.s32.totalorder %s97, %s98
      %p109 = scmp.eq.s32.totalorder %s21, 0
      %p110 = por %p108, %p109
      %p111 = scmp.ne.s32.totalorder %s97, %s98
      %p112 = scmp.eq.s32.totalorder %s22, 1
      %p113 = por %p111, %p112
      %p115 = scmp.ne.s32.totalorder %s98, %s114
      %p116 = scmp.eq.s32.totalorder %s22, 0
      %p117 = por %p115, %p116
      %p118 = scmp.le.s32.totalorder 1, %s16
      %p119 = scmp.lt.s32.totalorder %s16, 3
      %p120 = pnand %p118, %p119
      %p121 = pneg %p120
      // Predicated region
      $region9: #{_lambda_.17} parent=5 // pred_check
        _
      $region10: #{_lambda_.17} parent=5 // pred_check_branch
        %123 = sbr.rel (%p120) target = $region12
      $region11: #{_lambda_.17} parent=5 // pred_region
        %s124 = ssub.s32 %s16, 1
        // Predicated region
        $region13: #{_lambda_.17} parent=11 // pred_check
          %p125 = pneg %p37
        $region14: #{_lambda_.17} parent=11 // pred_check_branch
          %127 = sbr.rel (%p125) target = $region16
        $region15: #{_lambda_.17} parent=11 // pred_region
          %s129 = ssub.s32 512, 512
          %130 = vsyncadd [#allocation3], %s129
          %s131 = sshll.u32 [#allocation2], 4
          %s132 = int_to_ptr.vmem [resolvable:$true] %s131
          %137 = dma.hbm_to_vmem [thread:$0]  %s0, 512, %s132, [#allocation3], 64, 64, 4
        $region16: #{_lambda_.17} parent=11 // pred_fallthru
          _
        // Predicated region
        $region17: #{_lambda_.17} parent=11 // pred_check
          %p138 = pneg %p84
        $region18: #{_lambda_.17} parent=11 // pred_check_branch
          %140 = sbr.rel (%p138) target = $region20
        $region19: #{_lambda_.17} parent=11 // pred_region
          %s142 = ssub.s32 256, 256
          %143 = vsyncadd [#allocation6], %s142
          %s144 = sshll.u32 [#allocation7], 4
          %s145 = int_to_ptr.vmem [resolvable:$true] %s144
          %150 = dma.hbm_to_vmem [thread:$0]  %s2, 256, %s145, [#allocation6], 128, 128, 8
        $region20: #{_lambda_.17} parent=11 // pred_fallthru
          _
      $region12: #{_lambda_.17} parent=5 // pred_fallthru
        _
      %p151 = scmp.lt.s32.totalorder %s16, 2
      // Predicated region
      $region21: #{_lambda_.17} parent=5 // pred_check
        %p152 = pneg %p151
      $region22: #{_lambda_.17} parent=5 // pred_check_branch
        %154 = sbr.rel (%p152) target = $region24
      $region23: #{_lambda_.17} parent=5 // pred_region
        // Predicated region
        $region25: #{_lambda_.17} parent=23 // pred_check
          %p155 = pneg %p57
        $region26: #{_lambda_.17} parent=23 // pred_check_branch
          %157 = sbr.rel (%p155) target = $region28
        $region27: #{_lambda_.17} parent=23 // pred_region
          %s158 = sand.u32 %s16, 1
          %s159 = scalar_lea.sflag [#allocation6], %s158
          %s160 = sand.u32 %s47, 1
          %s161 = smul.addr %s160, 256
          %s162 = scalar_lea.vmem [#allocation5], %s161
          %s164 = ssub.s32 4096, 4096
          %165 = vsyncadd %s159, %s164
          %s166 = smul.addr %s16, 64
          %s167 = smul.addr %s166, 64
          %s168 = scalar_lea.hbm %s1, %s167
          %s169 = sshll.u32 %s162, 4
          %s170 = int_to_ptr.vmem [resolvable:$true] %s169
          %175 = dma.hbm_to_vmem [thread:$0]  %s168, 4096, %s170, %s159, 64, 64, 4
        $region28: #{_lambda_.17} parent=23 // pred_fallthru
          _
      $region24: #{_lambda_.17} parent=5 // pred_fallthru
        _
      %p176 = scmp.le.s32.totalorder 1, %s16
      %p177 = scmp.lt.s32.totalorder %s16, 3
      %p178 = pnand %p176, %p177
      %p179 = pneg %p178
      // Predicated region
      $region29: #{_lambda_.17} parent=5 // pred_check
        _
      $region30: #{_lambda_.17} parent=5 // pred_check_branch
        %181 = sbr.rel (%p178) target = $region32
      $region31: #{_lambda_.17} parent=5 // pred_region
        %s182 = ssub.s32 %s16, 1
        // Predicated region
        $region33: #{_lambda_.17} parent=31 // pred_check
          %p183 = pneg %p37
        $region34: #{_lambda_.17} parent=31 // pred_check_branch
          %185 = sbr.rel (%p183) target = $region36
        $region35: #{_lambda_.17} parent=31 // pred_region
          %186 = dma.done [#allocation3], 512
        $region36: #{_lambda_.17} parent=31 // pred_fallthru
          _
        %s187 = sand.u32 %s21, 1
        %s188 = scalar_lea.sflag [#allocation6], %s187
        %s189 = sand.u32 %s50, 1
        %s190 = smul.addr %s189, 256
        %s191 = scalar_lea.vmem [#allocation5], %s190
        // Predicated region
        $region37: #{_lambda_.17} parent=31 // pred_check
          %p192 = pneg %p63
        $region38: #{_lambda_.17} parent=31 // pred_check_branch
          %194 = sbr.rel (%p192) target = $region40
        $region39: #{_lambda_.17} parent=31 // pred_region
          %195 = dma.done %s188, 4096
        $region40: #{_lambda_.17} parent=31 // pred_fallthru
          _
        // Predicated region
        $region41: #{_lambda_.17} parent=31 // pred_check
          %p196 = pneg %p84
        $region42: #{_lambda_.17} parent=31 // pred_check_branch
          %198 = sbr.rel (%p196) target = $region44
        $region43: #{_lambda_.17} parent=31 // pred_region
          %199 = dma.done [#allocation6], 256
        $region44: #{_lambda_.17} parent=31 // pred_fallthru
          _
        %p200 = pneg %p37
        %p201 = pneg %p34
        %s202 = sand.u32 %s21, 1
        %s203 = scalar_lea.sflag [#allocation6], %s202
        %s204 = sand.u32 %s50, 1
        %s205 = smul.addr %s204, 256
        %s206 = scalar_lea.vmem [#allocation5], %s205
        %p207 = pneg %p63
        %p208 = pneg %p60
        %p209 = pneg %p84
        %p210 = pneg %p81
        %p211 = pneg %p110
        %p212 = pneg %p107
        %s213 = sand.u32 %s97, 1
        %s214 = scalar_lea.sflag [#allocation4], %s213
        %s215 = sand.u32 %s97, 1
        %s216 = smul.addr %s215, 16
        %s217 = scalar_lea.vmem [#allocation8], %s216
        %v219 = vld [vmem:[#allocation2] sm:$0xf]
        %v220 = vld [vmem:[#allocation2 + $0x4] sm:$0xf]
        %v221 = vld [vmem:[%s191] sm:$0xf]
        %v222 = vld [vmem:[%s191 + $0x4] sm:$0xf]
        %v223 = vld [vmem:[%s191 + $0x8] sm:$0xf]
        %v224 = vld [vmem:[%s191 + $0xc] sm:$0xf]
        %v225 = vld [vmem:[%s191 + $0x10] sm:$0xf]
        %v226 = vld [vmem:[%s191 + $0x14] sm:$0xf]
        %v227 = vld [vmem:[%s191 + $0x18] sm:$0xf]
        %v228 = vld [vmem:[%s191 + $0x1c] sm:$0xf]
        %v229 = vld [vmem:[%s191 + $0x20] sm:$0xf]
        %v230 = vld [vmem:[%s191 + $0x24] sm:$0xf]
        %v231 = vld [vmem:[%s191 + $0x28] sm:$0xf]
        %v232 = vld [vmem:[%s191 + $0x2c] sm:$0xf]
        %v233 = vld [vmem:[%s191 + $0x30] sm:$0xf]
        %v234 = vld [vmem:[%s191 + $0x34] sm:$0xf]
        %v235 = vld [vmem:[%s191 + $0x38] sm:$0xf]
        %v236 = vld [vmem:[%s191 + $0x3c] sm:$0xf]
        %v239 = vunpack.c.l.b16 %v219
        %v240 = vunpack.c.l.b16 %v220
        %v241 = vpack.c.b16 %v240, %v239
        %v259 = vunpack.c.l.b16 %v221
        %v260 = vunpack.c.l.b16 %v222
        %v261 = vunpack.c.l.b16 %v223
        %v262 = vunpack.c.l.b16 %v224
        %v263 = vunpack.c.l.b16 %v225
        %v264 = vunpack.c.l.b16 %v226
        %v265 = vunpack.c.l.b16 %v227
        %v266 = vunpack.c.l.b16 %v228
        %v267 = vunpack.c.l.b16 %v229
        %v268 = vunpack.c.l.b16 %v230
        %v269 = vunpack.c.l.b16 %v231
        %v270 = vunpack.c.l.b16 %v232
        %v271 = vunpack.c.l.b16 %v233
        %v272 = vunpack.c.l.b16 %v234
        %v273 = vunpack.c.l.b16 %v235
        %v274 = vunpack.c.l.b16 %v236
        %v275 = vpack.c.b16 %v260, %v259
        %v276 = vpack.c.b16 %v262, %v261
        %v277 = vpack.c.b16 %v264, %v263
        %v278 = vpack.c.b16 %v266, %v265
        %v279 = vpack.c.b16 %v268, %v267
        %v280 = vpack.c.b16 %v270, %v269
        %v281 = vpack.c.b16 %v272, %v271
        %v282 = vpack.c.b16 %v274, %v273
        %291 = vmatprep.subr.bf16.mxu0 0
        %292 = vmatpush1.bf16.msra.mxu0 %v275
        %293 = vmatprep.subr.bf16.mxu0 0
        %294 = vmatpush1.bf16.msra.mxu0 %v276
        %295 = vmatprep.subr.bf16.mxu0 0
        %296 = vmatpush1.bf16.msra.mxu0 %v277
        %297 = vmatprep.subr.bf16.mxu0 0
        %298 = vmatpush1.bf16.msra.mxu0 %v278
        %299 = vmatprep.subr.bf16.mxu0 0
        %300 = vmatpush1.bf16.msra.mxu0 %v279
        %301 = vmatprep.subr.bf16.mxu0 0
        %302 = vmatpush1.bf16.msra.mxu0 %v280
        %303 = vmatprep.subr.bf16.mxu0 0
        %304 = vmatpush1.bf16.msra.mxu0 %v281
        %305 = vmatprep.subr.bf16.mxu0 0
        %306 = vmatpush1.bf16.msra.mxu0 %v282
        %307 = vmatprep.subr.bf16.mxu0 0
        %308 = vmatpush1.bf16.msra.mxu0 0
        %309 = vmatprep.subr.bf16.mxu0 0
        %310 = vmatpush1.bf16.msra.mxu0 0
        %311 = vmatprep.subr.bf16.mxu0 0
        %312 = vmatpush1.bf16.msra.mxu0 0
        %313 = vmatprep.subr.bf16.mxu0 0
        %314 = vmatpush1.bf16.msra.mxu0 0
        %315 = vmatprep.subr.bf16.mxu0 0
        %316 = vmatpush1.bf16.msra.mxu0 0
        %317 = vmatprep.subr.bf16.mxu0 0
        %318 = vmatpush1.bf16.msra.mxu0 0
        %319 = vmatprep.subr.bf16.mxu0 0
        %320 = vmatpush1.bf16.msra.mxu0 0
        %321 = vmatprep.subr.bf16.mxu0 0
        %322 = vmatpush1.bf16.msra.mxu0 0
        %323 = vmatprep.mubr.bf16.mxu0 0
        %324 = vmatmul.mubr.bf16.gmra.mrb[0].mxu0 %v241
        %v325 = vpop.f32.mrb[0].mxu0
        %v326 = vadd.f32 0.0, %v325
        %v327 = vpop.f32.mrb[0].mxu0
        %v328 = vpop.f32.mrb[0].mxu0
        %v329 = vadd.f32 0.0, %v328
        %v330 = vpop.f32.mrb[0].mxu0
        %331 = vdwg.mxu0
        %s332 = scalar_lea.vmem [#allocation2], 8
        %v333 = vld [vmem:[%s332] sm:$0xf]
        %v334 = vld [vmem:[%s332 + $0x4] sm:$0xf]
        %s335 = scalar_lea.vmem %s191, 64 [#allocation5]
        %v336 = vld [vmem:[%s335] sm:$0xf]
        %v337 = vld [vmem:[%s335 + $0x4] sm:$0xf]
        %v338 = vld [vmem:[%s335 + $0x8] sm:$0xf]
        %v339 = vld [vmem:[%s335 + $0xc] sm:$0xf]
        %v340 = vld [vmem:[%s335 + $0x10] sm:$0xf]
        %v341 = vld [vmem:[%s335 + $0x14] sm:$0xf]
        %v342 = vld [vmem:[%s335 + $0x18] sm:$0xf]
        %v343 = vld [vmem:[%s335 + $0x1c] sm:$0xf]
        %v344 = vld [vmem:[%s335 + $0x20] sm:$0xf]
        %v345 = vld [vmem:[%s335 + $0x24] sm:$0xf]
        %v346 = vld [vmem:[%s335 + $0x28] sm:$0xf]
        %v347 = vld [vmem:[%s335 + $0x2c] sm:$0xf]
        %v348 = vld [vmem:[%s335 + $0x30] sm:$0xf]
        %v349 = vld [vmem:[%s335 + $0x34] sm:$0xf]
        %v350 = vld [vmem:[%s335 + $0x38] sm:$0xf]
        %v351 = vld [vmem:[%s335 + $0x3c] sm:$0xf]
        %v354 = vunpack.c.l.b16 %v333
        %v355 = vunpack.c.l.b16 %v334
        %v356 = vpack.c.b16 %v355, %v354
        %v374 = vunpack.c.l.b16 %v336
        %v375 = vunpack.c.l.b16 %v337
        %v376 = vunpack.c.l.b16 %v338
        %v377 = vunpack.c.l.b16 %v339
        %v378 = vunpack.c.l.b16 %v340
        %v379 = vunpack.c.l.b16 %v341
        %v380 = vunpack.c.l.b16 %v342
        %v381 = vunpack.c.l.b16 %v343
        %v382 = vunpack.c.l.b16 %v344
        %v383 = vunpack.c.l.b16 %v345
        %v384 = vunpack.c.l.b16 %v346
        %v385 = vunpack.c.l.b16 %v347
        %v386 = vunpack.c.l.b16 %v348
        %v387 = vunpack.c.l.b16 %v349
        %v388 = vunpack.c.l.b16 %v350
        %v389 = vunpack.c.l.b16 %v351
        %v390 = vpack.c.b16 %v375, %v374
        %v391 = vpack.c.b16 %v377, %v376
        %v392 = vpack.c.b16 %v379, %v378
        %v393 = vpack.c.b16 %v381, %v380
        %v394 = vpack.c.b16 %v383, %v382
        %v395 = vpack.c.b16 %v385, %v384
        %v396 = vpack.c.b16 %v387, %v386
        %v397 = vpack.c.b16 %v389, %v388
        %406 = vmatprep.subr.bf16.mxu0 0
        %407 = vmatpush1.bf16.msra.mxu0 %v390
        %408 = vmatprep.subr.bf16.mxu0 0
        %409 = vmatpush1.bf16.msra.mxu0 %v391
        %410 = vmatprep.subr.bf16.mxu0 0
        %411 = vmatpush1.bf16.msra.mxu0 %v392
        %412 = vmatprep.subr.bf16.mxu0 0
        %413 = vmatpush1.bf16.msra.mxu0 %v393
        %414 = vmatprep.subr.bf16.mxu0 0
        %415 = vmatpush1.bf16.msra.mxu0 %v394
        %416 = vmatprep.subr.bf16.mxu0 0
        %417 = vmatpush1.bf16.msra.mxu0 %v395
        %418 = vmatprep.subr.bf16.mxu0 0
        %419 = vmatpush1.bf16.msra.mxu0 %v396
        %420 = vmatprep.subr.bf16.mxu0 0
        %421 = vmatpush1.bf16.msra.mxu0 %v397
        %422 = vmatprep.subr.bf16.mxu0 0
        %423 = vmatpush1.bf16.msra.mxu0 0
        %424 = vmatprep.subr.bf16.mxu0 0
        %425 = vmatpush1.bf16.msra.mxu0 0
        %426 = vmatprep.subr.bf16.mxu0 0
        %427 = vmatpush1.bf16.msra.mxu0 0
        %428 = vmatprep.subr.bf16.mxu0 0
        %429 = vmatpush1.bf16.msra.mxu0 0
        %430 = vmatprep.subr.bf16.mxu0 0
        %431 = vmatpush1.bf16.msra.mxu0 0
        %432 = vmatprep.subr.bf16.mxu0 0
        %433 = vmatpush1.bf16.msra.mxu0 0
        %434 = vmatprep.subr.bf16.mxu0 0
        %435 = vmatpush1.bf16.msra.mxu0 0
        %436 = vmatprep.subr.bf16.mxu0 0
        %437 = vmatpush1.bf16.msra.mxu0 0
        %438 = vmatprep.mubr.bf16.mxu0 0
        %439 = vmatmul.mubr.bf16.gmra.mrb[0].mxu0 %v356
        %v440 = vpop.f32.mrb[0].mxu0
        %v441 = vadd.f32 0.0, %v440
        %v442 = vpop.f32.mrb[0].mxu0
        %v443 = vpop.f32.mrb[0].mxu0
        %v444 = vadd.f32 0.0, %v443
        %v445 = vpop.f32.mrb[0].mxu0
        %446 = vdwg.mxu0
        %s447 = scalar_lea.vmem [#allocation2], 16
        %v448 = vld [vmem:[%s447] sm:$0xf]
        %v449 = vld [vmem:[%s447 + $0x4] sm:$0xf]
        %s450 = scalar_lea.vmem %s191, 128 [#allocation5]
        %v451 = vld [vmem:[%s450] sm:$0xf]
        %v452 = vld [vmem:[%s450 + $0x4] sm:$0xf]
        %v453 = vld [vmem:[%s450 + $0x8] sm:$0xf]
        %v454 = vld [vmem:[%s450 + $0xc] sm:$0xf]
        %v455 = vld [vmem:[%s450 + $0x10] sm:$0xf]
        %v456 = vld [vmem:[%s450 + $0x14] sm:$0xf]
        %v457 = vld [vmem:[%s450 + $0x18] sm:$0xf]
        %v458 = vld [vmem:[%s450 + $0x1c] sm:$0xf]
        %v459 = vld [vmem:[%s450 + $0x20] sm:$0xf]
        %v460 = vld [vmem:[%s450 + $0x24] sm:$0xf]
        %v461 = vld [vmem:[%s450 + $0x28] sm:$0xf]
        %v462 = vld [vmem:[%s450 + $0x2c] sm:$0xf]
        %v463 = vld [vmem:[%s450 + $0x30] sm:$0xf]
        %v464 = vld [vmem:[%s450 + $0x34] sm:$0xf]
        %v465 = vld [vmem:[%s450 + $0x38] sm:$0xf]
        %v466 = vld [vmem:[%s450 + $0x3c] sm:$0xf]
        %v469 = vunpack.c.l.b16 %v448
        %v470 = vunpack.c.l.b16 %v449
        %v471 = vpack.c.b16 %v470, %v469
        %v489 = vunpack.c.l.b16 %v451
        %v490 = vunpack.c.l.b16 %v452
        %v491 = vunpack.c.l.b16 %v453
        %v492 = vunpack.c.l.b16 %v454
        %v493 = vunpack.c.l.b16 %v455
        %v494 = vunpack.c.l.b16 %v456
        %v495 = vunpack.c.l.b16 %v457
        %v496 = vunpack.c.l.b16 %v458
        %v497 = vunpack.c.l.b16 %v459
        %v498 = vunpack.c.l.b16 %v460
        %v499 = vunpack.c.l.b16 %v461
        %v500 = vunpack.c.l.b16 %v462
        %v501 = vunpack.c.l.b16 %v463
        %v502 = vunpack.c.l.b16 %v464
        %v503 = vunpack.c.l.b16 %v465
        %v504 = vunpack.c.l.b16 %v466
        %v505 = vpack.c.b16 %v490, %v489
        %v506 = vpack.c.b16 %v492, %v491
        %v507 = vpack.c.b16 %v494, %v493
        %v508 = vpack.c.b16 %v496, %v495
        %v509 = vpack.c.b16 %v498, %v497
        %v510 = vpack.c.b16 %v500, %v499
        %v511 = vpack.c.b16 %v502, %v501
        %v512 = vpack.c.b16 %v504, %v503
        %521 = vmatprep.subr.bf16.mxu0 0
        %522 = vmatpush1.bf16.msra.mxu0 %v505
        %523 = vmatprep.subr.bf16.mxu0 0
        %524 = vmatpush1.bf16.msra.mxu0 %v506
        %525 = vmatprep.subr.bf16.mxu0 0
        %526 = vmatpush1.bf16.msra.mxu0 %v507
        %527 = vmatprep.subr.bf16.mxu0 0
        %528 = vmatpush1.bf16.msra.mxu0 %v508
        %529 = vmatprep.subr.bf16.mxu0 0
        %530 = vmatpush1.bf16.msra.mxu0 %v509
        %531 = vmatprep.subr.bf16.mxu0 0
        %532 = vmatpush1.bf16.msra.mxu0 %v510
        %533 = vmatprep.subr.bf16.mxu0 0
        %534 = vmatpush1.bf16.msra.mxu0 %v511
        %535 = vmatprep.subr.bf16.mxu0 0
        %536 = vmatpush1.bf16.msra.mxu0 %v512
        %537 = vmatprep.subr.bf16.mxu0 0
        %538 = vmatpush1.bf16.msra.mxu0 0
        %539 = vmatprep.subr.bf16.mxu0 0
        %540 = vmatpush1.bf16.msra.mxu0 0
        %541 = vmatprep.subr.bf16.mxu0 0
        %542 = vmatpush1.bf16.msra.mxu0 0
        %543 = vmatprep.subr.bf16.mxu0 0
        %544 = vmatpush1.bf16.msra.mxu0 0
        %545 = vmatprep.subr.bf16.mxu0 0
        %546 = vmatpush1.bf16.msra.mxu0 0
        %547 = vmatprep.subr.bf16.mxu0 0
        %548 = vmatpush1.bf16.msra.mxu0 0
        %549 = vmatprep.subr.bf16.mxu0 0
        %550 = vmatpush1.bf16.msra.mxu0 0
        %551 = vmatprep.subr.bf16.mxu0 0
        %552 = vmatpush1.bf16.msra.mxu0 0
        %553 = vmatprep.mubr.bf16.mxu0 0
        %554 = vmatmul.mubr.bf16.gmra.mrb[0].mxu0 %v471
        %v555 = vpop.f32.mrb[0].mxu0
        %v556 = vadd.f32 0.0, %v555
        %v557 = vpop.f32.mrb[0].mxu0
        %v558 = vpop.f32.mrb[0].mxu0
        %v559 = vadd.f32 0.0, %v558
        %v560 = vpop.f32.mrb[0].mxu0
        %561 = vdwg.mxu0
        %s562 = scalar_lea.vmem [#allocation2], 24
        %v563 = vld [vmem:[%s562] sm:$0xf]
        %v564 = vld [vmem:[%s562 + $0x4] sm:$0xf]
        %s565 = scalar_lea.vmem %s191, 192 [#allocation5]
        %v566 = vld [vmem:[%s565] sm:$0xf]
        %v567 = vld [vmem:[%s565 + $0x4] sm:$0xf]
        %v568 = vld [vmem:[%s565 + $0x8] sm:$0xf]
        %v569 = vld [vmem:[%s565 + $0xc] sm:$0xf]
        %v570 = vld [vmem:[%s565 + $0x10] sm:$0xf]
        %v571 = vld [vmem:[%s565 + $0x14] sm:$0xf]
        %v572 = vld [vmem:[%s565 + $0x18] sm:$0xf]
        %v573 = vld [vmem:[%s565 + $0x1c] sm:$0xf]
        %v574 = vld [vmem:[%s565 + $0x20] sm:$0xf]
        %v575 = vld [vmem:[%s565 + $0x24] sm:$0xf]
        %v576 = vld [vmem:[%s565 + $0x28] sm:$0xf]
        %v577 = vld [vmem:[%s565 + $0x2c] sm:$0xf]
        %v578 = vld [vmem:[%s565 + $0x30] sm:$0xf]
        %v579 = vld [vmem:[%s565 + $0x34] sm:$0xf]
        %v580 = vld [vmem:[%s565 + $0x38] sm:$0xf]
        %v581 = vld [vmem:[%s565 + $0x3c] sm:$0xf]
        %v584 = vunpack.c.l.b16 %v563
        %v585 = vunpack.c.l.b16 %v564
        %v586 = vpack.c.b16 %v585, %v584
        %v604 = vunpack.c.l.b16 %v566
        %v605 = vunpack.c.l.b16 %v567
        %v606 = vunpack.c.l.b16 %v568
        %v607 = vunpack.c.l.b16 %v569
        %v608 = vunpack.c.l.b16 %v570
        %v609 = vunpack.c.l.b16 %v571
        %v610 = vunpack.c.l.b16 %v572
        %v611 = vunpack.c.l.b16 %v573
        %v612 = vunpack.c.l.b16 %v574
        %v613 = vunpack.c.l.b16 %v575
        %v614 = vunpack.c.l.b16 %v576
        %v615 = vunpack.c.l.b16 %v577
        %v616 = vunpack.c.l.b16 %v578
        %v617 = vunpack.c.l.b16 %v579
        %v618 = vunpack.c.l.b16 %v580
        %v619 = vunpack.c.l.b16 %v581
        %v620 = vpack.c.b16 %v605, %v604
        %v621 = vpack.c.b16 %v607, %v606
        %v622 = vpack.c.b16 %v609, %v608
        %v623 = vpack.c.b16 %v611, %v610
        %v624 = vpack.c.b16 %v613, %v612
        %v625 = vpack.c.b16 %v615, %v614
        %v626 = vpack.c.b16 %v617, %v616
        %v627 = vpack.c.b16 %v619, %v618
        %636 = vmatprep.subr.bf16.mxu0 0
        %637 = vmatpush1.bf16.msra.mxu0 %v620
        %638 = vmatprep.subr.bf16.mxu0 0
        %639 = vmatpush1.bf16.msra.mxu0 %v621
        %640 = vmatprep.subr.bf16.mxu0 0
        %641 = vmatpush1.bf16.msra.mxu0 %v622
        %642 = vmatprep.subr.bf16.mxu0 0
        %643 = vmatpush1.bf16.msra.mxu0 %v623
        %644 = vmatprep.subr.bf16.mxu0 0
        %645 = vmatpush1.bf16.msra.mxu0 %v624
        %646 = vmatprep.subr.bf16.mxu0 0
        %647 = vmatpush1.bf16.msra.mxu0 %v625
        %648 = vmatprep.subr.bf16.mxu0 0
        %649 = vmatpush1.bf16.msra.mxu0 %v626
        %650 = vmatprep.subr.bf16.mxu0 0
        %651 = vmatpush1.bf16.msra.mxu0 %v627
        %652 = vmatprep.subr.bf16.mxu0 0
        %653 = vmatpush1.bf16.msra.mxu0 0
        %654 = vmatprep.subr.bf16.mxu0 0
        %655 = vmatpush1.bf16.msra.mxu0 0
        %656 = vmatprep.subr.bf16.mxu0 0
        %657 = vmatpush1.bf16.msra.mxu0 0
        %658 = vmatprep.subr.bf16.mxu0 0
        %659 = vmatpush1.bf16.msra.mxu0 0
        %660 = vmatprep.subr.bf16.mxu0 0
        %661 = vmatpush1.bf16.msra.mxu0 0
        %662 = vmatprep.subr.bf16.mxu0 0
        %663 = vmatpush1.bf16.msra.mxu0 0
        %664 = vmatprep.subr.bf16.mxu0 0
        %665 = vmatpush1.bf16.msra.mxu0 0
        %666 = vmatprep.subr.bf16.mxu0 0
        %667 = vmatpush1.bf16.msra.mxu0 0
        %668 = vmatprep.mubr.bf16.mxu0 0
        %669 = vmatmul.mubr.bf16.gmra.mrb[0].mxu0 %v586
        %v670 = vpop.f32.mrb[0].mxu0
        %v671 = vadd.f32 0.0, %v670
        %v672 = vpop.f32.mrb[0].mxu0
        %v673 = vpop.f32.mrb[0].mxu0
        %v674 = vadd.f32 0.0, %v673
        %v675 = vpop.f32.mrb[0].mxu0
        %676 = vdwg.mxu0
        %679 = vrot.lane.b32.xlu0 %v441, 16
        %v680 = vpop.permute.xlu0 %679
        %681 = vrot.lane.b32.xlu0 %v444, 16
        %v682 = vpop.permute.xlu0 %681
        %687 = vrot.lane.b32.xlu0 %v556, 32
        %v688 = vpop.permute.xlu0 %687
        %689 = vrot.lane.b32.xlu0 %v559, 32
        %v690 = vpop.permute.xlu0 %689
        %695 = vrot.lane.b32.xlu0 %v671, 48
        %v696 = vpop.permute.xlu0 %695
        %697 = vrot.lane.b32.xlu0 %v674, 48
        %v698 = vpop.permute.xlu0 %697
        %vm701 = vcmask 130048
        %v702 = vsel %vm701, %v326, %v680
        %v703 = vsel %vm701, %v329, %v682
        %vm704 = vcmask 261120
        %v705 = vsel %vm704, %v702, %v688
        %v706 = vsel %vm704, %v703, %v690
        %vm707 = vcmask 392192
        %v708 = vsel %vm707, %v705, %v696
        %v709 = vsel %vm707, %v706, %v698
        %vm710 = vcmask 523264
        %v711 = vsel %vm710, %v708, 0.0
        %712 = vadd.xlane.f32.xlu0 %v711
        %v713 = vpop.xlane.xlu0 %712
        %v714 = vsel %vm710, %v709, 0.0
        %715 = vadd.xlane.f32.xlu0 %v714
        %v716 = vpop.xlane.xlu0 %715
        %v717 = vrcp.pop 64.0
        %v718 = vmul.f32 %v713, %v717
        %v719 = vmul.f32 %v716, %v717
        %v720 = vsub.f32 %v708, %v718
        %v721 = vsub.f32 %v709, %v719
        %v722 = vmul.f32 %v720, %v720
        %v723 = vmul.f32 %v721, %v721
        %v724 = vsel %vm710, %v722, 0.0
        %725 = vadd.xlane.f32.xlu0 %v724
        %v726 = vpop.xlane.xlu0 %725
        %v727 = vsel %vm710, %v723, 0.0
        %728 = vadd.xlane.f32.xlu0 %v727
        %v729 = vpop.xlane.xlu0 %728
        %v730 = vmul.f32 %v726, %v717
        %v731 = vmul.f32 %v729, %v717
        %v732 = vadd.f32 %v730, 1e-05
        %v733 = vadd.f32 %v731, 1e-05
        %v734 = vrsqrt.pop %v732
        %v735 = vrsqrt.pop %v733
        %v736 = vmul.f32 %v720, %v734
        %v737 = vmul.f32 %v721, %v735
        %v738 = vmax.f32 %v736, 0.0
        %v739 = vmax.f32 %v737, 0.0
        %740 = vst.msk [vmem:[%s217] sm:$0xff] %vm710, %v738
        %741 = vst.msk [vmem:[%s217 + $0x8] sm:$0xff] %vm710, %v739
        %s742 = sand.u32 %s97, 1
        %s743 = scalar_lea.sflag [#allocation4], %s742
        %s744 = sand.u32 %s97, 1
        %s745 = smul.addr %s744, 16
        %s746 = scalar_lea.vmem [#allocation8], %s745
        // Predicated region
        $region45: #{_lambda_.17} parent=31 // pred_check
          %p747 = pneg %p107
        $region46: #{_lambda_.17} parent=31 // pred_check_branch
          %749 = sbr.rel (%p747) target = $region48
        $region47: #{_lambda_.17} parent=31 // pred_region
          %s751 = ssub.s32 256, 256
          %752 = vsyncadd %s743, %s751
          %s753 = smul.addr %s21, 2
          %s754 = smul.addr %s753, 128
          %s755 = scalar_lea.hbm %s3, %s754
          %s756 = sshll.u32 %s746, 4
          %s757 = int_to_ptr.vmem [resolvable:$true] %s756
          %762 = dma.vmem_to_hbm [thread:$0]  %s757, 256, %s755, %s743, 128, 128, 8
        $region48: #{_lambda_.17} parent=31 // pred_fallthru
          _
      $region32: #{_lambda_.17} parent=5 // pred_fallthru
        _
      %p763 = scmp.le.s32.totalorder 2, %s16
      // Predicated region
      $region49: #{_lambda_.17} parent=5 // pred_check
        %p764 = pneg %p763
      $region50: #{_lambda_.17} parent=5 // pred_check_branch
        %766 = sbr.rel (%p764) target = $region52
      $region51: #{_lambda_.17} parent=5 // pred_region
        %s767 = ssub.s32 %s16, 2
        // Predicated region
        $region53: #{_lambda_.17} parent=51 // pred_check
          %p768 = pneg %p113
        $region54: #{_lambda_.17} parent=51 // pred_check_branch
          %770 = sbr.rel (%p768) target = $region56
        $region55: #{_lambda_.17} parent=51 // pred_region
          %s771 = sand.u32 %s98, 1
          %s772 = scalar_lea.sflag [#allocation4], %s771
          %s773 = sand.u32 %s98, 1
          %s774 = smul.addr %s773, 16
          %s775 = scalar_lea.vmem [#allocation8], %s774
          %776 = dma.done %s772, 256
        $region56: #{_lambda_.17} parent=51 // pred_fallthru
          _
      $region52: #{_lambda_.17} parent=5 // pred_fallthru
        _
    $region6: #{_lambda_.17} parent=1 // loop_footer
      %s20 = sadd.s32 1, %s16
    $region7: #{_lambda_.17} parent=1 // loop_footer_branch
      %15 = sbr.rel target = $region3
    $region8: #{_lambda_.17} parent=1 // loop_exit
      _
    %777 = vsyncpa [#allocation3], 1
    %s778 = scalar_lea.sflag [#allocation3], 1
    %779 = vsyncpa %s778, 1
    %780 = vsyncpa [#allocation6], 1
    %s781 = scalar_lea.sflag [#allocation6], 1
    %782 = vsyncpa %s781, 1
    %783 = vsyncpa [#allocation4], 1
    %s784 = scalar_lea.sflag [#allocation4], 1
    %785 = vsyncpa %s784, 1

// kernel: _lambda_.18
$region0: #{_lambda_.18}
  #allocation0 [shape = 'u32[]', space=smem, size = 0x4, offset = 0x4, fixed_abs, tag = 'smem constant byte address 0x4 - core index']
  #allocation1 [shape = 'u32[144,128]{1,0:T(1,128)}', space=vmem, size = 0x12000, scoped, tag = 'internal scratch']
  %s0 = inlined_call_operand.hbm [shape: bf16[4,8,64], index: 0, kind: input, shape index: {}]
  %s1 = inlined_call_operand.hbm [shape: bf16[2,4,64,64], index: 1, kind: input, shape index: {}]
  %s2 = inlined_call_operand.hbm [shape: f32[8,1], index: 2, kind: input, shape index: {}]
  %s3 = inlined_call_operand.hbm [shape: f32[2,8,256], index: 3, kind: output, shape index: {}]
  %s4 = sld [smem:[#allocation0]]
  $region57: #{_lambda_.18} parent=0
    _
  %s6 = ssub.s32 1, %s4
  %s7 = scalar_select 0, %s6, %s4
  $region1: #{_lambda_.18} parent=0
    #allocation2 [shape = 'u8[8192]{0}', space=vmem, size = 0x2000, scoped, tag = 'input window, operand 0, single buffered']
    #allocation3 [shape = 's32[2]{0}', space=sflag, size = 0x8, scoped, tag = 'scoped memory for _lambda_.18']
    #allocation4 [shape = 's32[2]{0}', space=sflag, size = 0x8, scoped, tag = 'scoped memory for _lambda_.18']
    #allocation5 [shape = 'u8[131072]{0}', space=vmem, size = 0x20000, scoped, tag = 'input window, operand 1']
    #allocation6 [shape = 's32[2]{0}', space=sflag, size = 0x8, scoped, tag = 'scoped memory for _lambda_.18']
    #allocation7 [shape = 'u8[4096]{0}', space=vmem, size = 0x1000, scoped, tag = 'input window, operand 2, single buffered']
    #allocation8 [shape = 'u8[16384]{0}', space=vmem, size = 0x4000, scoped, tag = 'output window, operand 0']
    %8 = vsyncpa [#allocation3], 0
    %9 = vsyncpa [#allocation6], 0
    %s10 = scalar_lea.sflag [#allocation6], 1
    %11 = vsyncpa %s10, 0
    %12 = vsyncpa [#allocation4], 0
    %s13 = scalar_lea.sflag [#allocation4], 1
    %14 = vsyncpa %s13, 0
    loop: start=0, step=1, limit=4
    $region2: #{_lambda_.18} parent=1 // loop_pre_header
      _
    $region3: #{_lambda_.18} parent=1 // loop_header
      %s16 = sphi 0, %s20
      %p17 = scmp.ge.s32.totalorder %s16, 4
      %s24 = sphi 0, %s24
      %s26 = sphi 0, %s24
      %s27 = sphi 0, %s26
      %s41 = sphi 0, %s27
      %s47 = sphi 0, %s49
      %s50 = sphi 0, %s47
      %s51 = sphi 0, %s50
      %s67 = sphi 0, %s51
      %s71 = sphi 0, %s71
      %s73 = sphi 0, %s71
      %s74 = sphi 0, %s73
      %s88 = sphi 0, %s74
      %s94 = sphi 0, %s96
      %s97 = sphi 0, %s94
      %s98 = sphi 0, %s97
      %s114 = sphi 0, %s98
    $region4: #{_lambda_.18} parent=1 // loop_header_branch
      %19 = sbr.rel (%p17) target = $region8
    $region5: #{_lambda_.18} parent=1 // loop_body
      %s21 = ssub.s32 %s16, 1
      %s22 = ssub.s32 %s16, 2
      %s23 = sadd.s32 %s16, 1
      %s25 = sadd.s32 %s24, 1
      %p28 = scmp.eq.s32.totalorder %s16, 1
      %p29 = scmp.ne.s32.totalorder %s24, %s26
      %p30 = scmp.eq.s32.totalorder %s16, 0
      %p31 = por %p29, %p30
      %p32 = scmp.ne.s32.totalorder %s24, %s26
      %p33 = scmp.eq.s32.totalorder %s21, 1
      %p34 = por %p32, %p33
      %p35 = scmp.ne.s32.totalorder %s26, %s27
      %p36 = scmp.eq.s32.totalorder %s21, 0
      %p37 = por %p35, %p36
      %p38 = scmp.ne.s32.totalorder %s26, %s27
      %p39 = scmp.eq.s32.totalorder %s22, 1
      %p40 = por %p38, %p39
      %p42 = scmp.ne.s32.totalorder %s27, %s41
      %p43 = scmp.eq.s32.totalorder %s22, 0
      %p44 = por %p42, %p43
      %s45 = ssub.s32 %s16, %s23
      %p46 = scmp.eq.s32.totalorder %s45, 0
      %s48 = sadd.s32 %s47, 1
      %s49 = scalar_select %p46, %s47, %s48
      %p52 = pneg %p46
      %p53 = scmp.eq.s32.totalorder %s16, 1
      %p54 = por %p52, %p53
      %p55 = scmp.ne.s32.totalorder %s47, %s50
      %p56 = scmp.eq.s32.totalorder %s16, 0
      %p57 = por %p55, %p56
      %p58 = scmp.ne.s32.totalorder %s47, %s50
      %p59 = scmp.eq.s32.totalorder %s21, 1
      %p60 = por %p58, %p59
      %p61 = scmp.ne.s32.totalorder %s50, %s51
      %p62 = scmp.eq.s32.totalorder %s21, 0
      %p63 = por %p61, %p62
      %p64 = scmp.ne.s32.totalorder %s50, %s51
      %p65 = scmp.eq.s32.totalorder %s22, 1
      %p66 = por %p64, %p65
      %p68 = scmp.ne.s32.totalorder %s51, %s67
      %p69 = scmp.eq.s32.totalorder %s22, 0
      %p70 = por %p68, %p69
      %s72 = sadd.s32 %s71, 1
      %p75 = scmp.eq.s32.totalorder %s16, 1
      %p76 = scmp.ne.s32.totalorder %s71, %s73
      %p77 = scmp.eq.s32.totalorder %s16, 0
      %p78 = por %p76, %p77
      %p79 = scmp.ne.s32.totalorder %s71, %s73
      %p80 = scmp.eq.s32.totalorder %s21, 1
      %p81 = por %p79, %p80
      %p82 = scmp.ne.s32.totalorder %s73, %s74
      %p83 = scmp.eq.s32.totalorder %s21, 0
      %p84 = por %p82, %p83
      %p85 = scmp.ne.s32.totalorder %s73, %s74
      %p86 = scmp.eq.s32.totalorder %s22, 1
      %p87 = por %p85, %p86
      %p89 = scmp.ne.s32.totalorder %s74, %s88
      %p90 = scmp.eq.s32.totalorder %s22, 0
      %p91 = por %p89, %p90
      %s92 = ssub.s32 %s16, %s23
      %p93 = scmp.eq.s32.totalorder %s92, 0
      %s95 = sadd.s32 %s94, 1
      %s96 = scalar_select %p93, %s94, %s95
      %p99 = pneg %p93
      %p100 = scmp.eq.s32.totalorder %s16, 1
      %p101 = por %p99, %p100
      %p102 = scmp.ne.s32.totalorder %s94, %s97
      %p103 = scmp.eq.s32.totalorder %s16, 0
      %p104 = por %p102, %p103
      %p105 = scmp.ne.s32.totalorder %s94, %s97
      %p106 = scmp.eq.s32.totalorder %s21, 1
      %p107 = por %p105, %p106
      %p108 = scmp.ne.s32.totalorder %s97, %s98
      %p109 = scmp.eq.s32.totalorder %s21, 0
      %p110 = por %p108, %p109
      %p111 = scmp.ne.s32.totalorder %s97, %s98
      %p112 = scmp.eq.s32.totalorder %s22, 1
      %p113 = por %p111, %p112
      %p115 = scmp.ne.s32.totalorder %s98, %s114
      %p116 = scmp.eq.s32.totalorder %s22, 0
      %p117 = por %p115, %p116
      %p118 = scmp.le.s32.totalorder 1, %s16
      %p119 = scmp.lt.s32.totalorder %s16, 3
      %p120 = pnand %p118, %p119
      %p121 = pneg %p120
      // Predicated region
      $region9: #{_lambda_.18} parent=5 // pred_check
        _
      $region10: #{_lambda_.18} parent=5 // pred_check_branch
        %123 = sbr.rel (%p120) target = $region12
      $region11: #{_lambda_.18} parent=5 // pred_region
        %s124 = ssub.s32 %s16, 1
        // Predicated region
        $region13: #{_lambda_.18} parent=11 // pred_check
          %p125 = pneg %p37
        $region14: #{_lambda_.18} parent=11 // pred_check_branch
          %127 = sbr.rel (%p125) target = $region16
        $region15: #{_lambda_.18} parent=11 // pred_region
          %s129 = ssub.s32 256, 256
          %130 = vsyncadd [#allocation3], %s129
          %s131 = sshll.u32 [#allocation2], 4
          %s132 = int_to_ptr.vmem [resolvable:$true] %s131
          %137 = dma.hbm_to_vmem [thread:$0]  %s0, 256, %s132, [#allocation3], 64, 64, 4
        $region16: #{_lambda_.18} parent=11 // pred_fallthru
          _
        // Predicated region
        $region17: #{_lambda_.18} parent=11 // pred_check
          %p138 = pneg %p84
        $region18: #{_lambda_.18} parent=11 // pred_check_branch
          %140 = sbr.rel (%p138) target = $region20
        $region19: #{_lambda_.18} parent=11 // pred_region
          %s142 = ssub.s32 128, 128
          %143 = vsyncadd [#allocation6], %s142
          %s145 = sshll.u32 [#allocation7], 4
          %s146 = int_to_ptr.vmem [resolvable:$true] %s145
          %148 = dma.hbm_to_vmem [thread:$0]  %s2, 128, %s146, [#allocation6]
        $region20: #{_lambda_.18} parent=11 // pred_fallthru
          _
      $region12: #{_lambda_.18} parent=5 // pred_fallthru
        _
      %p149 = scmp.lt.s32.totalorder %s16, 2
      // Predicated region
      $region21: #{_lambda_.18} parent=5 // pred_check
        %p150 = pneg %p149
      $region22: #{_lambda_.18} parent=5 // pred_check_branch
        %152 = sbr.rel (%p150) target = $region24
      $region23: #{_lambda_.18} parent=5 // pred_region
        // Predicated region
        $region25: #{_lambda_.18} parent=23 // pred_check
          %p153 = pneg %p57
        $region26: #{_lambda_.18} parent=23 // pred_check_branch
          %155 = sbr.rel (%p153) target = $region28
        $region27: #{_lambda_.18} parent=23 // pred_region
          %s156 = sand.u32 %s16, 1
          %s157 = scalar_lea.sflag [#allocation6], %s156
          %s158 = sand.u32 %s47, 1
          %s159 = smul.addr %s158, 128
          %s160 = scalar_lea.vmem [#allocation5], %s159
          %s162 = ssub.s32 2048, 2048
          %163 = vsyncadd %s157, %s162
          %s164 = smul.addr %s16, 32
          %s165 = smul.addr %s164, 64
          %s166 = scalar_lea.hbm %s1, %s165
          %s167 = sshll.u32 %s160, 4
          %s168 = int_to_ptr.vmem [resolvable:$true] %s167
          %173 = dma.hbm_to_vmem [thread:$0]  %s166, 2048, %s168, %s157, 64, 64, 4
        $region28: #{_lambda_.18} parent=23 // pred_fallthru
          _
      $region24: #{_lambda_.18} parent=5 // pred_fallthru
        _
      %p174 = scmp.le.s32.totalorder 1, %s16
      %p175 = scmp.lt.s32.totalorder %s16, 3
      %p176 = pnand %p174, %p175
      %p177 = pneg %p176
      // Predicated region
      $region29: #{_lambda_.18} parent=5 // pred_check
        _
      $region30: #{_lambda_.18} parent=5 // pred_check_branch
        %179 = sbr.rel (%p176) target = $region32
      $region31: #{_lambda_.18} parent=5 // pred_region
        %s180 = ssub.s32 %s16, 1
        // Predicated region
        $region33: #{_lambda_.18} parent=31 // pred_check
          %p181 = pneg %p37
        $region34: #{_lambda_.18} parent=31 // pred_check_branch
          %183 = sbr.rel (%p181) target = $region36
        $region35: #{_lambda_.18} parent=31 // pred_region
          %184 = dma.done [#allocation3], 256
        $region36: #{_lambda_.18} parent=31 // pred_fallthru
          _
        %s185 = sand.u32 %s21, 1
        %s186 = scalar_lea.sflag [#allocation6], %s185
        %s187 = sand.u32 %s50, 1
        %s188 = smul.addr %s187, 128
        %s189 = scalar_lea.vmem [#allocation5], %s188
        // Predicated region
        $region37: #{_lambda_.18} parent=31 // pred_check
          %p190 = pneg %p63
        $region38: #{_lambda_.18} parent=31 // pred_check_branch
          %192 = sbr.rel (%p190) target = $region40
        $region39: #{_lambda_.18} parent=31 // pred_region
          %193 = dma.done %s186, 2048
        $region40: #{_lambda_.18} parent=31 // pred_fallthru
          _
        // Predicated region
        $region41: #{_lambda_.18} parent=31 // pred_check
          %p194 = pneg %p84
        $region42: #{_lambda_.18} parent=31 // pred_check_branch
          %196 = sbr.rel (%p194) target = $region44
        $region43: #{_lambda_.18} parent=31 // pred_region
          %197 = dma.done [#allocation6], 128
        $region44: #{_lambda_.18} parent=31 // pred_fallthru
          _
        %p198 = pneg %p37
        %p199 = pneg %p34
        %s200 = sand.u32 %s21, 1
        %s201 = scalar_lea.sflag [#allocation6], %s200
        %s202 = sand.u32 %s50, 1
        %s203 = smul.addr %s202, 128
        %s204 = scalar_lea.vmem [#allocation5], %s203
        %p205 = pneg %p63
        %p206 = pneg %p60
        %p207 = pneg %p84
        %p208 = pneg %p81
        %p209 = pneg %p110
        %p210 = pneg %p107
        %s211 = sand.u32 %s97, 1
        %s212 = scalar_lea.sflag [#allocation4], %s211
        %s213 = sand.u32 %s97, 1
        %s214 = smul.addr %s213, 16
        %s215 = scalar_lea.vmem [#allocation8], %s214
        %v217 = vld [vmem:[#allocation2] sm:$0xf]
        %v218 = vld [vmem:[%s189] sm:$0xf]
        %v219 = vld [vmem:[%s189 + $0x4] sm:$0xf]
        %v220 = vld [vmem:[%s189 + $0x8] sm:$0xf]
        %v221 = vld [vmem:[%s189 + $0xc] sm:$0xf]
        %v222 = vld [vmem:[%s189 + $0x10] sm:$0xf]
        %v223 = vld [vmem:[%s189 + $0x14] sm:$0xf]
        %v224 = vld [vmem:[%s189 + $0x18] sm:$0xf]
        %v225 = vld [vmem:[%s189 + $0x1c] sm:$0xf]
        %v234 = vunpack.c.l.b16 %v218
        %v235 = vunpack.c.l.b16 %v219
        %v236 = vunpack.c.l.b16 %v220
        %v237 = vunpack.c.l.b16 %v221
        %v238 = vunpack.c.l.b16 %v222
        %v239 = vunpack.c.l.b16 %v223
        %v240 = vunpack.c.l.b16 %v224
        %v241 = vunpack.c.l.b16 %v225
        %v242 = vpack.c.b16 %v235, %v234
        %v243 = vpack.c.b16 %v237, %v236
        %v244 = vpack.c.b16 %v239, %v238
        %v245 = vpack.c.b16 %v241, %v240
        %vm250 = vcmask 523264
        %v252 = vsel %vm250, %v217, 0
        %254 = vmatprep.subr.bf16.mxu0 0
        %255 = vmatpush1.bf16.msra.mxu0 %v242
        %256 = vmatprep.subr.bf16.mxu0 0
        %257 = vmatpush1.bf16.msra.mxu0 %v243
        %258 = vmatprep.subr.bf16.mxu0 0
        %259 = vmatpush1.bf16.msra.mxu0 %v244
        %260 = vmatprep.subr.bf16.mxu0 0
        %261 = vmatpush1.bf16.msra.mxu0 %v245
        %262 = vmatprep.subr.bf16.mxu0 0
        %263 = vmatpush1.bf16.msra.mxu0 0
        %264 = vmatprep.subr.bf16.mxu0 0
        %265 = vmatpush1.bf16.msra.mxu0 0
        %266 = vmatprep.subr.bf16.mxu0 0
        %267 = vmatpush1.bf16.msra.mxu0 0
        %268 = vmatprep.subr.bf16.mxu0 0
        %269 = vmatpush1.bf16.msra.mxu0 0
        %270 = vmatprep.subr.bf16.mxu0 0
        %271 = vmatpush1.bf16.msra.mxu0 0
        %272 = vmatprep.subr.bf16.mxu0 0
        %273 = vmatpush1.bf16.msra.mxu0 0
        %274 = vmatprep.subr.bf16.mxu0 0
        %275 = vmatpush1.bf16.msra.mxu0 0
        %276 = vmatprep.subr.bf16.mxu0 0
        %277 = vmatpush1.bf16.msra.mxu0 0
        %278 = vmatprep.subr.bf16.mxu0 0
        %279 = vmatpush1.bf16.msra.mxu0 0
        %280 = vmatprep.subr.bf16.mxu0 0
        %281 = vmatpush1.bf16.msra.mxu0 0
        %282 = vmatprep.subr.bf16.mxu0 0
        %283 = vmatpush1.bf16.msra.mxu0 0
        %284 = vmatprep.subr.bf16.mxu0 0
        %285 = vmatpush1.bf16.msra.mxu0 0
        %286 = vmatprep.mubr.bf16.mxu0 0
        %287 = vmatmul.mubr.bf16.gmra.mrb[0].mxu0 %v252
        %v288 = vpop.f32.mrb[0].mxu0
        %v289 = vadd.f32 0.0, %v288
        %v290 = vpop.f32.mrb[0].mxu0
        %v291 = vpop.f32.mrb[0].mxu0
        %v292 = vpop.f32.mrb[0].mxu0
        %293 = vdwg.mxu0
        %s294 = scalar_lea.vmem [#allocation2], 4
        %v295 = vld [vmem:[%s294] sm:$0xf]
        %s296 = scalar_lea.vmem %s189, 32 [#allocation5]
        %v297 = vld [vmem:[%s296] sm:$0xf]
        %v298 = vld [vmem:[%s296 + $0x4] sm:$0xf]
        %v299 = vld [vmem:[%s296 + $0x8] sm:$0xf]
        %v300 = vld [vmem:[%s296 + $0xc] sm:$0xf]
        %v301 = vld [vmem:[%s296 + $0x10] sm:$0xf]
        %v302 = vld [vmem:[%s296 + $0x14] sm:$0xf]
        %v303 = vld [vmem:[%s296 + $0x18] sm:$0xf]
        %v304 = vld [vmem:[%s296 + $0x1c] sm:$0xf]
        %v313 = vunpack.c.l.b16 %v297
        %v314 = vunpack.c.l.b16 %v298
        %v315 = vunpack.c.l.b16 %v299
        %v316 = vunpack.c.l.b16 %v300
        %v317 = vunpack.c.l.b16 %v301
        %v318 = vunpack.c.l.b16 %v302
        %v319 = vunpack.c.l.b16 %v303
        %v320 = vunpack.c.l.b16 %v304
        %v321 = vpack.c.b16 %v314, %v313
        %v322 = vpack.c.b16 %v316, %v315
        %v323 = vpack.c.b16 %v318, %v317
        %v324 = vpack.c.b16 %v320, %v319
        %v330 = vsel %vm250, %v295, 0
        %332 = vmatprep.subr.bf16.mxu0 0
        %333 = vmatpush1.bf16.msra.mxu0 %v321
        %334 = vmatprep.subr.bf16.mxu0 0
        %335 = vmatpush1.bf16.msra.mxu0 %v322
        %336 = vmatprep.subr.bf16.mxu0 0
        %337 = vmatpush1.bf16.msra.mxu0 %v323
        %338 = vmatprep.subr.bf16.mxu0 0
        %339 = vmatpush1.bf16.msra.mxu0 %v324
        %340 = vmatprep.subr.bf16.mxu0 0
        %341 = vmatpush1.bf16.msra.mxu0 0
        %342 = vmatprep.subr.bf16.mxu0 0
        %343 = vmatpush1.bf16.msra.mxu0 0
        %344 = vmatprep.subr.bf16.mxu0 0
        %345 = vmatpush1.bf16.msra.mxu0 0
        %346 = vmatprep.subr.bf16.mxu0 0
        %347 = vmatpush1.bf16.msra.mxu0 0
        %348 = vmatprep.subr.bf16.mxu0 0
        %349 = vmatpush1.bf16.msra.mxu0 0
        %350 = vmatprep.subr.bf16.mxu0 0
        %351 = vmatpush1.bf16.msra.mxu0 0
        %352 = vmatprep.subr.bf16.mxu0 0
        %353 = vmatpush1.bf16.msra.mxu0 0
        %354 = vmatprep.subr.bf16.mxu0 0
        %355 = vmatpush1.bf16.msra.mxu0 0
        %356 = vmatprep.subr.bf16.mxu0 0
        %357 = vmatpush1.bf16.msra.mxu0 0
        %358 = vmatprep.subr.bf16.mxu0 0
        %359 = vmatpush1.bf16.msra.mxu0 0
        %360 = vmatprep.subr.bf16.mxu0 0
        %361 = vmatpush1.bf16.msra.mxu0 0
        %362 = vmatprep.subr.bf16.mxu0 0
        %363 = vmatpush1.bf16.msra.mxu0 0
        %364 = vmatprep.mubr.bf16.mxu0 0
        %365 = vmatmul.mubr.bf16.gmra.mrb[0].mxu0 %v330
        %v366 = vpop.f32.mrb[0].mxu0
        %v367 = vadd.f32 0.0, %v366
        %v368 = vpop.f32.mrb[0].mxu0
        %v369 = vpop.f32.mrb[0].mxu0
        %v370 = vpop.f32.mrb[0].mxu0
        %371 = vdwg.mxu0
        %s372 = scalar_lea.vmem [#allocation2], 8
        %v373 = vld [vmem:[%s372] sm:$0xf]
        %s374 = scalar_lea.vmem %s189, 64 [#allocation5]
        %v375 = vld [vmem:[%s374] sm:$0xf]
        %v376 = vld [vmem:[%s374 + $0x4] sm:$0xf]
        %v377 = vld [vmem:[%s374 + $0x8] sm:$0xf]
        %v378 = vld [vmem:[%s374 + $0xc] sm:$0xf]
        %v379 = vld [vmem:[%s374 + $0x10] sm:$0xf]
        %v380 = vld [vmem:[%s374 + $0x14] sm:$0xf]
        %v381 = vld [vmem:[%s374 + $0x18] sm:$0xf]
        %v382 = vld [vmem:[%s374 + $0x1c] sm:$0xf]
        %v391 = vunpack.c.l.b16 %v375
        %v392 = vunpack.c.l.b16 %v376
        %v393 = vunpack.c.l.b16 %v377
        %v394 = vunpack.c.l.b16 %v378
        %v395 = vunpack.c.l.b16 %v379
        %v396 = vunpack.c.l.b16 %v380
        %v397 = vunpack.c.l.b16 %v381
        %v398 = vunpack.c.l.b16 %v382
        %v399 = vpack.c.b16 %v392, %v391
        %v400 = vpack.c.b16 %v394, %v393
        %v401 = vpack.c.b16 %v396, %v395
        %v402 = vpack.c.b16 %v398, %v397
        %v408 = vsel %vm250, %v373, 0
        %410 = vmatprep.subr.bf16.mxu0 0
        %411 = vmatpush1.bf16.msra.mxu0 %v399
        %412 = vmatprep.subr.bf16.mxu0 0
        %413 = vmatpush1.bf16.msra.mxu0 %v400
        %414 = vmatprep.subr.bf16.mxu0 0
        %415 = vmatpush1.bf16.msra.mxu0 %v401
        %416 = vmatprep.subr.bf16.mxu0 0
        %417 = vmatpush1.bf16.msra.mxu0 %v402
        %418 = vmatprep.subr.bf16.mxu0 0
        %419 = vmatpush1.bf16.msra.mxu0 0
        %420 = vmatprep.subr.bf16.mxu0 0
        %421 = vmatpush1.bf16.msra.mxu0 0
        %422 = vmatprep.subr.bf16.mxu0 0
        %423 = vmatpush1.bf16.msra.mxu0 0
        %424 = vmatprep.subr.bf16.mxu0 0
        %425 = vmatpush1.bf16.msra.mxu0 0
        %426 = vmatprep.subr.bf16.mxu0 0
        %427 = vmatpush1.bf16.msra.mxu0 0
        %428 = vmatprep.subr.bf16.mxu0 0
        %429 = vmatpush1.bf16.msra.mxu0 0
        %430 = vmatprep.subr.bf16.mxu0 0
        %431 = vmatpush1.bf16.msra.mxu0 0
        %432 = vmatprep.subr.bf16.mxu0 0
        %433 = vmatpush1.bf16.msra.mxu0 0
        %434 = vmatprep.subr.bf16.mxu0 0
        %435 = vmatpush1.bf16.msra.mxu0 0
        %436 = vmatprep.subr.bf16.mxu0 0
        %437 = vmatpush1.bf16.msra.mxu0 0
        %438 = vmatprep.subr.bf16.mxu0 0
        %439 = vmatpush1.bf16.msra.mxu0 0
        %440 = vmatprep.subr.bf16.mxu0 0
        %441 = vmatpush1.bf16.msra.mxu0 0
        %442 = vmatprep.mubr.bf16.mxu0 0
        %443 = vmatmul.mubr.bf16.gmra.mrb[0].mxu0 %v408
        %v444 = vpop.f32.mrb[0].mxu0
        %v445 = vadd.f32 0.0, %v444
        %v446 = vpop.f32.mrb[0].mxu0
        %v447 = vpop.f32.mrb[0].mxu0
        %v448 = vpop.f32.mrb[0].mxu0
        %449 = vdwg.mxu0
        %s450 = scalar_lea.vmem [#allocation2], 12
        %v451 = vld [vmem:[%s450] sm:$0xf]
        %s452 = scalar_lea.vmem %s189, 96 [#allocation5]
        %v453 = vld [vmem:[%s452] sm:$0xf]
        %v454 = vld [vmem:[%s452 + $0x4] sm:$0xf]
        %v455 = vld [vmem:[%s452 + $0x8] sm:$0xf]
        %v456 = vld [vmem:[%s452 + $0xc] sm:$0xf]
        %v457 = vld [vmem:[%s452 + $0x10] sm:$0xf]
        %v458 = vld [vmem:[%s452 + $0x14] sm:$0xf]
        %v459 = vld [vmem:[%s452 + $0x18] sm:$0xf]
        %v460 = vld [vmem:[%s452 + $0x1c] sm:$0xf]
        %v469 = vunpack.c.l.b16 %v453
        %v470 = vunpack.c.l.b16 %v454
        %v471 = vunpack.c.l.b16 %v455
        %v472 = vunpack.c.l.b16 %v456
        %v473 = vunpack.c.l.b16 %v457
        %v474 = vunpack.c.l.b16 %v458
        %v475 = vunpack.c.l.b16 %v459
        %v476 = vunpack.c.l.b16 %v460
        %v477 = vpack.c.b16 %v470, %v469
        %v478 = vpack.c.b16 %v472, %v471
        %v479 = vpack.c.b16 %v474, %v473
        %v480 = vpack.c.b16 %v476, %v475
        %v486 = vsel %vm250, %v451, 0
        %488 = vmatprep.subr.bf16.mxu0 0
        %489 = vmatpush1.bf16.msra.mxu0 %v477
        %490 = vmatprep.subr.bf16.mxu0 0
        %491 = vmatpush1.bf16.msra.mxu0 %v478
        %492 = vmatprep.subr.bf16.mxu0 0
        %493 = vmatpush1.bf16.msra.mxu0 %v479
        %494 = vmatprep.subr.bf16.mxu0 0
        %495 = vmatpush1.bf16.msra.mxu0 %v480
        %496 = vmatprep.subr.bf16.mxu0 0
        %497 = vmatpush1.bf16.msra.mxu0 0
        %498 = vmatprep.subr.bf16.mxu0 0
        %499 = vmatpush1.bf16.msra.mxu0 0
        %500 = vmatprep.subr.bf16.mxu0 0
        %501 = vmatpush1.bf16.msra.mxu0 0
        %502 = vmatprep.subr.bf16.mxu0 0
        %503 = vmatpush1.bf16.msra.mxu0 0
        %504 = vmatprep.subr.bf16.mxu0 0
        %505 = vmatpush1.bf16.msra.mxu0 0
        %506 = vmatprep.subr.bf16.mxu0 0
        %507 = vmatpush1.bf16.msra.mxu0 0
        %508 = vmatprep.subr.bf16.mxu0 0
        %509 = vmatpush1.bf16.msra.mxu0 0
        %510 = vmatprep.subr.bf16.mxu0 0
        %511 = vmatpush1.bf16.msra.mxu0 0
        %512 = vmatprep.subr.bf16.mxu0 0
        %513 = vmatpush1.bf16.msra.mxu0 0
        %514 = vmatprep.subr.bf16.mxu0 0
        %515 = vmatpush1.bf16.msra.mxu0 0
        %516 = vmatprep.subr.bf16.mxu0 0
        %517 = vmatpush1.bf16.msra.mxu0 0
        %518 = vmatprep.subr.bf16.mxu0 0
        %519 = vmatpush1.bf16.msra.mxu0 0
        %520 = vmatprep.mubr.bf16.mxu0 0
        %521 = vmatmul.mubr.bf16.gmra.mrb[0].mxu0 %v486
        %v522 = vpop.f32.mrb[0].mxu0
        %v523 = vadd.f32 0.0, %v522
        %v524 = vpop.f32.mrb[0].mxu0
        %v525 = vpop.f32.mrb[0].mxu0
        %v526 = vpop.f32.mrb[0].mxu0
        %527 = vdwg.mxu0
        %529 = vrot.lane.b32.xlu0 %v367, 64
        %v530 = vpop.permute.xlu0 %529
        %533 = vrot.lane.b32.xlu0 %v523, 64
        %v534 = vpop.permute.xlu0 %533
        %v536 = vsel %vm250, %v289, %v530
        %v537 = vsel %vm250, %v445, %v534
        %v538 = vadd.f32 %v536, %v537
        %539 = vadd.xlane.f32.xlu0 %v538
        %v540 = vpop.xlane.xlu0 %539
        %v541 = vrcp.pop 256.0
        %v542 = vmul.f32 %v540, %v541
        %v543 = vsub.f32 %v536, %v542
        %v544 = vsub.f32 %v537, %v542
        %v545 = vmul.f32 %v543, %v543
        %v546 = vmul.f32 %v544, %v544
        %v547 = vadd.f32 %v545, %v546
        %548 = vadd.xlane.f32.xlu0 %v547
        %v549 = vpop.xlane.xlu0 %548
        %v550 = vmul.f32 %v549, %v541
        %v551 = vadd.f32 %v550, 1e-05
        %v552 = vrsqrt.pop %v551
        %v553 = vmul.f32 %v543, %v552
        %v554 = vmul.f32 %v544, %v552
        %v555 = vmax.f32 %v553, 0.0
        %v556 = vmax.f32 %v554, 0.0
        %557 = vst [vmem:[%s215] sm:$0xff] %v555
        %558 = vst [vmem:[%s215 + $0x8] sm:$0xff] %v556
        %s559 = sand.u32 %s97, 1
        %s560 = scalar_lea.sflag [#allocation4], %s559
        %s561 = sand.u32 %s97, 1
        %s562 = smul.addr %s561, 16
        %s563 = scalar_lea.vmem [#allocation8], %s562
        // Predicated region
        $region45: #{_lambda_.18} parent=31 // pred_check
          %p564 = pneg %p107
        $region46: #{_lambda_.18} parent=31 // pred_check_branch
          %566 = sbr.rel (%p564) target = $region48
        $region47: #{_lambda_.18} parent=31 // pred_region
          %s568 = ssub.s32 256, 256
          %569 = vsyncadd %s560, %s568
          %s570 = smul.addr %s21, 2
          %s571 = smul.addr %s570, 128
          %s572 = scalar_lea.hbm %s3, %s571
          %s574 = sshll.u32 %s563, 4
          %s575 = int_to_ptr.vmem [resolvable:$true] %s574
          %577 = dma.vmem_to_hbm [thread:$0]  %s575, 256, %s572, %s560
        $region48: #{_lambda_.18} parent=31 // pred_fallthru
          _
      $region32: #{_lambda_.18} parent=5 // pred_fallthru
        _
      %p578 = scmp.le.s32.totalorder 2, %s16
      // Predicated region
      $region49: #{_lambda_.18} parent=5 // pred_check
        %p579 = pneg %p578
      $region50: #{_lambda_.18} parent=5 // pred_check_branch
        %581 = sbr.rel (%p579) target = $region52
      $region51: #{_lambda_.18} parent=5 // pred_region
        %s582 = ssub.s32 %s16, 2
        // Predicated region
        $region53: #{_lambda_.18} parent=51 // pred_check
          %p583 = pneg %p113
        $region54: #{_lambda_.18} parent=51 // pred_check_branch
          %585 = sbr.rel (%p583) target = $region56
        $region55: #{_lambda_.18} parent=51 // pred_region
          %s586 = sand.u32 %s98, 1
          %s587 = scalar_lea.sflag [#allocation4], %s586
          %s588 = sand.u32 %s98, 1
          %s589 = smul.addr %s588, 16
          %s590 = scalar_lea.vmem [#allocation8], %s589
          %591 = dma.done %s587, 256
        $region56: #{_lambda_.18} parent=51 // pred_fallthru
          _
      $region52: #{_lambda_.18} parent=5 // pred_fallthru
        _
    $region6: #{_lambda_.18} parent=1 // loop_footer
      %s20 = sadd.s32 1, %s16
    $region7: #{_lambda_.18} parent=1 // loop_footer_branch
      %15 = sbr.rel target = $region3
    $region8: #{_lambda_.18} parent=1 // loop_exit
      _
    %592 = vsyncpa [#allocation3], 1
    %s593 = scalar_lea.sflag [#allocation3], 1
    %594 = vsyncpa %s593, 1
    %595 = vsyncpa [#allocation6], 1
    %s596 = scalar_lea.sflag [#allocation6], 1
    %597 = vsyncpa %s596, 1
    %598 = vsyncpa [#allocation4], 1
    %s599 = scalar_lea.sflag [#allocation4], 1
    %600 = vsyncpa %s599, 1

// kernel: _lambda_.19
$region0: #{_lambda_.19}
  #allocation0 [shape = 'u32[]', space=smem, size = 0x4, offset = 0x4, fixed_abs, tag = 'smem constant byte address 0x4 - core index']
  #allocation1 [shape = 'u32[144,128]{1,0:T(1,128)}', space=vmem, size = 0x12000, scoped, tag = 'internal scratch']
  %s0 = inlined_call_operand.hbm [shape: bf16[1,3,392], index: 0, kind: input, shape index: {}]
  %s1 = inlined_call_operand.hbm [shape: bf16[2,1,392,256], index: 1, kind: input, shape index: {}]
  %s2 = inlined_call_operand.hbm [shape: f32[3,1], index: 2, kind: input, shape index: {}]
  %s3 = inlined_call_operand.hbm [shape: f32[2,3,256], index: 3, kind: output, shape index: {}]
  %s4 = sld [smem:[#allocation0]]
  $region57: #{_lambda_.19} parent=0
    _
  %s6 = ssub.s32 1, %s4
  %s7 = scalar_select 0, %s6, %s4
  $region1: #{_lambda_.19} parent=0
    #allocation2 [shape = 'u8[4096]{0}', space=vmem, size = 0x1000, scoped, tag = 'input window, operand 0, single buffered']
    #allocation3 [shape = 's32[2]{0}', space=sflag, size = 0x8, scoped, tag = 'scoped memory for _lambda_.19']
    #allocation4 [shape = 's32[2]{0}', space=sflag, size = 0x8, scoped, tag = 'scoped memory for _lambda_.19']
    #allocation5 [shape = 'u8[401408]{0}', space=vmem, size = 0x62000, scoped, tag = 'input window, operand 1']
    #allocation6 [shape = 's32[2]{0}', space=sflag, size = 0x8, scoped, tag = 'scoped memory for _lambda_.19']
    #allocation7 [shape = 'u8[2048]{0}', space=vmem, size = 0x800, scoped, tag = 'input window, operand 2, single buffered']
    #allocation8 [shape = 'u8[8192]{0}', space=vmem, size = 0x2000, scoped, tag = 'output window, operand 0']
    %8 = vsyncpa [#allocation3], 0
    %9 = vsyncpa [#allocation6], 0
    %s10 = scalar_lea.sflag [#allocation6], 1
    %11 = vsyncpa %s10, 0
    %12 = vsyncpa [#allocation4], 0
    %s13 = scalar_lea.sflag [#allocation4], 1
    %14 = vsyncpa %s13, 0
    loop: start=0, step=1, limit=4
    $region2: #{_lambda_.19} parent=1 // loop_pre_header
      _
    $region3: #{_lambda_.19} parent=1 // loop_header
      %s16 = sphi 0, %s20
      %p17 = scmp.ge.s32.totalorder %s16, 4
      %s24 = sphi 0, %s24
      %s26 = sphi 0, %s24
      %s27 = sphi 0, %s26
      %s41 = sphi 0, %s27
      %s47 = sphi 0, %s49
      %s50 = sphi 0, %s47
      %s51 = sphi 0, %s50
      %s67 = sphi 0, %s51
      %s71 = sphi 0, %s71
      %s73 = sphi 0, %s71
      %s74 = sphi 0, %s73
      %s88 = sphi 0, %s74
      %s94 = sphi 0, %s96
      %s97 = sphi 0, %s94
      %s98 = sphi 0, %s97
      %s114 = sphi 0, %s98
    $region4: #{_lambda_.19} parent=1 // loop_header_branch
      %19 = sbr.rel (%p17) target = $region8
    $region5: #{_lambda_.19} parent=1 // loop_body
      %s21 = ssub.s32 %s16, 1
      %s22 = ssub.s32 %s16, 2
      %s23 = sadd.s32 %s16, 1
      %s25 = sadd.s32 %s24, 1
      %p28 = scmp.eq.s32.totalorder %s16, 1
      %p29 = scmp.ne.s32.totalorder %s24, %s26
      %p30 = scmp.eq.s32.totalorder %s16, 0
      %p31 = por %p29, %p30
      %p32 = scmp.ne.s32.totalorder %s24, %s26
      %p33 = scmp.eq.s32.totalorder %s21, 1
      %p34 = por %p32, %p33
      %p35 = scmp.ne.s32.totalorder %s26, %s27
      %p36 = scmp.eq.s32.totalorder %s21, 0
      %p37 = por %p35, %p36
      %p38 = scmp.ne.s32.totalorder %s26, %s27
      %p39 = scmp.eq.s32.totalorder %s22, 1
      %p40 = por %p38, %p39
      %p42 = scmp.ne.s32.totalorder %s27, %s41
      %p43 = scmp.eq.s32.totalorder %s22, 0
      %p44 = por %p42, %p43
      %s45 = ssub.s32 %s16, %s23
      %p46 = scmp.eq.s32.totalorder %s45, 0
      %s48 = sadd.s32 %s47, 1
      %s49 = scalar_select %p46, %s47, %s48
      %p52 = pneg %p46
      %p53 = scmp.eq.s32.totalorder %s16, 1
      %p54 = por %p52, %p53
      %p55 = scmp.ne.s32.totalorder %s47, %s50
      %p56 = scmp.eq.s32.totalorder %s16, 0
      %p57 = por %p55, %p56
      %p58 = scmp.ne.s32.totalorder %s47, %s50
      %p59 = scmp.eq.s32.totalorder %s21, 1
      %p60 = por %p58, %p59
      %p61 = scmp.ne.s32.totalorder %s50, %s51
      %p62 = scmp.eq.s32.totalorder %s21, 0
      %p63 = por %p61, %p62
      %p64 = scmp.ne.s32.totalorder %s50, %s51
      %p65 = scmp.eq.s32.totalorder %s22, 1
      %p66 = por %p64, %p65
      %p68 = scmp.ne.s32.totalorder %s51, %s67
      %p69 = scmp.eq.s32.totalorder %s22, 0
      %p70 = por %p68, %p69
      %s72 = sadd.s32 %s71, 1
      %p75 = scmp.eq.s32.totalorder %s16, 1
      %p76 = scmp.ne.s32.totalorder %s71, %s73
      %p77 = scmp.eq.s32.totalorder %s16, 0
      %p78 = por %p76, %p77
      %p79 = scmp.ne.s32.totalorder %s71, %s73
      %p80 = scmp.eq.s32.totalorder %s21, 1
      %p81 = por %p79, %p80
      %p82 = scmp.ne.s32.totalorder %s73, %s74
      %p83 = scmp.eq.s32.totalorder %s21, 0
      %p84 = por %p82, %p83
      %p85 = scmp.ne.s32.totalorder %s73, %s74
      %p86 = scmp.eq.s32.totalorder %s22, 1
      %p87 = por %p85, %p86
      %p89 = scmp.ne.s32.totalorder %s74, %s88
      %p90 = scmp.eq.s32.totalorder %s22, 0
      %p91 = por %p89, %p90
      %s92 = ssub.s32 %s16, %s23
      %p93 = scmp.eq.s32.totalorder %s92, 0
      %s95 = sadd.s32 %s94, 1
      %s96 = scalar_select %p93, %s94, %s95
      %p99 = pneg %p93
      %p100 = scmp.eq.s32.totalorder %s16, 1
      %p101 = por %p99, %p100
      %p102 = scmp.ne.s32.totalorder %s94, %s97
      %p103 = scmp.eq.s32.totalorder %s16, 0
      %p104 = por %p102, %p103
      %p105 = scmp.ne.s32.totalorder %s94, %s97
      %p106 = scmp.eq.s32.totalorder %s21, 1
      %p107 = por %p105, %p106
      %p108 = scmp.ne.s32.totalorder %s97, %s98
      %p109 = scmp.eq.s32.totalorder %s21, 0
      %p110 = por %p108, %p109
      %p111 = scmp.ne.s32.totalorder %s97, %s98
      %p112 = scmp.eq.s32.totalorder %s22, 1
      %p113 = por %p111, %p112
      %p115 = scmp.ne.s32.totalorder %s98, %s114
      %p116 = scmp.eq.s32.totalorder %s22, 0
      %p117 = por %p115, %p116
      %p118 = scmp.le.s32.totalorder 1, %s16
      %p119 = scmp.lt.s32.totalorder %s16, 3
      %p120 = pnand %p118, %p119
      %p121 = pneg %p120
      // Predicated region
      $region9: #{_lambda_.19} parent=5 // pred_check
        _
      $region10: #{_lambda_.19} parent=5 // pred_check_branch
        %123 = sbr.rel (%p120) target = $region12
      $region11: #{_lambda_.19} parent=5 // pred_region
        %s124 = ssub.s32 %s16, 1
        // Predicated region
        $region13: #{_lambda_.19} parent=11 // pred_check
          %p125 = pneg %p37
        $region14: #{_lambda_.19} parent=11 // pred_check_branch
          %127 = sbr.rel (%p125) target = $region16
        $region15: #{_lambda_.19} parent=11 // pred_region
          %s129 = ssub.s32 128, 128
          %130 = vsyncadd [#allocation3], %s129
          %s132 = sshll.u32 [#allocation2], 4
          %s133 = int_to_ptr.vmem [resolvable:$true] %s132
          %135 = dma.hbm_to_vmem [thread:$0]  %s0, 128, %s133, [#allocation3]
        $region16: #{_lambda_.19} parent=11 // pred_fallthru
          _
        // Predicated region
        $region17: #{_lambda_.19} parent=11 // pred_check
          %p136 = pneg %p84
        $region18: #{_lambda_.19} parent=11 // pred_check_branch
          %138 = sbr.rel (%p136) target = $region20
        $region19: #{_lambda_.19} parent=11 // pred_region
          %s140 = ssub.s32 64, 64
          %141 = vsyncadd [#allocation6], %s140
          %s143 = sshll.u32 [#allocation7], 4
          %s144 = int_to_ptr.vmem [resolvable:$true] %s143
          %146 = dma.hbm_to_vmem [thread:$0]  %s2, 64, %s144, [#allocation6]
        $region20: #{_lambda_.19} parent=11 // pred_fallthru
          _
      $region12: #{_lambda_.19} parent=5 // pred_fallthru
        _
      %p147 = scmp.lt.s32.totalorder %s16, 2
      // Predicated region
      $region21: #{_lambda_.19} parent=5 // pred_check
        %p148 = pneg %p147
      $region22: #{_lambda_.19} parent=5 // pred_check_branch
        %150 = sbr.rel (%p148) target = $region24
      $region23: #{_lambda_.19} parent=5 // pred_region
        // Predicated region
        $region25: #{_lambda_.19} parent=23 // pred_check
          %p151 = pneg %p57
        $region26: #{_lambda_.19} parent=23 // pred_check_branch
          %153 = sbr.rel (%p151) target = $region28
        $region27: #{_lambda_.19} parent=23 // pred_region
          %s154 = sand.u32 %s16, 1
          %s155 = scalar_lea.sflag [#allocation6], %s154
          %s156 = sand.u32 %s47, 1
          %s157 = smul.addr %s156, 392
          %s158 = scalar_lea.vmem [#allocation5], %s157
          %s160 = ssub.s32 6272, 6272
          %161 = vsyncadd %s155, %s160
          %s162 = smul.addr %s16, 98
          %s163 = smul.addr %s162, 64
          %s164 = scalar_lea.hbm %s1, %s163
          %s165 = sshll.u32 %s158, 4
          %s166 = int_to_ptr.vmem [resolvable:$true] %s165
          %171 = dma.hbm_to_vmem [thread:$0]  %s164, 6272, %s166, %s155, 128, 128, 8
        $region28: #{_lambda_.19} parent=23 // pred_fallthru
          _
      $region24: #{_lambda_.19} parent=5 // pred_fallthru
        _
      %p172 = scmp.le.s32.totalorder 1, %s16
      %p173 = scmp.lt.s32.totalorder %s16, 3
      %p174 = pnand %p172, %p173
      %p175 = pneg %p174
      // Predicated region
      $region29: #{_lambda_.19} parent=5 // pred_check
        _
      $region30: #{_lambda_.19} parent=5 // pred_check_branch
        %177 = sbr.rel (%p174) target = $region32
      $region31: #{_lambda_.19} parent=5 // pred_region
        %s178 = ssub.s32 %s16, 1
        // Predicated region
        $region33: #{_lambda_.19} parent=31 // pred_check
          %p179 = pneg %p37
        $region34: #{_lambda_.19} parent=31 // pred_check_branch
          %181 = sbr.rel (%p179) target = $region36
        $region35: #{_lambda_.19} parent=31 // pred_region
          %182 = dma.done [#allocation3], 128
        $region36: #{_lambda_.19} parent=31 // pred_fallthru
          _
        %s183 = sand.u32 %s21, 1
        %s184 = scalar_lea.sflag [#allocation6], %s183
        %s185 = sand.u32 %s50, 1
        %s186 = smul.addr %s185, 392
        %s187 = scalar_lea.vmem [#allocation5], %s186
        // Predicated region
        $region37: #{_lambda_.19} parent=31 // pred_check
          %p188 = pneg %p63
        $region38: #{_lambda_.19} parent=31 // pred_check_branch
          %190 = sbr.rel (%p188) target = $region40
        $region39: #{_lambda_.19} parent=31 // pred_region
          %191 = dma.done %s184, 6272
        $region40: #{_lambda_.19} parent=31 // pred_fallthru
          _
        // Predicated region
        $region41: #{_lambda_.19} parent=31 // pred_check
          %p192 = pneg %p84
        $region42: #{_lambda_.19} parent=31 // pred_check_branch
          %194 = sbr.rel (%p192) target = $region44
        $region43: #{_lambda_.19} parent=31 // pred_region
          %195 = dma.done [#allocation6], 64
        $region44: #{_lambda_.19} parent=31 // pred_fallthru
          _
        %p196 = pneg %p37
        %p197 = pneg %p34
        %s198 = sand.u32 %s21, 1
        %s199 = scalar_lea.sflag [#allocation6], %s198
        %s200 = sand.u32 %s50, 1
        %s201 = smul.addr %s200, 392
        %s202 = scalar_lea.vmem [#allocation5], %s201
        %p203 = pneg %p63
        %p204 = pneg %p60
        %p205 = pneg %p84
        %p206 = pneg %p81
        %p207 = pneg %p110
        %p208 = pneg %p107
        %s209 = sand.u32 %s97, 1
        %s210 = scalar_lea.sflag [#allocation4], %s209
        %s211 = sand.u32 %s97, 1
        %s212 = smul.addr %s211, 8
        %s213 = scalar_lea.vmem [#allocation8], %s212
        %v215 = vld [vmem:[#allocation2] sm:$0xff]
        %v216 = vld [vmem:[%s187] sm:$0xff]
        %v217 = vld [vmem:[%s187 + $0x8] sm:$0xff]
        %v218 = vld [vmem:[%s187 + $0x10] sm:$0xff]
        %v219 = vld [vmem:[%s187 + $0x18] sm:$0xff]
        %v220 = vld [vmem:[%s187 + $0x20] sm:$0xff]
        %v221 = vld [vmem:[%s187 + $0x28] sm:$0xff]
        %v222 = vld [vmem:[%s187 + $0x30] sm:$0xff]
        %v223 = vld [vmem:[%s187 + $0x38] sm:$0xff]
        %v224 = vld [vmem:[%s187 + $0x40] sm:$0xff]
        %v225 = vld [vmem:[%s187 + $0x48] sm:$0xff]
        %v226 = vld [vmem:[%s187 + $0x50] sm:$0xff]
        %v227 = vld [vmem:[%s187 + $0x58] sm:$0xff]
        %v228 = vld [vmem:[%s187 + $0x60] sm:$0xff]
        %v229 = vld [vmem:[%s187 + $0x68] sm:$0xff]
        %v230 = vld [vmem:[%s187 + $0x70] sm:$0xff]
        %v231 = vld [vmem:[%s187 + $0x78] sm:$0xff]
        %v232 = vld [vmem:[%s187 + $0x80] sm:$0xff]
        %v233 = vld [vmem:[%s187 + $0x88] sm:$0xff]
        %v234 = vld [vmem:[%s187 + $0x90] sm:$0xff]
        %v235 = vld [vmem:[%s187 + $0x98] sm:$0xff]
        %v236 = vld [vmem:[%s187 + $0xa0] sm:$0xff]
        %v237 = vld [vmem:[%s187 + $0xa8] sm:$0xff]
        %v238 = vld [vmem:[%s187 + $0xb0] sm:$0xff]
        %v239 = vld [vmem:[%s187 + $0xb8] sm:$0xff]
        %v240 = vld [vmem:[%s187 + $0xc0] sm:$0xff]
        %v241 = vld [vmem:[%s187 + $0xc8] sm:$0xff]
        %v242 = vld [vmem:[%s187 + $0xd0] sm:$0xff]
        %v243 = vld [vmem:[%s187 + $0xd8] sm:$0xff]
        %v244 = vld [vmem:[%s187 + $0xe0] sm:$0xff]
        %v245 = vld [vmem:[%s187 + $0xe8] sm:$0xff]
        %v246 = vld [vmem:[%s187 + $0xf0] sm:$0xff]
        %v247 = vld [vmem:[%s187 + $0xf8] sm:$0xff]
        %v248 = vld [vmem:[%s187 + $0x100] sm:$0xff]
        %v249 = vld [vmem:[%s187 + $0x108] sm:$0xff]
        %v250 = vld [vmem:[%s187 + $0x110] sm:$0xff]
        %v251 = vld [vmem:[%s187 + $0x118] sm:$0xff]
        %v252 = vld [vmem:[%s187 + $0x120] sm:$0xff]
        %v253 = vld [vmem:[%s187 + $0x128] sm:$0xff]
        %v254 = vld [vmem:[%s187 + $0x130] sm:$0xff]
        %v255 = vld [vmem:[%s187 + $0x138] sm:$0xff]
        %v256 = vld [vmem:[%s187 + $0x140] sm:$0xff]
        %v257 = vld [vmem:[%s187 + $0x148] sm:$0xff]
        %v258 = vld [vmem:[%s187 + $0x150] sm:$0xff]
        %v259 = vld [vmem:[%s187 + $0x158] sm:$0xff]
        %v260 = vld [vmem:[%s187 + $0x160] sm:$0xff]
        %v261 = vld [vmem:[%s187 + $0x168] sm:$0xff]
        %v262 = vld [vmem:[%s187 + $0x170] sm:$0xff]
        %v263 = vld [vmem:[%s187 + $0x178] sm:$0xff]
        %v264 = vld [vmem:[%s187 + $0x180] sm:$0xff]
        %v265 = vld [vmem:[#allocation7] sm:$0x7]
        %267 = vset.pattern.permute.xlu0 0
        %268 = vperm.xlu0 %267, %v265
        %v269 = vpop.permute.xlu0 %268
        %v272 = vcombine.high %v215, %v215
        %v274 = vunpack.c.l.s4 1983009808
        %v275 = vunpack.c.0.s8 %v274
        %v276 = vlaneseq
        %v277 = vshrl.u32 %v276, 7
        %v278 = vsub.s32 %v275, %v277
        %v279 = vrot.slane %v215, %v278
        %v281 = vunpack.c.l.s4 1983009808
        %v282 = vunpack.c.0.s8 %v281
        %v283 = vlaneseq
        %v284 = vshrl.u32 %v283, 7
        %v285 = vsub.s32 %v282, %v284
        %v286 = vrot.slane %v272, %v285
        %v287 = vcombine.high %v279, %v279
        %v288 = vcombine.high %v286, %v286
        %v341 = vunpack.c.l.b16 %v216
        %v342 = vunpack.c.h.b16 %v216
        %v343 = vunpack.c.l.b16 %v217
        %v344 = vunpack.c.h.b16 %v217
        %v345 = vunpack.c.l.b16 %v218
        %v346 = vunpack.c.h.b16 %v218
        %v347 = vunpack.c.l.b16 %v219
        %v348 = vunpack.c.h.b16 %v219
        %v349 = vunpack.c.l.b16 %v220
        %v350 = vunpack.c.h.b16 %v220
        %v351 = vunpack.c.l.b16 %v221
        %v352 = vunpack.c.h.b16 %v221
        %v353 = vunpack.c.l.b16 %v222
        %v354 = vunpack.c.h.b16 %v222
        %v355 = vunpack.c.l.b16 %v223
        %v356 = vunpack.c.h.b16 %v223
        %v357 = vunpack.c.l.b16 %v224
        %v358 = vunpack.c.h.b16 %v224
        %v359 = vunpack.c.l.b16 %v225
        %v360 = vunpack.c.h.b16 %v225
        %v361 = vunpack.c.l.b16 %v226
        %v362 = vunpack.c.h.b16 %v226
        %v363 = vunpack.c.l.b16 %v227
        %v364 = vunpack.c.h.b16 %v227
        %v365 = vunpack.c.l.b16 %v228
        %v366 = vunpack.c.h.b16 %v228
        %v367 = vunpack.c.l.b16 %v229
        %v368 = vunpack.c.h.b16 %v229
        %v369 = vunpack.c.l.b16 %v230
        %v370 = vunpack.c.h.b16 %v230
        %v371 = vunpack.c.l.b16 %v231
        %v372 = vunpack.c.h.b16 %v231
        %v373 = vunpack.c.l.b16 %v232
        %v374 = vunpack.c.h.b16 %v232
        %v375 = vunpack.c.l.b16 %v233
        %v376 = vunpack.c.h.b16 %v233
        %v377 = vunpack.c.l.b16 %v234
        %v378 = vunpack.c.h.b16 %v234
        %v379 = vunpack.c.l.b16 %v235
        %v380 = vunpack.c.h.b16 %v235
        %v381 = vunpack.c.l.b16 %v236
        %v382 = vunpack.c.h.b16 %v236
        %v383 = vunpack.c.l.b16 %v237
        %v384 = vunpack.c.h.b16 %v237
        %v385 = vunpack.c.l.b16 %v238
        %v386 = vunpack.c.h.b16 %v238
        %v387 = vunpack.c.l.b16 %v239
        %v388 = vunpack.c.h.b16 %v239
        %v389 = vunpack.c.l.b16 %v240
        %v390 = vunpack.c.h.b16 %v240
        %v391 = vunpack.c.l.b16 %v241
        %v392 = vunpack.c.h.b16 %v241
        %v393 = vunpack.c.l.b16 %v242
        %v394 = vunpack.c.h.b16 %v242
        %v395 = vunpack.c.l.b16 %v243
        %v396 = vunpack.c.h.b16 %v243
        %v397 = vunpack.c.l.b16 %v244
        %v398 = vunpack.c.h.b16 %v244
        %v399 = vunpack.c.l.b16 %v245
        %v400 = vunpack.c.h.b16 %v245
        %v401 = vunpack.c.l.b16 %v246
        %v402 = vunpack.c.h.b16 %v246
        %v403 = vunpack.c.l.b16 %v247
        %v404 = vunpack.c.h.b16 %v247
        %v405 = vunpack.c.l.b16 %v248
        %v406 = vunpack.c.h.b16 %v248
        %v407 = vunpack.c.l.b16 %v249
        %v408 = vunpack.c.h.b16 %v249
        %v409 = vunpack.c.l.b16 %v250
        %v410 = vunpack.c.h.b16 %v250
        %v411 = vunpack.c.l.b16 %v251
        %v412 = vunpack.c.h.b16 %v251
        %v413 = vunpack.c.l.b16 %v252
        %v414 = vunpack.c.h.b16 %v252
        %v415 = vunpack.c.l.b16 %v253
        %v416 = vunpack.c.h.b16 %v253
        %v417 = vunpack.c.l.b16 %v254
        %v418 = vunpack.c.h.b16 %v254
        %v419 = vunpack.c.l.b16 %v255
        %v420 = vunpack.c.h.b16 %v255
        %v421 = vunpack.c.l.b16 %v256
        %v422 = vunpack.c.h.b16 %v256
        %v423 = vunpack.c.l.b16 %v257
        %v424 = vunpack.c.h.b16 %v257
        %v425 = vunpack.c.l.b16 %v258
        %v426 = vunpack.c.h.b16 %v258
        %v427 = vunpack.c.l.b16 %v259
        %v428 = vunpack.c.h.b16 %v259
        %v429 = vunpack.c.l.b16 %v260
        %v430 = vunpack.c.h.b16 %v260
        %v431 = vunpack.c.l.b16 %v261
        %v432 = vunpack.c.h.b16 %v261
        %v433 = vunpack.c.l.b16 %v262
        %v434 = vunpack.c.h.b16 %v262
        %v435 = vunpack.c.l.b16 %v263
        %v436 = vunpack.c.h.b16 %v263
        %v437 = vunpack.c.l.b16 %v264
        %v438 = vunpack.c.h.b16 %v264
        %v439 = vpack.c.b16 %v343, %v341
        %v440 = vpack.c.b16 %v344, %v342
        %v441 = vpack.c.b16 %v347, %v345
        %v442 = vpack.c.b16 %v348, %v346
        %v443 = vpack.c.b16 %v351, %v349
        %v444 = vpack.c.b16 %v352, %v350
        %v445 = vpack.c.b16 %v355, %v353
        %v446 = vpack.c.b16 %v356, %v354
        %v447 = vpack.c.b16 %v359, %v357
        %v448 = vpack.c.b16 %v360, %v358
        %v449 = vpack.c.b16 %v363, %v361
        %v450 = vpack.c.b16 %v364, %v362
        %v451 = vpack.c.b16 %v367, %v365
        %v452 = vpack.c.b16 %v368, %v366
        %v453 = vpack.c.b16 %v371, %v369
        %v454 = vpack.c.b16 %v372, %v370
        %v455 = vpack.c.b16 %v375, %v373
        %v456 = vpack.c.b16 %v376, %v374
        %v457 = vpack.c.b16 %v379, %v377
        %v458 = vpack.c.b16 %v380, %v378
        %v459 = vpack.c.b16 %v383, %v381
        %v460 = vpack.c.b16 %v384, %v382
        %v461 = vpack.c.b16 %v387, %v385
        %v462 = vpack.c.b16 %v388, %v386
        %v463 = vpack.c.b16 %v391, %v389
        %v464 = vpack.c.b16 %v392, %v390
        %v465 = vpack.c.b16 %v395, %v393
        %v466 = vpack.c.b16 %v396, %v394
        %v467 = vpack.c.b16 %v399, %v397
        %v468 = vpack.c.b16 %v400, %v398
        %v469 = vpack.c.b16 %v403, %v401
        %v470 = vpack.c.b16 %v404, %v402
        %v471 = vpack.c.b16 %v407, %v405
        %v472 = vpack.c.b16 %v408, %v406
        %v473 = vpack.c.b16 %v411, %v409
        %v474 = vpack.c.b16 %v412, %v410
        %v475 = vpack.c.b16 %v415, %v413
        %v476 = vpack.c.b16 %v416, %v414
        %v477 = vpack.c.b16 %v419, %v417
        %v478 = vpack.c.b16 %v420, %v418
        %v479 = vpack.c.b16 %v423, %v421
        %v480 = vpack.c.b16 %v424, %v422
        %v481 = vpack.c.b16 %v427, %v425
        %v482 = vpack.c.b16 %v428, %v426
        %v483 = vpack.c.b16 %v431, %v429
        %v484 = vpack.c.b16 %v432, %v430
        %v485 = vpack.c.b16 %v435, %v433
        %v486 = vpack.c.b16 %v436, %v434
        %v487 = vpack.c.b16 %v437, %v437
        %v488 = vpack.c.b16 %v438, %v438
        %vm537 = vcmask 64512
        %v539 = vsel %vm537, %v288, 0
        %vm541 = vcmask 1043456
        %v543 = vsel %vm541, %v487, 0
        %v546 = vsel %vm541, %v488, 0
        %548 = vmatprep.subr.bf16.mxu0 %v440
        %549 = vmatpush1.bf16.msra.mxu0 %v439
        %550 = vmatprep.subr.bf16.mxu0 %v442
        %551 = vmatpush1.bf16.msra.mxu0 %v441
        %552 = vmatprep.subr.bf16.mxu0 %v444
        %553 = vmatpush1.bf16.msra.mxu0 %v443
        %554 = vmatprep.subr.bf16.mxu0 %v446
        %555 = vmatpush1.bf16.msra.mxu0 %v445
        %556 = vmatprep.subr.bf16.mxu0 %v448
        %557 = vmatpush1.bf16.msra.mxu0 %v447
        %558 = vmatprep.subr.bf16.mxu0 %v450
        %559 = vmatpush1.bf16.msra.mxu0 %v449
        %560 = vmatprep.subr.bf16.mxu0 %v452
        %561 = vmatpush1.bf16.msra.mxu0 %v451
        %562 = vmatprep.subr.bf16.mxu0 %v454
        %563 = vmatpush1.bf16.msra.mxu0 %v453
        %564 = vmatprep.subr.bf16.mxu0 %v456
        %565 = vmatpush1.bf16.msra.mxu0 %v455
        %566 = vmatprep.subr.bf16.mxu0 %v458
        %567 = vmatpush1.bf16.msra.mxu0 %v457
        %568 = vmatprep.subr.bf16.mxu0 %v460
        %569 = vmatpush1.bf16.msra.mxu0 %v459
        %570 = vmatprep.subr.bf16.mxu0 %v462
        %571 = vmatpush1.bf16.msra.mxu0 %v461
        %572 = vmatprep.subr.bf16.mxu0 %v464
        %573 = vmatpush1.bf16.msra.mxu0 %v463
        %574 = vmatprep.subr.bf16.mxu0 %v466
        %575 = vmatpush1.bf16.msra.mxu0 %v465
        %576 = vmatprep.subr.bf16.mxu0 %v468
        %577 = vmatpush1.bf16.msra.mxu0 %v467
        %578 = vmatprep.subr.bf16.mxu0 %v470
        %579 = vmatpush1.bf16.msra.mxu0 %v469
        %580 = vmatprep.mubr.bf16.mxu0 %v287
        %581 = vmatmul.mubr.bf16.gmra.mrb[0].mxu0 %v279
        %v582 = vpop.f32.mrb[0].mxu0
        %v583 = vadd.f32 %v269, %v582
        %v584 = vpop.f32.mrb[0].mxu0
        %v585 = vadd.f32 %v269, %v584
        %v586 = vpop.f32.mrb[0].mxu0
        %v587 = vpop.f32.mrb[0].mxu0
        %588 = vdwg.mxu0
        %589 = vmatprep.subr.bf16.mxu0 %v472
        %590 = vmatpush1.bf16.msra.mxu0 %v471
        %591 = vmatprep.subr.bf16.mxu0 %v474
        %592 = vmatpush1.bf16.msra.mxu0 %v473
        %593 = vmatprep.subr.bf16.mxu0 %v476
        %594 = vmatpush1.bf16.msra.mxu0 %v475
        %595 = vmatprep.subr.bf16.mxu0 %v478
        %596 = vmatpush1.bf16.msra.mxu0 %v477
        %597 = vmatprep.subr.bf16.mxu0 %v480
        %598 = vmatpush1.bf16.msra.mxu0 %v479
        %599 = vmatprep.subr.bf16.mxu0 %v482
        %600 = vmatpush1.bf16.msra.mxu0 %v481
        %601 = vmatprep.subr.bf16.mxu0 %v484
        %602 = vmatpush1.bf16.msra.mxu0 %v483
        %603 = vmatprep.subr.bf16.mxu0 %v486
        %604 = vmatpush1.bf16.msra.mxu0 %v485
        %605 = vmatprep.subr.bf16.mxu0 %v546
        %606 = vmatpush1.bf16.msra.mxu0 %v543
        %607 = vmatprep.subr.bf16.mxu0 0
        %608 = vmatpush1.bf16.msra.mxu0 0
        %609 = vmatprep.subr.bf16.mxu0 0
        %610 = vmatpush1.bf16.msra.mxu0 0
        %611 = vmatprep.subr.bf16.mxu0 0
        %612 = vmatpush1.bf16.msra.mxu0 0
        %613 = vmatprep.subr.bf16.mxu0 0
        %614 = vmatpush1.bf16.msra.mxu0 0
        %615 = vmatprep.subr.bf16.mxu0 0
        %616 = vmatpush1.bf16.msra.mxu0 0
        %617 = vmatprep.subr.bf16.mxu0 0
        %618 = vmatpush1.bf16.msra.mxu0 0
        %619 = vmatprep.subr.bf16.mxu0 0
        %620 = vmatpush1.bf16.msra.mxu0 0
        %621 = vmatprep.mubr.bf16.mxu0 %v539
        %622 = vmatmul.mubr.bf16.gmra.mrb[0].mxu0 %v286
        %v623 = vpop.f32.mrb[0].mxu0
        %v624 = vadd.f32 %v583, %v623
        %v625 = vpop.f32.mrb[0].mxu0
        %v626 = vadd.f32 %v585, %v625
        %v627 = vpop.f32.mrb[0].mxu0
        %v628 = vpop.f32.mrb[0].mxu0
        %629 = vdwg.mxu0
        %v630 = vtanh.pop %v624
        %v631 = vtanh.pop %v626
        %v632 = vadd.f32 %v630, 1.0
        %v633 = vadd.f32 %v631, 1.0
        %v634 = vmul.f32 %v632, 0.5
        %v635 = vmul.f32 %v633, 0.5
        %v638 = vcombine.low %v634, %v635
        %640 = vst [vmem:[%s213] sm:$0x77] %v638
        %s641 = sand.u32 %s97, 1
        %s642 = scalar_lea.sflag [#allocation4], %s641
        %s643 = sand.u32 %s97, 1
        %s644 = smul.addr %s643, 8
        %s645 = scalar_lea.vmem [#allocation8], %s644
        // Predicated region
        $region45: #{_lambda_.19} parent=31 // pred_check
          %p646 = pneg %p107
        $region46: #{_lambda_.19} parent=31 // pred_check_branch
          %648 = sbr.rel (%p646) target = $region48
        $region47: #{_lambda_.19} parent=31 // pred_region
          %s650 = ssub.s32 128, 128
          %651 = vsyncadd %s642, %s650
          %s652 = smul.addr %s21, 2
          %s653 = smul.addr %s652, 64
          %s654 = scalar_lea.hbm %s3, %s653
          %s656 = sshll.u32 %s645, 4
          %s657 = int_to_ptr.vmem [resolvable:$true] %s656
          %659 = dma.vmem_to_hbm [thread:$0]  %s657, 128, %s654, %s642
        $region48: #{_lambda_.19} parent=31 // pred_fallthru
          _
      $region32: #{_lambda_.19} parent=5 // pred_fallthru
        _
      %p660 = scmp.le.s32.totalorder 2, %s16
      // Predicated region
      $region49: #{_lambda_.19} parent=5 // pred_check
        %p661 = pneg %p660
      $region50: #{_lambda_.19} parent=5 // pred_check_branch
        %663 = sbr.rel (%p661) target = $region52
      $region51: #{_lambda_.19} parent=5 // pred_region
        %s664 = ssub.s32 %s16, 2
        // Predicated region
        $region53: #{_lambda_.19} parent=51 // pred_check
          %p665 = pneg %p113
        $region54: #{_lambda_.19} parent=51 // pred_check_branch
          %667 = sbr.rel (%p665) target = $region56
        $region55: #{_lambda_.19} parent=51 // pred_region
          %s668 = sand.u32 %s98, 1
          %s669 = scalar_lea.sflag [#allocation4], %s668
          %s670 = sand.u32 %s98, 1
          %s671 = smul.addr %s670, 8
          %s672 = scalar_lea.vmem [#allocation8], %s671
          %673 = dma.done %s669, 128
        $region56: #{_lambda_.19} parent=51 // pred_fallthru
          _
      $region52: #{_lambda_.19} parent=5 // pred_fallthru
        _
    $region6: #{_lambda_.19} parent=1 // loop_footer
      %s20 = sadd.s32 1, %s16
    $region7: #{_lambda_.19} parent=1 // loop_footer_branch
      %15 = sbr.rel target = $region3
    $region8: #{_lambda_.19} parent=1 // loop_exit
      _
    %674 = vsyncpa [#allocation3], 1
    %s675 = scalar_lea.sflag [#allocation3], 1
    %676 = vsyncpa %s675, 1
    %677 = vsyncpa [#allocation6], 1
    %s678 = scalar_lea.sflag [#allocation6], 1
    %679 = vsyncpa %s678, 1
    %680 = vsyncpa [#allocation4], 1
    %s681 = scalar_lea.sflag [#allocation4], 1
    %682 = vsyncpa %s681, 1

</llo_original>
